<compile_context>
chip_gen: v7x
topology: tpu7x:2x2x1
jax: 0.10.0
libtpu: 0.0.40
codegen_flags: <defaults>
</compile_context>

<pallas_src>
import functools

import jax
import jax.numpy as jnp
from jax.experimental import pallas as pl
from jax.experimental.pallas import tpu as pltpu


def _conv_taps_kernel(kh_kw, w_out, xe_ref, xo_ref, w_ref, y_ref, stat_ref):
    """Pass 1: stride-(1,2) conv as KH*KW accumulating MXU dots + partial BN stats.

    xe_ref  : (1, H, We, Cin)     even W columns of the NHWC input (matmul dtype)
    xo_ref  : (1, H, Wo, Cin)     odd  W columns
    w_ref   : (KH*KW, Cin, Cout)  per-tap weights, tap order t = kh*KW + kw
    y_ref   : (1, M, Cout)        conv output, matmul-native layout, bf16
    stat_ref: (1, 2, Cout)        rows = [tile mean, tile M2] over this sample
    """
    KH, KW = kh_kw
    _, H, _, Cin = xe_ref.shape
    H_out = H - KH + 1
    W_out = w_out
    M = H_out * W_out
    Cout = w_ref.shape[2]

    # One accumulating MXU dot per conv tap; every tap slice is a contiguous
    # window of the pre-deinterleaved even/odd inputs (no im2col patch buffer,
    # no lane-axis concatenation).
    acc = jnp.zeros((M, Cout), jnp.float32)
    for kh in range(KH):
        for kw in range(KW):
            src_ref = xe_ref if kw % 2 == 0 else xo_ref
            c0 = kw // 2
            tap = src_ref[0, kh:kh + H_out, c0:c0 + W_out, :]   # (H_out, W_out, Cin)
            acc = acc + jnp.dot(tap.reshape(M, Cin), w_ref[kh * KW + kw],
                                preferred_element_type=jnp.float32)

    # Per-tile BN statistics from the f32 accumulator: (mean, sum of squared
    # deviations).  Combined across tiles in the wrapper (Chan's formula) to
    # avoid E[x^2]-E[x]^2 cancellation.
    mu = jnp.sum(acc, axis=0, keepdims=True) * (1.0 / M)        # (1, Cout)
    d = acc - mu
    m2 = jnp.sum(d * d, axis=0, keepdims=True)                  # (1, Cout)
    stat_ref[0] = jnp.concatenate([mu, m2], axis=0)             # (2, Cout)

    # bf16 intermediate, matmul-native layout (no in-kernel repack).
    y_ref[0] = acc.astype(y_ref.dtype)


def _bn_prelu_kernel(y_ref, scale_ref, shift_ref, alpha_ref, o_ref):
    """Pass 2: fused BN affine (y*scale + shift) + per-channel PReLU.

    y_ref  : (1, M, C) bf16        conv intermediate, matmul-native layout
    scale/shift/alpha refs : (1, C) f32, applied by broadcast over rows
    o_ref  : (1, M, C) f32
    """
    y = y_ref[0].astype(jnp.float32)                     # (M, C)
    yn = y * scale_ref[...] + shift_ref[...]             # (1, C) broadcast
    o_ref[0] = jnp.where(yn >= 0.0, yn, alpha_ref[...] * yn).astype(o_ref.dtype)


def conv2dunit_forward(x_nchw, weight_oikk, bias, gamma, beta, alpha,
                       *, eps=1e-5, matmul_dtype=jnp.bfloat16,
                       vmem_limit_bytes=48 * 1024 * 1024):
    """Forward of Conv2dunit.  x_nchw: (N, C, H, W) f32; weight: (Cout, Cin, KH, KW).

    matmul_dtype: MXU input dtype for the conv (bf16 is native on v5e/v6e/v7x;
    accumulation, BN stats and all BN/PReLU elementwise math stay in f32).
    Pass jnp.float32 if bit-closer parity with PyTorch's f32 conv is required.
    """
    del bias  # conv bias cancels exactly under training-mode BN (mean absorbs it)

    N, C, H, W = x_nchw.shape
    Cout, Cin, KH, KW = weight_oikk.shape
    assert C == Cin == Cout

    H_out = H - KH + 1                 # stride 1 along H, no padding
    W_out = (W - KW) // 2 + 1          # stride 2 along W, no padding
    M = H_out * W_out

    # NCHW -> NHWC, stride-2 column deinterleave and matmul-dtype cast, done
    # exactly once in the wrapper (strided W slices are not free views inside
    # the kernel).  These should fuse into a single relayout producer; when
    # chaining Conv2dunit layers keep NHWC activations to avoid re-transposing.
    x_nhwc = jnp.transpose(x_nchw, (0, 2, 3, 1))
    x_even = x_nhwc[:, :, 0::2, :].astype(matmul_dtype)     # (N, H, ceil(W/2), C)
    x_odd = x_nhwc[:, :, 1::2, :].astype(matmul_dtype)      # (N, H, W//2,      C)
    We, Wo = x_even.shape[2], x_odd.shape[2]
    for kw in range(KW):               # all taps must fit the deinterleaved widths
        need = kw // 2 + W_out
        assert need <= (We if kw % 2 == 0 else Wo), (kw, need, We, Wo)

    # Per-tap (Cin, Cout) weights, tap order t = kh*KW + kw.
    w_taps = jnp.transpose(weight_oikk, (2, 3, 1, 0)).reshape(KH * KW, Cin, Cout)
    w_taps = w_taps.astype(matmul_dtype)

    cparams = pltpu.CompilerParams(dimension_semantics=("parallel",),
                                   vmem_limit_bytes=vmem_limit_bytes)

    # ---- Pass 1: conv (tap-wise accumulating dots) + per-sample BN stats ----
    kernel1 = functools.partial(_conv_taps_kernel, (KH, KW), W_out)
    y_conv, stats = pl.pallas_call(
        kernel1,
        out_shape=(jax.ShapeDtypeStruct((N, M, C), matmul_dtype),
                   jax.ShapeDtypeStruct((N, 2, C), jnp.float32)),
        grid=(N,),
        in_specs=[pl.BlockSpec((1, H, We, C), lambda n: (n, 0, 0, 0)),
                  pl.BlockSpec((1, H, Wo, C), lambda n: (n, 0, 0, 0)),
                  pl.BlockSpec((KH * KW, Cin, Cout), lambda n: (0, 0, 0))],
        out_specs=(pl.BlockSpec((1, M, C), lambda n: (n, 0, 0)),
                   pl.BlockSpec((1, 2, C), lambda n: (n, 0, 0))),
        compiler_params=cparams,       # megacore split over batch + vmem limit
    )(x_even, x_odd, w_taps)

    # ---- Tiny JAX glue: combine per-tile (mean, M2) -> one fused scale/shift.
    # Chan's parallel combine (equal-sized tiles), biased variance as in BN.
    count = jnp.float32(N * M)
    mu_t = stats[:, 0, :]                                   # (N, C)
    m2_t = stats[:, 1, :]                                   # (N, C)
    mean = jnp.mean(mu_t, axis=0)
    var = (jnp.sum(m2_t, axis=0)
           + M * jnp.sum(jnp.square(mu_t - mean), axis=0)) / count
    scale = gamma.astype(jnp.float32) * jax.lax.rsqrt(var + eps)
    shift = beta.astype(jnp.float32) - mean * scale

    scale2 = scale.reshape(1, C)
    shift2 = shift.reshape(1, C)
    alpha2 = alpha.astype(jnp.float32).reshape(1, C)

    # ---- Pass 2: normalize + PReLU, per batch tile ---------------------------
    out_mc = pl.pallas_call(
        _bn_prelu_kernel,
        out_shape=jax.ShapeDtypeStruct((N, M, C), jnp.float32),
        grid=(N,),
        in_specs=[pl.BlockSpec((1, M, C), lambda n: (n, 0, 0)),
                  pl.BlockSpec((1, C), lambda n: (0, 0)),
                  pl.BlockSpec((1, C), lambda n: (0, 0)),
                  pl.BlockSpec((1, C), lambda n: (0, 0))],
        out_specs=pl.BlockSpec((1, M, C), lambda n: (n, 0, 0)),
        compiler_params=cparams,
    )(y_conv, scale2, shift2, alpha2)

    # (N, M, C) -> (N, C, H_out, W_out) for PyTorch NCHW parity.  This trailing
    # relayout is XLA glue; when chaining Conv2dunit layers keep NHWC instead.
    out = out_mc.reshape(N, H_out, W_out, C)
    return jnp.transpose(out, (0, 3, 1, 2))


if __name__ == "__main__":
    # Conv2dunit(k=(2, 3), c=4, norm_type='BN')
    k = (2, 3)
    c = 4
    N, H, W = 2, 16, 16

    key = jax.random.PRNGKey(0)
    kx, kw_, kb = jax.random.split(key, 3)

    x = jax.random.normal(kx, (N, c, H, W), dtype=jnp.float32)

    # Deterministic synthetic parameters (shapes per nn.Conv2d / BN / PReLU init)
    weight = 0.1 * jax.random.normal(kw_, (c, c, k[0], k[1]), dtype=jnp.float32)
    bias = 0.05 * jax.random.normal(kb, (c,), dtype=jnp.float32)
    gamma = jnp.ones((c,), jnp.float32)          # BatchNorm2d weight init
    beta = jnp.zeros((c,), jnp.float32)          # BatchNorm2d bias init
    alpha = jnp.full((c,), 0.25, jnp.float32)    # PReLU default init

    out = conv2dunit_forward(x, weight, bias, gamma, beta, alpha)
    jax.block_until_ready(out)

    expected_shape = (N, c, H - k[0] + 1, (W - k[1]) // 2 + 1)
    assert out.shape == expected_shape, (out.shape, expected_shape)
    print("KERNEL_OK")
</pallas_src>

<mosaic_0001>
module attributes {stable_mosaic.version = 11 : i64} {
  func.func @_conv_taps_kernel(%arg0: i32, %arg1: memref<1x16x8x4xbf16, #tpu.memory_space<vmem>>, %arg2: memref<1x16x8x4xbf16, #tpu.memory_space<vmem>>, %arg3: memref<6x4x4xbf16, #tpu.memory_space<vmem>>, %arg4: memref<1x105x4xbf16, #tpu.memory_space<vmem>>, %arg5: memref<1x2x4xf32, #tpu.memory_space<vmem>>) attributes {dimension_semantics = [#tpu.dimension_semantics<parallel>], iteration_bounds = array<i64: 2>, scalar_prefetch = 0 : i64, scratch_operands = 0 : i64, tpu.core_type = #tpu.core_type<tc>, window_params = [{transform_indices = @transform_0, window_bounds = array<i64: 1, 16, 8, 4>}, {transform_indices = @transform_1, window_bounds = array<i64: 1, 16, 8, 4>}, {pipeline_mode = #tpu.pipeline_mode<synchronous>, transform_indices = @transform_2, window_bounds = array<i64: 6, 4, 4>}, {transform_indices = @transform_3, window_bounds = array<i64: 1, 105, 4>}, {transform_indices = @transform_4, window_bounds = array<i64: 1, 2, 4>}]} {
    %cst = arith.constant 0.000000e+00 : f32
    %0 = vector.broadcast %cst : f32 to vector<105x4xf32>
    %c0 = arith.constant 0 : index
    %c0_0 = arith.constant 0 : index
    %c0_1 = arith.constant 0 : index
    %c0_2 = arith.constant 0 : index
    %1 = vector.load %arg1[%c0, %c0_0, %c0_1, %c0_2] : memref<1x16x8x4xbf16, #tpu.memory_space<vmem>>, vector<1x15x7x4xbf16>
    %2 = vector.shape_cast %1 : vector<1x15x7x4xbf16> to vector<15x7x4xbf16>
    %3 = vector.shape_cast %2 : vector<15x7x4xbf16> to vector<105x4xbf16>
    %c0_3 = arith.constant 0 : index
    %c0_4 = arith.constant 0 : index
    %c0_5 = arith.constant 0 : index
    %4 = vector.load %arg3[%c0_3, %c0_4, %c0_5] : memref<6x4x4xbf16, #tpu.memory_space<vmem>>, vector<1x4x4xbf16>
    %5 = vector.shape_cast %4 : vector<1x4x4xbf16> to vector<4x4xbf16>
    %cst_6 = arith.constant dense<0.000000e+00> : vector<105x4xf32>
    %6 = tpu.matmul %3, %5, %cst_6 {dimension_numbers = #tpu.dot_dimension_numbers<[1], [0], [0], [1], [0, 0, 1, 1], [], []>} : vector<105x4xbf16>, vector<4x4xbf16>, vector<105x4xf32> -> vector<105x4xf32>
    %7 = arith.addf %0, %6 : vector<105x4xf32>
    %c0_7 = arith.constant 0 : index
    %c0_8 = arith.constant 0 : index
    %c0_9 = arith.constant 0 : index
    %c0_10 = arith.constant 0 : index
    %8 = vector.load %arg2[%c0_7, %c0_8, %c0_9, %c0_10] : memref<1x16x8x4xbf16, #tpu.memory_space<vmem>>, vector<1x15x7x4xbf16>
    %9 = vector.shape_cast %8 : vector<1x15x7x4xbf16> to vector<15x7x4xbf16>
    %10 = vector.shape_cast %9 : vector<15x7x4xbf16> to vector<105x4xbf16>
    %c1 = arith.constant 1 : index
    %c0_11 = arith.constant 0 : index
    %c0_12 = arith.constant 0 : index
    %11 = vector.load %arg3[%c1, %c0_11, %c0_12] : memref<6x4x4xbf16, #tpu.memory_space<vmem>>, vector<1x4x4xbf16>
    %12 = vector.shape_cast %11 : vector<1x4x4xbf16> to vector<4x4xbf16>
    %cst_13 = arith.constant dense<0.000000e+00> : vector<105x4xf32>
    %13 = tpu.matmul %10, %12, %cst_13 {dimension_numbers = #tpu.dot_dimension_numbers<[1], [0], [0], [1], [0, 0, 1, 1], [], []>} : vector<105x4xbf16>, vector<4x4xbf16>, vector<105x4xf32> -> vector<105x4xf32>
    %14 = arith.addf %7, %13 : vector<105x4xf32>
    %c0_14 = arith.constant 0 : index
    %c0_15 = arith.constant 0 : index
    %c1_16 = arith.constant 1 : index
    %c0_17 = arith.constant 0 : index
    %15 = vector.load %arg1[%c0_14, %c0_15, %c1_16, %c0_17] : memref<1x16x8x4xbf16, #tpu.memory_space<vmem>>, vector<1x15x7x4xbf16>
    %16 = vector.shape_cast %15 : vector<1x15x7x4xbf16> to vector<15x7x4xbf16>
    %17 = vector.shape_cast %16 : vector<15x7x4xbf16> to vector<105x4xbf16>
    %c2 = arith.constant 2 : index
    %c0_18 = arith.constant 0 : index
    %c0_19 = arith.constant 0 : index
    %18 = vector.load %arg3[%c2, %c0_18, %c0_19] : memref<6x4x4xbf16, #tpu.memory_space<vmem>>, vector<1x4x4xbf16>
    %19 = vector.shape_cast %18 : vector<1x4x4xbf16> to vector<4x4xbf16>
    %cst_20 = arith.constant dense<0.000000e+00> : vector<105x4xf32>
    %20 = tpu.matmul %17, %19, %cst_20 {dimension_numbers = #tpu.dot_dimension_numbers<[1], [0], [0], [1], [0, 0, 1, 1], [], []>} : vector<105x4xbf16>, vector<4x4xbf16>, vector<105x4xf32> -> vector<105x4xf32>
    %21 = arith.addf %14, %20 : vector<105x4xf32>
    %c0_21 = arith.constant 0 : index
    %c1_22 = arith.constant 1 : index
    %c0_23 = arith.constant 0 : index
    %c0_24 = arith.constant 0 : index
    %22 = vector.load %arg1[%c0_21, %c1_22, %c0_23, %c0_24] : memref<1x16x8x4xbf16, #tpu.memory_space<vmem>>, vector<1x15x7x4xbf16>
    %23 = vector.shape_cast %22 : vector<1x15x7x4xbf16> to vector<15x7x4xbf16>
    %24 = vector.shape_cast %23 : vector<15x7x4xbf16> to vector<105x4xbf16>
    %c3 = arith.constant 3 : index
    %c0_25 = arith.constant 0 : index
    %c0_26 = arith.constant 0 : index
    %25 = vector.load %arg3[%c3, %c0_25, %c0_26] : memref<6x4x4xbf16, #tpu.memory_space<vmem>>, vector<1x4x4xbf16>
    %26 = vector.shape_cast %25 : vector<1x4x4xbf16> to vector<4x4xbf16>
    %cst_27 = arith.constant dense<0.000000e+00> : vector<105x4xf32>
    %27 = tpu.matmul %24, %26, %cst_27 {dimension_numbers = #tpu.dot_dimension_numbers<[1], [0], [0], [1], [0, 0, 1, 1], [], []>} : vector<105x4xbf16>, vector<4x4xbf16>, vector<105x4xf32> -> vector<105x4xf32>
    %28 = arith.addf %21, %27 : vector<105x4xf32>
    %c0_28 = arith.constant 0 : index
    %c1_29 = arith.constant 1 : index
    %c0_30 = arith.constant 0 : index
    %c0_31 = arith.constant 0 : index
    %29 = vector.load %arg2[%c0_28, %c1_29, %c0_30, %c0_31] : memref<1x16x8x4xbf16, #tpu.memory_space<vmem>>, vector<1x15x7x4xbf16>
    %30 = vector.shape_cast %29 : vector<1x15x7x4xbf16> to vector<15x7x4xbf16>
    %31 = vector.shape_cast %30 : vector<15x7x4xbf16> to vector<105x4xbf16>
    %c4 = arith.constant 4 : index
    %c0_32 = arith.constant 0 : index
    %c0_33 = arith.constant 0 : index
    %32 = vector.load %arg3[%c4, %c0_32, %c0_33] : memref<6x4x4xbf16, #tpu.memory_space<vmem>>, vector<1x4x4xbf16>
    %33 = vector.shape_cast %32 : vector<1x4x4xbf16> to vector<4x4xbf16>
    %cst_34 = arith.constant dense<0.000000e+00> : vector<105x4xf32>
    %34 = tpu.matmul %31, %33, %cst_34 {dimension_numbers = #tpu.dot_dimension_numbers<[1], [0], [0], [1], [0, 0, 1, 1], [], []>} : vector<105x4xbf16>, vector<4x4xbf16>, vector<105x4xf32> -> vector<105x4xf32>
    %35 = arith.addf %28, %34 : vector<105x4xf32>
    %c0_35 = arith.constant 0 : index
    %c1_36 = arith.constant 1 : index
    %c1_37 = arith.constant 1 : index
    %c0_38 = arith.constant 0 : index
    %36 = vector.load %arg1[%c0_35, %c1_36, %c1_37, %c0_38] : memref<1x16x8x4xbf16, #tpu.memory_space<vmem>>, vector<1x15x7x4xbf16>
    %37 = vector.shape_cast %36 : vector<1x15x7x4xbf16> to vector<15x7x4xbf16>
    %38 = vector.shape_cast %37 : vector<15x7x4xbf16> to vector<105x4xbf16>
    %c5 = arith.constant 5 : index
    %c0_39 = arith.constant 0 : index
    %c0_40 = arith.constant 0 : index
    %39 = vector.load %arg3[%c5, %c0_39, %c0_40] : memref<6x4x4xbf16, #tpu.memory_space<vmem>>, vector<1x4x4xbf16>
    %40 = vector.shape_cast %39 : vector<1x4x4xbf16> to vector<4x4xbf16>
    %cst_41 = arith.constant dense<0.000000e+00> : vector<105x4xf32>
    %41 = tpu.matmul %38, %40, %cst_41 {dimension_numbers = #tpu.dot_dimension_numbers<[1], [0], [0], [1], [0, 0, 1, 1], [], []>} : vector<105x4xbf16>, vector<4x4xbf16>, vector<105x4xf32> -> vector<105x4xf32>
    %42 = arith.addf %35, %41 : vector<105x4xf32>
    %cst_42 = arith.constant dense<0.000000e+00> : vector<4xf32>
    %43 = vector.multi_reduction <add>, %42, %cst_42 [0] : vector<105x4xf32> to vector<4xf32>
    %44 = vector.shape_cast %43 : vector<4xf32> to vector<1x4xf32>
    %cst_43 = arith.constant 9.523810e-03 : f32
    %45 = vector.broadcast %cst_43 : f32 to vector<1x4xf32>
    %46 = arith.mulf %44, %45 : vector<1x4xf32>
    %47 = vector.broadcast %46 : vector<1x4xf32> to vector<105x4xf32>
    %48 = arith.subf %42, %47 : vector<105x4xf32>
    %49 = arith.mulf %48, %48 : vector<105x4xf32>
    %cst_44 = arith.constant dense<0.000000e+00> : vector<4xf32>
    %50 = vector.multi_reduction <add>, %49, %cst_44 [0] : vector<105x4xf32> to vector<4xf32>
    %51 = vector.shape_cast %50 : vector<4xf32> to vector<1x4xf32>
    %52 = tpu.concatenate %46, %51 in 0 : vector<1x4xf32>, vector<1x4xf32> -> vector<2x4xf32>
    %c0_45 = arith.constant 0 : index
    %c0_46 = arith.constant 0 : index
    %c0_47 = arith.constant 0 : index
    %53 = vector.load %arg5[%c0_45, %c0_46, %c0_47] : memref<1x2x4xf32, #tpu.memory_space<vmem>>, vector<1x2x4xf32>
    %54 = vector.shape_cast %53 : vector<1x2x4xf32> to vector<2x4xf32>
    %55 = vector.shape_cast %52 : vector<2x4xf32> to vector<1x2x4xf32>
    tpu.vector_store %arg5[%c0_45, %c0_46, %c0_47], %55 {strides = array<i32>} : memref<1x2x4xf32, #tpu.memory_space<vmem>>, vector<1x2x4xf32>,
    %56 = arith.truncf %42 : vector<105x4xf32> to vector<105x4xbf16>
    %c0_48 = arith.constant 0 : index
    %c0_49 = arith.constant 0 : index
    %c0_50 = arith.constant 0 : index
    %57 = vector.load %arg4[%c0_48, %c0_49, %c0_50] : memref<1x105x4xbf16, #tpu.memory_space<vmem>>, vector<1x105x4xbf16>
    %58 = vector.shape_cast %57 : vector<1x105x4xbf16> to vector<105x4xbf16>
    %59 = vector.shape_cast %56 : vector<105x4xbf16> to vector<1x105x4xbf16>
    tpu.vector_store %arg4[%c0_48, %c0_49, %c0_50], %59 {strides = array<i32>} : memref<1x105x4xbf16, #tpu.memory_space<vmem>>, vector<1x105x4xbf16>,
    return
  }
  func.func @transform_0(%arg0: i32) -> (i32, i32, i32, i32) {
    %c0_i32 = arith.constant 0 : i32
    %c0_i32_0 = arith.constant 0 : i32
    %c0_i32_1 = arith.constant 0 : i32
    %c0_i32_2 = arith.constant 0 : i32
    return %arg0, %c0_i32, %c0_i32_0, %c0_i32_1 : i32, i32, i32, i32
  }
  func.func @transform_1(%arg0: i32) -> (i32, i32, i32, i32) {
    %c0_i32 = arith.constant 0 : i32
    %c0_i32_0 = arith.constant 0 : i32
    %c0_i32_1 = arith.constant 0 : i32
    %c0_i32_2 = arith.constant 0 : i32
    return %arg0, %c0_i32, %c0_i32_0, %c0_i32_1 : i32, i32, i32, i32
  }
  func.func @transform_2(%arg0: i32) -> (i32, i32, i32) {
    %c0_i32 = arith.constant 0 : i32
    %c0_i32_0 = arith.constant 0 : i32
    %c0_i32_1 = arith.constant 0 : i32
    %c0_i32_2 = arith.constant 0 : i32
    return %c0_i32, %c0_i32_0, %c0_i32_1 : i32, i32, i32
  }
  func.func @transform_3(%arg0: i32) -> (i32, i32, i32) {
    %c0_i32 = arith.constant 0 : i32
    %c0_i32_0 = arith.constant 0 : i32
    %c0_i32_1 = arith.constant 0 : i32
    return %arg0, %c0_i32, %c0_i32_0 : i32, i32, i32
  }
  func.func @transform_4(%arg0: i32) -> (i32, i32, i32) {
    %c0_i32 = arith.constant 0 : i32
    %c0_i32_0 = arith.constant 0 : i32
    %c0_i32_1 = arith.constant 0 : i32
    return %arg0, %c0_i32, %c0_i32_0 : i32, i32, i32
  }
}

</mosaic_0001>

<llo_original>
// kernel: tpu_custom_call.1
$region0: #{tpu_custom_call.1}
  #allocation0 [shape = 'u32[]', space=smem, size = 0x4, offset = 0x4, fixed_abs, tag = 'smem constant byte address 0x4 - core index']
  #allocation1 [shape = 'u32[144,128]{1,0:T(1,128)}', space=vmem, size = 0x12000, scoped, tag = 'internal scratch']
  %s0 = inlined_call_operand.vmem [shape: bf16[2,16,8,4], index: 0, kind: input, shape index: {}]
  %s1 = inlined_call_operand.vmem [shape: bf16[2,16,8,4], index: 1, kind: input, shape index: {}]
  %s2 = inlined_call_operand.vmem [shape: bf16[6,4,4], index: 2, kind: input, shape index: {}]
  %s3 = inlined_call_operand.vmem [shape: bf16[2,105,4], index: 3, kind: output, shape index: {0}]
  %s4 = inlined_call_operand.hbm [shape: f32[2,2,4], index: 4, kind: output, shape index: {1}]
  %5 = xla_tuple %s3, %s4
  %s6 = sld [smem:[#allocation0]]
  $region53: #{tpu_custom_call.1} parent=0
    _
  %s8 = ssub.s32 1, %s6
  %s9 = scalar_select 0, %s8, %s6
  $region1: #{tpu_custom_call.1} parent=0
    #allocation2 [shape = 'u8[2048]{0}', space=vmem, size = 0x800, scoped, tag = 'output window, operand 1']
    #allocation3 [shape = 's32[2]{0}', space=sflag, size = 0x8, scoped, tag = 'scoped memory for tpu_custom_call.1']
    %10 = vsyncpa [#allocation3], 0
    %s11 = scalar_lea.sflag [#allocation3], 1
    %12 = vsyncpa %s11, 0
    loop: start=0, step=1, limit=4
    $region2: #{tpu_custom_call.1} parent=1 // loop_pre_header
      _
    $region3: #{tpu_custom_call.1} parent=1 // loop_header
      %s14 = sphi 0, %s18
      %p15 = scmp.ge.s32.totalorder %s14, 4
      %s24 = sphi 0, %s26
      %s27 = sphi 0, %s24
      %s28 = sphi 0, %s27
      %s44 = sphi 0, %s28
      %s50 = sphi 0, %s52
      %s53 = sphi 0, %s50
      %s54 = sphi 0, %s53
      %s70 = sphi 0, %s54
      %s74 = sphi 0, %s74
      %s76 = sphi 0, %s74
      %s77 = sphi 0, %s76
      %s91 = sphi 0, %s77
      %s97 = sphi 0, %s99
      %s100 = sphi 0, %s97
      %s101 = sphi 0, %s100
      %s117 = sphi 0, %s101
      %s123 = sphi 0, %s125
      %s126 = sphi 0, %s123
      %s127 = sphi 0, %s126
      %s143 = sphi 0, %s127
    $region4: #{tpu_custom_call.1} parent=1 // loop_header_branch
      %17 = sbr.rel (%p15) target = $region8
    $region5: #{tpu_custom_call.1} parent=1 // loop_body
      %s19 = ssub.s32 %s14, 1
      %s20 = ssub.s32 %s14, 2
      %s21 = sadd.s32 %s14, 1
      %s22 = ssub.s32 %s14, %s21
      %p23 = scmp.eq.s32.totalorder %s22, 0
      %s25 = sadd.s32 %s24, 1
      %s26 = scalar_select %p23, %s24, %s25
      %p29 = pneg %p23
      %p30 = scmp.eq.s32.totalorder %s14, 1
      %p31 = por %p29, %p30
      %p32 = scmp.ne.s32.totalorder %s24, %s27
      %p33 = scmp.eq.s32.totalorder %s14, 0
      %p34 = por %p32, %p33
      %p35 = scmp.ne.s32.totalorder %s24, %s27
      %p36 = scmp.eq.s32.totalorder %s19, 1
      %p37 = por %p35, %p36
      %p38 = scmp.ne.s32.totalorder %s27, %s28
      %p39 = scmp.eq.s32.totalorder %s19, 0
      %p40 = por %p38, %p39
      %p41 = scmp.ne.s32.totalorder %s27, %s28
      %p42 = scmp.eq.s32.totalorder %s20, 1
      %p43 = por %p41, %p42
      %p45 = scmp.ne.s32.totalorder %s28, %s44
      %p46 = scmp.eq.s32.totalorder %s20, 0
      %p47 = por %p45, %p46
      %s48 = ssub.s32 %s14, %s21
      %p49 = scmp.eq.s32.totalorder %s48, 0
      %s51 = sadd.s32 %s50, 1
      %s52 = scalar_select %p49, %s50, %s51
      %p55 = pneg %p49
      %p56 = scmp.eq.s32.totalorder %s14, 1
      %p57 = por %p55, %p56
      %p58 = scmp.ne.s32.totalorder %s50, %s53
      %p59 = scmp.eq.s32.totalorder %s14, 0
      %p60 = por %p58, %p59
      %p61 = scmp.ne.s32.totalorder %s50, %s53
      %p62 = scmp.eq.s32.totalorder %s19, 1
      %p63 = por %p61, %p62
      %p64 = scmp.ne.s32.totalorder %s53, %s54
      %p65 = scmp.eq.s32.totalorder %s19, 0
      %p66 = por %p64, %p65
      %p67 = scmp.ne.s32.totalorder %s53, %s54
      %p68 = scmp.eq.s32.totalorder %s20, 1
      %p69 = por %p67, %p68
      %p71 = scmp.ne.s32.totalorder %s54, %s70
      %p72 = scmp.eq.s32.totalorder %s20, 0
      %p73 = por %p71, %p72
      %s75 = sadd.s32 %s74, 1
      %p78 = scmp.eq.s32.totalorder %s14, 1
      %p79 = scmp.ne.s32.totalorder %s74, %s76
      %p80 = scmp.eq.s32.totalorder %s14, 0
      %p81 = por %p79, %p80
      %p82 = scmp.ne.s32.totalorder %s74, %s76
      %p83 = scmp.eq.s32.totalorder %s19, 1
      %p84 = por %p82, %p83
      %p85 = scmp.ne.s32.totalorder %s76, %s77
      %p86 = scmp.eq.s32.totalorder %s19, 0
      %p87 = por %p85, %p86
      %p88 = scmp.ne.s32.totalorder %s76, %s77
      %p89 = scmp.eq.s32.totalorder %s20, 1
      %p90 = por %p88, %p89
      %p92 = scmp.ne.s32.totalorder %s77, %s91
      %p93 = scmp.eq.s32.totalorder %s20, 0
      %p94 = por %p92, %p93
      %s95 = ssub.s32 %s14, %s21
      %p96 = scmp.eq.s32.totalorder %s95, 0
      %s98 = sadd.s32 %s97, 1
      %s99 = scalar_select %p96, %s97, %s98
      %p102 = pneg %p96
      %p103 = scmp.eq.s32.totalorder %s14, 1
      %p104 = por %p102, %p103
      %p105 = scmp.ne.s32.totalorder %s97, %s100
      %p106 = scmp.eq.s32.totalorder %s14, 0
      %p107 = por %p105, %p106
      %p108 = scmp.ne.s32.totalorder %s97, %s100
      %p109 = scmp.eq.s32.totalorder %s19, 1
      %p110 = por %p108, %p109
      %p111 = scmp.ne.s32.totalorder %s100, %s101
      %p112 = scmp.eq.s32.totalorder %s19, 0
      %p113 = por %p111, %p112
      %p114 = scmp.ne.s32.totalorder %s100, %s101
      %p115 = scmp.eq.s32.totalorder %s20, 1
      %p116 = por %p114, %p115
      %p118 = scmp.ne.s32.totalorder %s101, %s117
      %p119 = scmp.eq.s32.totalorder %s20, 0
      %p120 = por %p118, %p119
      %s121 = ssub.s32 %s14, %s21
      %p122 = scmp.eq.s32.totalorder %s121, 0
      %s124 = sadd.s32 %s123, 1
      %s125 = scalar_select %p122, %s123, %s124
      %p128 = pneg %p122
      %p129 = scmp.eq.s32.totalorder %s14, 1
      %p130 = por %p128, %p129
      %p131 = scmp.ne.s32.totalorder %s123, %s126
      %p132 = scmp.eq.s32.totalorder %s14, 0
      %p133 = por %p131, %p132
      %p134 = scmp.ne.s32.totalorder %s123, %s126
      %p135 = scmp.eq.s32.totalorder %s19, 1
      %p136 = por %p134, %p135
      %p137 = scmp.ne.s32.totalorder %s126, %s127
      %p138 = scmp.eq.s32.totalorder %s19, 0
      %p139 = por %p137, %p138
      %p140 = scmp.ne.s32.totalorder %s126, %s127
      %p141 = scmp.eq.s32.totalorder %s20, 1
      %p142 = por %p140, %p141
      %p144 = scmp.ne.s32.totalorder %s127, %s143
      %p145 = scmp.eq.s32.totalorder %s20, 0
      %p146 = por %p144, %p145
      %p147 = scmp.le.s32.totalorder 1, %s14
      %p148 = scmp.lt.s32.totalorder %s14, 3
      %p149 = pnand %p147, %p148
      %p150 = pneg %p149
      // Predicated region
      $region9: #{tpu_custom_call.1} parent=5 // pred_check
        _
      $region10: #{tpu_custom_call.1} parent=5 // pred_check_branch
        %152 = sbr.rel (%p149) target = $region12
      $region11: #{tpu_custom_call.1} parent=5 // pred_region
        %s153 = ssub.s32 %s14, 1
        // Predicated region
        $region13: #{tpu_custom_call.1} parent=11 // pred_check
          %p154 = pneg %p87
        $region14: #{tpu_custom_call.1} parent=11 // pred_check_branch
          %156 = sbr.rel (%p154) target = $region16
        $region15: #{tpu_custom_call.1} parent=11 // pred_region
          _
        $region16: #{tpu_custom_call.1} parent=11 // pred_fallthru
          _
      $region12: #{tpu_custom_call.1} parent=5 // pred_fallthru
        _
      %p157 = scmp.lt.s32.totalorder %s14, 2
      // Predicated region
      $region17: #{tpu_custom_call.1} parent=5 // pred_check
        %p158 = pneg %p157
      $region18: #{tpu_custom_call.1} parent=5 // pred_check_branch
        %160 = sbr.rel (%p158) target = $region20
      $region19: #{tpu_custom_call.1} parent=5 // pred_region
        // Predicated region
        $region21: #{tpu_custom_call.1} parent=19 // pred_check
          %p161 = pneg %p34
        $region22: #{tpu_custom_call.1} parent=19 // pred_check_branch
          %163 = sbr.rel (%p161) target = $region24
        $region23: #{tpu_custom_call.1} parent=19 // pred_region
          %p164 = scmp.lt.s32.totalorder %s14, 1
          %s165 = scalar_select %p164, %s14, 1
          %s166 = smul.addr %s165, 16
          %s167 = smul.addr %s166, 4
          %s168 = scalar_lea.vmem %s0, %s167
        $region24: #{tpu_custom_call.1} parent=19 // pred_fallthru
          _
        // Predicated region
        $region25: #{tpu_custom_call.1} parent=19 // pred_check
          %p169 = pneg %p60
        $region26: #{tpu_custom_call.1} parent=19 // pred_check_branch
          %171 = sbr.rel (%p169) target = $region28
        $region27: #{tpu_custom_call.1} parent=19 // pred_region
          %p172 = scmp.lt.s32.totalorder %s14, 1
          %s173 = scalar_select %p172, %s14, 1
          %s174 = smul.addr %s173, 16
          %s175 = smul.addr %s174, 4
          %s176 = scalar_lea.vmem %s1, %s175
        $region28: #{tpu_custom_call.1} parent=19 // pred_fallthru
          _
      $region20: #{tpu_custom_call.1} parent=5 // pred_fallthru
        _
      %p177 = scmp.le.s32.totalorder 1, %s14
      %p178 = scmp.lt.s32.totalorder %s14, 3
      %p179 = pnand %p177, %p178
      %p180 = pneg %p179
      // Predicated region
      $region29: #{tpu_custom_call.1} parent=5 // pred_check
        _
      $region30: #{tpu_custom_call.1} parent=5 // pred_check_branch
        %182 = sbr.rel (%p179) target = $region32
      $region31: #{tpu_custom_call.1} parent=5 // pred_region
        %s183 = ssub.s32 %s14, 1
        %p184 = scmp.lt.s32.totalorder %s19, 1
        %s185 = scalar_select %p184, %s19, 1
        %s186 = smul.addr %s185, 16
        %s187 = smul.addr %s186, 4
        %s188 = scalar_lea.vmem %s0, %s187
        %p189 = pneg %p40
        %p190 = pneg %p37
        %p191 = scmp.lt.s32.totalorder %s19, 1
        %s192 = scalar_select %p191, %s19, 1
        %s193 = smul.addr %s192, 16
        %s194 = smul.addr %s193, 4
        %s195 = scalar_lea.vmem %s1, %s194
        %p196 = pneg %p66
        %p197 = pneg %p63
        %p198 = pneg %p87
        %p199 = pneg %p84
        %p200 = pneg %p113
        %p201 = pneg %p110
        %p202 = scmp.lt.s32.totalorder %s19, 1
        %s203 = scalar_select %p202, %s19, 1
        %s204 = smul.addr %s203, 14
        %s205 = smul.addr %s204, 4
        %s206 = scalar_lea.vmem %s3, %s205
        %p207 = pneg %p139
        %p208 = pneg %p136
        %s209 = sand.u32 %s126, 1
        %s210 = scalar_lea.sflag [#allocation3], %s209
        %s211 = sand.u32 %s126, 1
        %s212 = smul.addr %s211, 2
        %s213 = scalar_lea.vmem [#allocation2], %s212
        %p214 = scmp.lt.s32.totalorder %s19, 1
        %s215 = scalar_select %p214, %s19, 1
        %s216 = smul.addr %s215, 16
        %s217 = smul.addr %s216, 4
        %s218 = scalar_lea.vmem %s0, %s217
        %p219 = scmp.lt.s32.totalorder %s19, 1
        %s220 = scalar_select %p219, %s19, 1
        %s221 = smul.addr %s220, 16
        %s222 = smul.addr %s221, 4
        %s223 = scalar_lea.vmem %s1, %s222
        %p224 = scmp.lt.s32.totalorder %s19, 1
        %s225 = scalar_select %p224, %s19, 1
        %s226 = smul.addr %s225, 14
        %s227 = smul.addr %s226, 4
        %s228 = scalar_lea.vmem %s3, %s227
        %v230 = vld [vmem:[%s218] sm:$0xf]
        %v231 = vld [vmem:[%s218 + $0x4] sm:$0xf]
        %v232 = vld [vmem:[%s218 + $0x8] sm:$0xf]
        %v233 = vld [vmem:[%s218 + $0xc] sm:$0xf]
        %v234 = vld [vmem:[%s218 + $0x10] sm:$0xf]
        %v235 = vld [vmem:[%s218 + $0x14] sm:$0xf]
        %v236 = vld [vmem:[%s218 + $0x18] sm:$0xf]
        %v237 = vld [vmem:[%s218 + $0x1c] sm:$0xf]
        %v238 = vld [vmem:[%s218 + $0x20] sm:$0xf]
        %v239 = vld [vmem:[%s218 + $0x24] sm:$0xf]
        %v240 = vld [vmem:[%s218 + $0x28] sm:$0xf]
        %v241 = vld [vmem:[%s218 + $0x2c] sm:$0xf]
        %v242 = vld [vmem:[%s218 + $0x30] sm:$0xf]
        %v243 = vld [vmem:[%s218 + $0x34] sm:$0xf]
        %v244 = vld [vmem:[%s218 + $0x38] sm:$0xf]
        %v261 = vunpack.c.l.s4 1966171168
        %v262 = vunpack.c.0.s8 %v261
        %v263 = vlaneseq
        %v264 = vshrl.u32 %v263, 7
        %v265 = vsub.s32 %v262, %v264
        %v266 = vrot.slane %v230, %v265
        %v267 = vcombine.high %v266, %v266
        %v269 = vunpack.c.l.s4 1966171168
        %v270 = vunpack.c.0.s8 %v269
        %v271 = vlaneseq
        %v272 = vshrl.u32 %v271, 7
        %v273 = vsub.s32 %v270, %v272
        %v274 = vrot.slane %v266, %v273
        %v276 = vunpack.c.l.s4 1966171168
        %v277 = vunpack.c.0.s8 %v276
        %v278 = vlaneseq
        %v279 = vshrl.u32 %v278, 7
        %v280 = vsub.s32 %v277, %v279
        %v281 = vrot.slane %v267, %v280
        %v282 = vcombine.high %v274, %v274
        %v283 = vcombine.high %v281, %v281
        %v285 = vunpack.c.l.s4 1966171168
        %v286 = vunpack.c.0.s8 %v285
        %v287 = vlaneseq
        %v288 = vshrl.u32 %v287, 7
        %v289 = vsub.s32 %v286, %v288
        %v290 = vrot.slane %v231, %v289
        %v291 = vcombine.high %v290, %v290
        %v293 = vunpack.c.l.s4 1966171168
        %v294 = vunpack.c.0.s8 %v293
        %v295 = vlaneseq
        %v296 = vshrl.u32 %v295, 7
        %v297 = vsub.s32 %v294, %v296
        %v298 = vrot.slane %v290, %v297
        %v300 = vunpack.c.l.s4 1966171168
        %v301 = vunpack.c.0.s8 %v300
        %v302 = vlaneseq
        %v303 = vshrl.u32 %v302, 7
        %v304 = vsub.s32 %v301, %v303
        %v305 = vrot.slane %v291, %v304
        %v306 = vcombine.high %v298, %v298
        %v307 = vcombine.high %v305, %v305
        %v309 = vunpack.c.l.s4 1966171168
        %v310 = vunpack.c.0.s8 %v309
        %v311 = vlaneseq
        %v312 = vshrl.u32 %v311, 7
        %v313 = vsub.s32 %v310, %v312
        %v314 = vrot.slane %v232, %v313
        %v315 = vcombine.high %v314, %v314
        %v317 = vunpack.c.l.s4 1966171168
        %v318 = vunpack.c.0.s8 %v317
        %v319 = vlaneseq
        %v320 = vshrl.u32 %v319, 7
        %v321 = vsub.s32 %v318, %v320
        %v322 = vrot.slane %v314, %v321
        %v324 = vunpack.c.l.s4 1966171168
        %v325 = vunpack.c.0.s8 %v324
        %v326 = vlaneseq
        %v327 = vshrl.u32 %v326, 7
        %v328 = vsub.s32 %v325, %v327
        %v329 = vrot.slane %v315, %v328
        %v330 = vcombine.high %v322, %v322
        %v331 = vcombine.high %v329, %v329
        %v333 = vunpack.c.l.s4 1966171168
        %v334 = vunpack.c.0.s8 %v333
        %v335 = vlaneseq
        %v336 = vshrl.u32 %v335, 7
        %v337 = vsub.s32 %v334, %v336
        %v338 = vrot.slane %v233, %v337
        %v339 = vcombine.high %v338, %v338
        %v341 = vunpack.c.l.s4 1966171168
        %v342 = vunpack.c.0.s8 %v341
        %v343 = vlaneseq
        %v344 = vshrl.u32 %v343, 7
        %v345 = vsub.s32 %v342, %v344
        %v346 = vrot.slane %v338, %v345
        %v348 = vunpack.c.l.s4 1966171168
        %v349 = vunpack.c.0.s8 %v348
        %v350 = vlaneseq
        %v351 = vshrl.u32 %v350, 7
        %v352 = vsub.s32 %v349, %v351
        %v353 = vrot.slane %v339, %v352
        %v354 = vcombine.high %v346, %v346
        %v355 = vcombine.high %v353, %v353
        %v357 = vunpack.c.l.s4 1966171168
        %v358 = vunpack.c.0.s8 %v357
        %v359 = vlaneseq
        %v360 = vshrl.u32 %v359, 7
        %v361 = vsub.s32 %v358, %v360
        %v362 = vrot.slane %v234, %v361
        %v363 = vcombine.high %v362, %v362
        %v365 = vunpack.c.l.s4 1966171168
        %v366 = vunpack.c.0.s8 %v365
        %v367 = vlaneseq
        %v368 = vshrl.u32 %v367, 7
        %v369 = vsub.s32 %v366, %v368
        %v370 = vrot.slane %v362, %v369
        %v372 = vunpack.c.l.s4 1966171168
        %v373 = vunpack.c.0.s8 %v372
        %v374 = vlaneseq
        %v375 = vshrl.u32 %v374, 7
        %v376 = vsub.s32 %v373, %v375
        %v377 = vrot.slane %v363, %v376
        %v378 = vcombine.high %v370, %v370
        %v379 = vcombine.high %v377, %v377
        %v381 = vunpack.c.l.s4 1966171168
        %v382 = vunpack.c.0.s8 %v381
        %v383 = vlaneseq
        %v384 = vshrl.u32 %v383, 7
        %v385 = vsub.s32 %v382, %v384
        %v386 = vrot.slane %v235, %v385
        %v387 = vcombine.high %v386, %v386
        %v389 = vunpack.c.l.s4 1966171168
        %v390 = vunpack.c.0.s8 %v389
        %v391 = vlaneseq
        %v392 = vshrl.u32 %v391, 7
        %v393 = vsub.s32 %v390, %v392
        %v394 = vrot.slane %v386, %v393
        %v396 = vunpack.c.l.s4 1966171168
        %v397 = vunpack.c.0.s8 %v396
        %v398 = vlaneseq
        %v399 = vshrl.u32 %v398, 7
        %v400 = vsub.s32 %v397, %v399
        %v401 = vrot.slane %v387, %v400
        %v402 = vcombine.high %v394, %v394
        %v403 = vcombine.high %v401, %v401
        %v405 = vunpack.c.l.s4 1966171168
        %v406 = vunpack.c.0.s8 %v405
        %v407 = vlaneseq
        %v408 = vshrl.u32 %v407, 7
        %v409 = vsub.s32 %v406, %v408
        %v410 = vrot.slane %v236, %v409
        %v411 = vcombine.high %v410, %v410
        %v413 = vunpack.c.l.s4 1966171168
        %v414 = vunpack.c.0.s8 %v413
        %v415 = vlaneseq
        %v416 = vshrl.u32 %v415, 7
        %v417 = vsub.s32 %v414, %v416
        %v418 = vrot.slane %v410, %v417
        %v420 = vunpack.c.l.s4 1966171168
        %v421 = vunpack.c.0.s8 %v420
        %v422 = vlaneseq
        %v423 = vshrl.u32 %v422, 7
        %v424 = vsub.s32 %v421, %v423
        %v425 = vrot.slane %v411, %v424
        %v426 = vcombine.high %v418, %v418
        %v427 = vcombine.high %v425, %v425
        %v429 = vunpack.c.l.s4 1966171168
        %v430 = vunpack.c.0.s8 %v429
        %v431 = vlaneseq
        %v432 = vshrl.u32 %v431, 7
        %v433 = vsub.s32 %v430, %v432
        %v434 = vrot.slane %v237, %v433
        %v435 = vcombine.high %v434, %v434
        %v437 = vunpack.c.l.s4 1966171168
        %v438 = vunpack.c.0.s8 %v437
        %v439 = vlaneseq
        %v440 = vshrl.u32 %v439, 7
        %v441 = vsub.s32 %v438, %v440
        %v442 = vrot.slane %v434, %v441
        %v444 = vunpack.c.l.s4 1966171168
        %v445 = vunpack.c.0.s8 %v444
        %v446 = vlaneseq
        %v447 = vshrl.u32 %v446, 7
        %v448 = vsub.s32 %v445, %v447
        %v449 = vrot.slane %v435, %v448
        %v450 = vcombine.high %v442, %v442
        %v451 = vcombine.high %v449, %v449
        %v453 = vunpack.c.l.s4 1966171168
        %v454 = vunpack.c.0.s8 %v453
        %v455 = vlaneseq
        %v456 = vshrl.u32 %v455, 7
        %v457 = vsub.s32 %v454, %v456
        %v458 = vrot.slane %v238, %v457
        %v459 = vcombine.high %v458, %v458
        %v461 = vunpack.c.l.s4 1966171168
        %v462 = vunpack.c.0.s8 %v461
        %v463 = vlaneseq
        %v464 = vshrl.u32 %v463, 7
        %v465 = vsub.s32 %v462, %v464
        %v466 = vrot.slane %v458, %v465
        %v468 = vunpack.c.l.s4 1966171168
        %v469 = vunpack.c.0.s8 %v468
        %v470 = vlaneseq
        %v471 = vshrl.u32 %v470, 7
        %v472 = vsub.s32 %v469, %v471
        %v473 = vrot.slane %v459, %v472
        %v474 = vcombine.high %v466, %v466
        %v475 = vcombine.high %v473, %v473
        %v477 = vunpack.c.l.s4 1966171168
        %v478 = vunpack.c.0.s8 %v477
        %v479 = vlaneseq
        %v480 = vshrl.u32 %v479, 7
        %v481 = vsub.s32 %v478, %v480
        %v482 = vrot.slane %v239, %v481
        %v483 = vcombine.high %v482, %v482
        %v485 = vunpack.c.l.s4 1966171168
        %v486 = vunpack.c.0.s8 %v485
        %v487 = vlaneseq
        %v488 = vshrl.u32 %v487, 7
        %v489 = vsub.s32 %v486, %v488
        %v490 = vrot.slane %v482, %v489
        %v492 = vunpack.c.l.s4 1966171168
        %v493 = vunpack.c.0.s8 %v492
        %v494 = vlaneseq
        %v495 = vshrl.u32 %v494, 7
        %v496 = vsub.s32 %v493, %v495
        %v497 = vrot.slane %v483, %v496
        %v498 = vcombine.high %v490, %v490
        %v499 = vcombine.high %v497, %v497
        %v501 = vunpack.c.l.s4 1966171168
        %v502 = vunpack.c.0.s8 %v501
        %v503 = vlaneseq
        %v504 = vshrl.u32 %v503, 7
        %v505 = vsub.s32 %v502, %v504
        %v506 = vrot.slane %v240, %v505
        %v507 = vcombine.high %v506, %v506
        %v509 = vunpack.c.l.s4 1966171168
        %v510 = vunpack.c.0.s8 %v509
        %v511 = vlaneseq
        %v512 = vshrl.u32 %v511, 7
        %v513 = vsub.s32 %v510, %v512
        %v514 = vrot.slane %v506, %v513
        %v516 = vunpack.c.l.s4 1966171168
        %v517 = vunpack.c.0.s8 %v516
        %v518 = vlaneseq
        %v519 = vshrl.u32 %v518, 7
        %v520 = vsub.s32 %v517, %v519
        %v521 = vrot.slane %v507, %v520
        %v522 = vcombine.high %v514, %v514
        %v523 = vcombine.high %v521, %v521
        %v525 = vunpack.c.l.s4 1966171168
        %v526 = vunpack.c.0.s8 %v525
        %v527 = vlaneseq
        %v528 = vshrl.u32 %v527, 7
        %v529 = vsub.s32 %v526, %v528
        %v530 = vrot.slane %v241, %v529
        %v531 = vcombine.high %v530, %v530
        %v533 = vunpack.c.l.s4 1966171168
        %v534 = vunpack.c.0.s8 %v533
        %v535 = vlaneseq
        %v536 = vshrl.u32 %v535, 7
        %v537 = vsub.s32 %v534, %v536
        %v538 = vrot.slane %v530, %v537
        %v540 = vunpack.c.l.s4 1966171168
        %v541 = vunpack.c.0.s8 %v540
        %v542 = vlaneseq
        %v543 = vshrl.u32 %v542, 7
        %v544 = vsub.s32 %v541, %v543
        %v545 = vrot.slane %v531, %v544
        %v546 = vcombine.high %v538, %v538
        %v547 = vcombine.high %v545, %v545
        %v549 = vunpack.c.l.s4 1966171168
        %v550 = vunpack.c.0.s8 %v549
        %v551 = vlaneseq
        %v552 = vshrl.u32 %v551, 7
        %v553 = vsub.s32 %v550, %v552
        %v554 = vrot.slane %v242, %v553
        %v555 = vcombine.high %v554, %v554
        %v557 = vunpack.c.l.s4 1966171168
        %v558 = vunpack.c.0.s8 %v557
        %v559 = vlaneseq
        %v560 = vshrl.u32 %v559, 7
        %v561 = vsub.s32 %v558, %v560
        %v562 = vrot.slane %v554, %v561
        %v564 = vunpack.c.l.s4 1966171168
        %v565 = vunpack.c.0.s8 %v564
        %v566 = vlaneseq
        %v567 = vshrl.u32 %v566, 7
        %v568 = vsub.s32 %v565, %v567
        %v569 = vrot.slane %v555, %v568
        %v570 = vcombine.high %v562, %v562
        %v571 = vcombine.high %v569, %v569
        %v573 = vunpack.c.l.s4 1966171168
        %v574 = vunpack.c.0.s8 %v573
        %v575 = vlaneseq
        %v576 = vshrl.u32 %v575, 7
        %v577 = vsub.s32 %v574, %v576
        %v578 = vrot.slane %v243, %v577
        %v579 = vcombine.high %v578, %v578
        %v581 = vunpack.c.l.s4 1966171168
        %v582 = vunpack.c.0.s8 %v581
        %v583 = vlaneseq
        %v584 = vshrl.u32 %v583, 7
        %v585 = vsub.s32 %v582, %v584
        %v586 = vrot.slane %v578, %v585
        %v588 = vunpack.c.l.s4 1966171168
        %v589 = vunpack.c.0.s8 %v588
        %v590 = vlaneseq
        %v591 = vshrl.u32 %v590, 7
        %v592 = vsub.s32 %v589, %v591
        %v593 = vrot.slane %v579, %v592
        %v594 = vcombine.high %v586, %v586
        %v595 = vcombine.high %v593, %v593
        %v597 = vunpack.c.l.s4 1966171168
        %v598 = vunpack.c.0.s8 %v597
        %v599 = vlaneseq
        %v600 = vshrl.u32 %v599, 7
        %v601 = vsub.s32 %v598, %v600
        %v602 = vrot.slane %v244, %v601
        %v603 = vcombine.high %v602, %v602
        %v605 = vunpack.c.l.s4 1966171168
        %v606 = vunpack.c.0.s8 %v605
        %v607 = vlaneseq
        %v608 = vshrl.u32 %v607, 7
        %v609 = vsub.s32 %v606, %v608
        %v610 = vrot.slane %v602, %v609
        %v612 = vunpack.c.l.s4 1966171168
        %v613 = vunpack.c.0.s8 %v612
        %v614 = vlaneseq
        %v615 = vshrl.u32 %v614, 7
        %v616 = vsub.s32 %v613, %v615
        %v617 = vrot.slane %v603, %v616
        %v618 = vcombine.high %v610, %v610
        %v619 = vcombine.high %v617, %v617
        %v620 = vunpack.i.l.s16 %v274
        %v621 = vunpack.i.h.s16 %v274
        %v622 = vunpack.i.l.s16 %v281
        %v623 = vunpack.i.h.s16 %v281
        %v624 = vunpack.i.l.s16 %v282
        %v625 = vunpack.i.h.s16 %v282
        %v626 = vunpack.i.l.s16 %v283
        %v627 = vunpack.i.l.s16 %v298
        %v628 = vunpack.i.h.s16 %v298
        %v629 = vunpack.i.l.s16 %v305
        %v630 = vunpack.i.h.s16 %v305
        %v631 = vunpack.i.l.s16 %v306
        %v632 = vunpack.i.h.s16 %v306
        %v633 = vunpack.i.l.s16 %v307
        %v634 = vunpack.i.l.s16 %v322
        %v635 = vunpack.i.h.s16 %v322
        %v636 = vunpack.i.l.s16 %v329
        %v637 = vunpack.i.h.s16 %v329
        %v638 = vunpack.i.l.s16 %v330
        %v639 = vunpack.i.h.s16 %v330
        %v640 = vunpack.i.l.s16 %v331
        %v641 = vunpack.i.l.s16 %v346
        %v642 = vunpack.i.h.s16 %v346
        %v643 = vunpack.i.l.s16 %v353
        %v644 = vunpack.i.h.s16 %v353
        %v645 = vunpack.i.l.s16 %v354
        %v646 = vunpack.i.h.s16 %v354
        %v647 = vunpack.i.l.s16 %v355
        %v648 = vunpack.i.l.s16 %v370
        %v649 = vunpack.i.h.s16 %v370
        %v650 = vunpack.i.l.s16 %v377
        %v651 = vunpack.i.h.s16 %v377
        %v652 = vunpack.i.l.s16 %v378
        %v653 = vunpack.i.h.s16 %v378
        %v654 = vunpack.i.l.s16 %v379
        %v655 = vunpack.i.l.s16 %v394
        %v656 = vunpack.i.h.s16 %v394
        %v657 = vunpack.i.l.s16 %v401
        %v658 = vunpack.i.h.s16 %v401
        %v659 = vunpack.i.l.s16 %v402
        %v660 = vunpack.i.h.s16 %v402
        %v661 = vunpack.i.l.s16 %v403
        %v662 = vunpack.i.l.s16 %v418
        %v663 = vunpack.i.h.s16 %v418
        %v664 = vunpack.i.l.s16 %v425
        %v665 = vunpack.i.h.s16 %v425
        %v666 = vunpack.i.l.s16 %v426
        %v667 = vunpack.i.h.s16 %v426
        %v668 = vunpack.i.l.s16 %v427
        %v669 = vunpack.i.l.s16 %v442
        %v670 = vunpack.i.h.s16 %v442
        %v671 = vunpack.i.l.s16 %v449
        %v672 = vunpack.i.h.s16 %v449
        %v673 = vunpack.i.l.s16 %v450
        %v674 = vunpack.i.h.s16 %v450
        %v675 = vunpack.i.l.s16 %v451
        %v676 = vunpack.i.l.s16 %v466
        %v677 = vunpack.i.h.s16 %v466
        %v678 = vunpack.i.l.s16 %v473
        %v679 = vunpack.i.h.s16 %v473
        %v680 = vunpack.i.l.s16 %v474
        %v681 = vunpack.i.h.s16 %v474
        %v682 = vunpack.i.l.s16 %v475
        %v683 = vunpack.i.l.s16 %v490
        %v684 = vunpack.i.h.s16 %v490
        %v685 = vunpack.i.l.s16 %v497
        %v686 = vunpack.i.h.s16 %v497
        %v687 = vunpack.i.l.s16 %v498
        %v688 = vunpack.i.h.s16 %v498
        %v689 = vunpack.i.l.s16 %v499
        %v690 = vunpack.i.l.s16 %v514
        %v691 = vunpack.i.h.s16 %v514
        %v692 = vunpack.i.l.s16 %v521
        %v693 = vunpack.i.h.s16 %v521
        %v694 = vunpack.i.l.s16 %v522
        %v695 = vunpack.i.h.s16 %v522
        %v696 = vunpack.i.l.s16 %v523
        %v697 = vunpack.i.l.s16 %v538
        %v698 = vunpack.i.h.s16 %v538
        %v699 = vunpack.i.l.s16 %v545
        %v700 = vunpack.i.h.s16 %v545
        %v701 = vunpack.i.l.s16 %v546
        %v702 = vunpack.i.h.s16 %v546
        %v703 = vunpack.i.l.s16 %v547
        %v704 = vunpack.i.l.s16 %v562
        %v705 = vunpack.i.h.s16 %v562
        %v706 = vunpack.i.l.s16 %v569
        %v707 = vunpack.i.h.s16 %v569
        %v708 = vunpack.i.l.s16 %v570
        %v709 = vunpack.i.h.s16 %v570
        %v710 = vunpack.i.l.s16 %v571
        %v711 = vunpack.i.l.s16 %v586
        %v712 = vunpack.i.h.s16 %v586
        %v713 = vunpack.i.l.s16 %v593
        %v714 = vunpack.i.h.s16 %v593
        %v715 = vunpack.i.l.s16 %v594
        %v716 = vunpack.i.h.s16 %v594
        %v717 = vunpack.i.l.s16 %v595
        %v718 = vunpack.i.l.s16 %v610
        %v719 = vunpack.i.h.s16 %v610
        %v720 = vunpack.i.l.s16 %v617
        %v721 = vunpack.i.h.s16 %v617
        %v722 = vunpack.i.l.s16 %v618
        %v723 = vunpack.i.h.s16 %v618
        %v724 = vunpack.i.l.s16 %v619
        %v725 = vld [vmem:[%s2] sm:$0x3]
        %v726 = vld [vmem:[%s223] sm:$0xf]
        %v727 = vld [vmem:[%s223 + $0x4] sm:$0xf]
        %v728 = vld [vmem:[%s223 + $0x8] sm:$0xf]
        %v729 = vld [vmem:[%s223 + $0xc] sm:$0xf]
        %v730 = vld [vmem:[%s223 + $0x10] sm:$0xf]
        %v731 = vld [vmem:[%s223 + $0x14] sm:$0xf]
        %v732 = vld [vmem:[%s223 + $0x18] sm:$0xf]
        %v733 = vld [vmem:[%s223 + $0x1c] sm:$0xf]
        %v734 = vld [vmem:[%s223 + $0x20] sm:$0xf]
        %v735 = vld [vmem:[%s223 + $0x24] sm:$0xf]
        %v736 = vld [vmem:[%s223 + $0x28] sm:$0xf]
        %v737 = vld [vmem:[%s223 + $0x2c] sm:$0xf]
        %v738 = vld [vmem:[%s223 + $0x30] sm:$0xf]
        %v739 = vld [vmem:[%s223 + $0x34] sm:$0xf]
        %v740 = vld [vmem:[%s223 + $0x38] sm:$0xf]
        %v757 = vunpack.c.l.s4 1966171168
        %v758 = vunpack.c.0.s8 %v757
        %v759 = vlaneseq
        %v760 = vshrl.u32 %v759, 7
        %v761 = vsub.s32 %v758, %v760
        %v762 = vrot.slane %v726, %v761
        %v763 = vcombine.high %v762, %v762
        %v765 = vunpack.c.l.s4 1966171168
        %v766 = vunpack.c.0.s8 %v765
        %v767 = vlaneseq
        %v768 = vshrl.u32 %v767, 7
        %v769 = vsub.s32 %v766, %v768
        %v770 = vrot.slane %v762, %v769
        %v772 = vunpack.c.l.s4 1966171168
        %v773 = vunpack.c.0.s8 %v772
        %v774 = vlaneseq
        %v775 = vshrl.u32 %v774, 7
        %v776 = vsub.s32 %v773, %v775
        %v777 = vrot.slane %v763, %v776
        %v778 = vcombine.high %v770, %v770
        %v779 = vcombine.high %v777, %v777
        %v781 = vunpack.c.l.s4 1966171168
        %v782 = vunpack.c.0.s8 %v781
        %v783 = vlaneseq
        %v784 = vshrl.u32 %v783, 7
        %v785 = vsub.s32 %v782, %v784
        %v786 = vrot.slane %v727, %v785
        %v787 = vcombine.high %v786, %v786
        %v789 = vunpack.c.l.s4 1966171168
        %v790 = vunpack.c.0.s8 %v789
        %v791 = vlaneseq
        %v792 = vshrl.u32 %v791, 7
        %v793 = vsub.s32 %v790, %v792
        %v794 = vrot.slane %v786, %v793
        %v796 = vunpack.c.l.s4 1966171168
        %v797 = vunpack.c.0.s8 %v796
        %v798 = vlaneseq
        %v799 = vshrl.u32 %v798, 7
        %v800 = vsub.s32 %v797, %v799
        %v801 = vrot.slane %v787, %v800
        %v802 = vcombine.high %v794, %v794
        %v803 = vcombine.high %v801, %v801
        %v805 = vunpack.c.l.s4 1966171168
        %v806 = vunpack.c.0.s8 %v805
        %v807 = vlaneseq
        %v808 = vshrl.u32 %v807, 7
        %v809 = vsub.s32 %v806, %v808
        %v810 = vrot.slane %v728, %v809
        %v811 = vcombine.high %v810, %v810
        %v813 = vunpack.c.l.s4 1966171168
        %v814 = vunpack.c.0.s8 %v813
        %v815 = vlaneseq
        %v816 = vshrl.u32 %v815, 7
        %v817 = vsub.s32 %v814, %v816
        %v818 = vrot.slane %v810, %v817
        %v820 = vunpack.c.l.s4 1966171168
        %v821 = vunpack.c.0.s8 %v820
        %v822 = vlaneseq
        %v823 = vshrl.u32 %v822, 7
        %v824 = vsub.s32 %v821, %v823
        %v825 = vrot.slane %v811, %v824
        %v826 = vcombine.high %v818, %v818
        %v827 = vcombine.high %v825, %v825
        %v829 = vunpack.c.l.s4 1966171168
        %v830 = vunpack.c.0.s8 %v829
        %v831 = vlaneseq
        %v832 = vshrl.u32 %v831, 7
        %v833 = vsub.s32 %v830, %v832
        %v834 = vrot.slane %v729, %v833
        %v835 = vcombine.high %v834, %v834
        %v837 = vunpack.c.l.s4 1966171168
        %v838 = vunpack.c.0.s8 %v837
        %v839 = vlaneseq
        %v840 = vshrl.u32 %v839, 7
        %v841 = vsub.s32 %v838, %v840
        %v842 = vrot.slane %v834, %v841
        %v844 = vunpack.c.l.s4 1966171168
        %v845 = vunpack.c.0.s8 %v844
        %v846 = vlaneseq
        %v847 = vshrl.u32 %v846, 7
        %v848 = vsub.s32 %v845, %v847
        %v849 = vrot.slane %v835, %v848
        %v850 = vcombine.high %v842, %v842
        %v851 = vcombine.high %v849, %v849
        %v853 = vunpack.c.l.s4 1966171168
        %v854 = vunpack.c.0.s8 %v853
        %v855 = vlaneseq
        %v856 = vshrl.u32 %v855, 7
        %v857 = vsub.s32 %v854, %v856
        %v858 = vrot.slane %v730, %v857
        %v859 = vcombine.high %v858, %v858
        %v861 = vunpack.c.l.s4 1966171168
        %v862 = vunpack.c.0.s8 %v861
        %v863 = vlaneseq
        %v864 = vshrl.u32 %v863, 7
        %v865 = vsub.s32 %v862, %v864
        %v866 = vrot.slane %v858, %v865
        %v868 = vunpack.c.l.s4 1966171168
        %v869 = vunpack.c.0.s8 %v868
        %v870 = vlaneseq
        %v871 = vshrl.u32 %v870, 7
        %v872 = vsub.s32 %v869, %v871
        %v873 = vrot.slane %v859, %v872
        %v874 = vcombine.high %v866, %v866
        %v875 = vcombine.high %v873, %v873
        %v877 = vunpack.c.l.s4 1966171168
        %v878 = vunpack.c.0.s8 %v877
        %v879 = vlaneseq
        %v880 = vshrl.u32 %v879, 7
        %v881 = vsub.s32 %v878, %v880
        %v882 = vrot.slane %v731, %v881
        %v883 = vcombine.high %v882, %v882
        %v885 = vunpack.c.l.s4 1966171168
        %v886 = vunpack.c.0.s8 %v885
        %v887 = vlaneseq
        %v888 = vshrl.u32 %v887, 7
        %v889 = vsub.s32 %v886, %v888
        %v890 = vrot.slane %v882, %v889
        %v892 = vunpack.c.l.s4 1966171168
        %v893 = vunpack.c.0.s8 %v892
        %v894 = vlaneseq
        %v895 = vshrl.u32 %v894, 7
        %v896 = vsub.s32 %v893, %v895
        %v897 = vrot.slane %v883, %v896
        %v898 = vcombine.high %v890, %v890
        %v899 = vcombine.high %v897, %v897
        %v901 = vunpack.c.l.s4 1966171168
        %v902 = vunpack.c.0.s8 %v901
        %v903 = vlaneseq
        %v904 = vshrl.u32 %v903, 7
        %v905 = vsub.s32 %v902, %v904
        %v906 = vrot.slane %v732, %v905
        %v907 = vcombine.high %v906, %v906
        %v909 = vunpack.c.l.s4 1966171168
        %v910 = vunpack.c.0.s8 %v909
        %v911 = vlaneseq
        %v912 = vshrl.u32 %v911, 7
        %v913 = vsub.s32 %v910, %v912
        %v914 = vrot.slane %v906, %v913
        %v916 = vunpack.c.l.s4 1966171168
        %v917 = vunpack.c.0.s8 %v916
        %v918 = vlaneseq
        %v919 = vshrl.u32 %v918, 7
        %v920 = vsub.s32 %v917, %v919
        %v921 = vrot.slane %v907, %v920
        %v922 = vcombine.high %v914, %v914
        %v923 = vcombine.high %v921, %v921
        %v925 = vunpack.c.l.s4 1966171168
        %v926 = vunpack.c.0.s8 %v925
        %v927 = vlaneseq
        %v928 = vshrl.u32 %v927, 7
        %v929 = vsub.s32 %v926, %v928
        %v930 = vrot.slane %v733, %v929
        %v931 = vcombine.high %v930, %v930
        %v933 = vunpack.c.l.s4 1966171168
        %v934 = vunpack.c.0.s8 %v933
        %v935 = vlaneseq
        %v936 = vshrl.u32 %v935, 7
        %v937 = vsub.s32 %v934, %v936
        %v938 = vrot.slane %v930, %v937
        %v940 = vunpack.c.l.s4 1966171168
        %v941 = vunpack.c.0.s8 %v940
        %v942 = vlaneseq
        %v943 = vshrl.u32 %v942, 7
        %v944 = vsub.s32 %v941, %v943
        %v945 = vrot.slane %v931, %v944
        %v946 = vcombine.high %v938, %v938
        %v947 = vcombine.high %v945, %v945
        %v949 = vunpack.c.l.s4 1966171168
        %v950 = vunpack.c.0.s8 %v949
        %v951 = vlaneseq
        %v952 = vshrl.u32 %v951, 7
        %v953 = vsub.s32 %v950, %v952
        %v954 = vrot.slane %v734, %v953
        %v955 = vcombine.high %v954, %v954
        %v957 = vunpack.c.l.s4 1966171168
        %v958 = vunpack.c.0.s8 %v957
        %v959 = vlaneseq
        %v960 = vshrl.u32 %v959, 7
        %v961 = vsub.s32 %v958, %v960
        %v962 = vrot.slane %v954, %v961
        %v964 = vunpack.c.l.s4 1966171168
        %v965 = vunpack.c.0.s8 %v964
        %v966 = vlaneseq
        %v967 = vshrl.u32 %v966, 7
        %v968 = vsub.s32 %v965, %v967
        %v969 = vrot.slane %v955, %v968
        %v970 = vcombine.high %v962, %v962
        %v971 = vcombine.high %v969, %v969
        %v973 = vunpack.c.l.s4 1966171168
        %v974 = vunpack.c.0.s8 %v973
        %v975 = vlaneseq
        %v976 = vshrl.u32 %v975, 7
        %v977 = vsub.s32 %v974, %v976
        %v978 = vrot.slane %v735, %v977
        %v979 = vcombine.high %v978, %v978
        %v981 = vunpack.c.l.s4 1966171168
        %v982 = vunpack.c.0.s8 %v981
        %v983 = vlaneseq
        %v984 = vshrl.u32 %v983, 7
        %v985 = vsub.s32 %v982, %v984
        %v986 = vrot.slane %v978, %v985
        %v988 = vunpack.c.l.s4 1966171168
        %v989 = vunpack.c.0.s8 %v988
        %v990 = vlaneseq
        %v991 = vshrl.u32 %v990, 7
        %v992 = vsub.s32 %v989, %v991
        %v993 = vrot.slane %v979, %v992
        %v994 = vcombine.high %v986, %v986
        %v995 = vcombine.high %v993, %v993
        %v997 = vunpack.c.l.s4 1966171168
        %v998 = vunpack.c.0.s8 %v997
        %v999 = vlaneseq
        %v1000 = vshrl.u32 %v999, 7
        %v1001 = vsub.s32 %v998, %v1000
        %v1002 = vrot.slane %v736, %v1001
        %v1003 = vcombine.high %v1002, %v1002
        %v1005 = vunpack.c.l.s4 1966171168
        %v1006 = vunpack.c.0.s8 %v1005
        %v1007 = vlaneseq
        %v1008 = vshrl.u32 %v1007, 7
        %v1009 = vsub.s32 %v1006, %v1008
        %v1010 = vrot.slane %v1002, %v1009
        %v1012 = vunpack.c.l.s4 1966171168
        %v1013 = vunpack.c.0.s8 %v1012
        %v1014 = vlaneseq
        %v1015 = vshrl.u32 %v1014, 7
        %v1016 = vsub.s32 %v1013, %v1015
        %v1017 = vrot.slane %v1003, %v1016
        %v1018 = vcombine.high %v1010, %v1010
        %v1019 = vcombine.high %v1017, %v1017
        %v1021 = vunpack.c.l.s4 1966171168
        %v1022 = vunpack.c.0.s8 %v1021
        %v1023 = vlaneseq
        %v1024 = vshrl.u32 %v1023, 7
        %v1025 = vsub.s32 %v1022, %v1024
        %v1026 = vrot.slane %v737, %v1025
        %v1027 = vcombine.high %v1026, %v1026
        %v1029 = vunpack.c.l.s4 1966171168
        %v1030 = vunpack.c.0.s8 %v1029
        %v1031 = vlaneseq
        %v1032 = vshrl.u32 %v1031, 7
        %v1033 = vsub.s32 %v1030, %v1032
        %v1034 = vrot.slane %v1026, %v1033
        %v1036 = vunpack.c.l.s4 1966171168
        %v1037 = vunpack.c.0.s8 %v1036
        %v1038 = vlaneseq
        %v1039 = vshrl.u32 %v1038, 7
        %v1040 = vsub.s32 %v1037, %v1039
        %v1041 = vrot.slane %v1027, %v1040
        %v1042 = vcombine.high %v1034, %v1034
        %v1043 = vcombine.high %v1041, %v1041
        %v1045 = vunpack.c.l.s4 1966171168
        %v1046 = vunpack.c.0.s8 %v1045
        %v1047 = vlaneseq
        %v1048 = vshrl.u32 %v1047, 7
        %v1049 = vsub.s32 %v1046, %v1048
        %v1050 = vrot.slane %v738, %v1049
        %v1051 = vcombine.high %v1050, %v1050
        %v1053 = vunpack.c.l.s4 1966171168
        %v1054 = vunpack.c.0.s8 %v1053
        %v1055 = vlaneseq
        %v1056 = vshrl.u32 %v1055, 7
        %v1057 = vsub.s32 %v1054, %v1056
        %v1058 = vrot.slane %v1050, %v1057
        %v1060 = vunpack.c.l.s4 1966171168
        %v1061 = vunpack.c.0.s8 %v1060
        %v1062 = vlaneseq
        %v1063 = vshrl.u32 %v1062, 7
        %v1064 = vsub.s32 %v1061, %v1063
        %v1065 = vrot.slane %v1051, %v1064
        %v1066 = vcombine.high %v1058, %v1058
        %v1067 = vcombine.high %v1065, %v1065
        %v1069 = vunpack.c.l.s4 1966171168
        %v1070 = vunpack.c.0.s8 %v1069
        %v1071 = vlaneseq
        %v1072 = vshrl.u32 %v1071, 7
        %v1073 = vsub.s32 %v1070, %v1072
        %v1074 = vrot.slane %v739, %v1073
        %v1075 = vcombine.high %v1074, %v1074
        %v1077 = vunpack.c.l.s4 1966171168
        %v1078 = vunpack.c.0.s8 %v1077
        %v1079 = vlaneseq
        %v1080 = vshrl.u32 %v1079, 7
        %v1081 = vsub.s32 %v1078, %v1080
        %v1082 = vrot.slane %v1074, %v1081
        %v1084 = vunpack.c.l.s4 1966171168
        %v1085 = vunpack.c.0.s8 %v1084
        %v1086 = vlaneseq
        %v1087 = vshrl.u32 %v1086, 7
        %v1088 = vsub.s32 %v1085, %v1087
        %v1089 = vrot.slane %v1075, %v1088
        %v1090 = vcombine.high %v1082, %v1082
        %v1091 = vcombine.high %v1089, %v1089
        %v1093 = vunpack.c.l.s4 1966171168
        %v1094 = vunpack.c.0.s8 %v1093
        %v1095 = vlaneseq
        %v1096 = vshrl.u32 %v1095, 7
        %v1097 = vsub.s32 %v1094, %v1096
        %v1098 = vrot.slane %v740, %v1097
        %v1099 = vcombine.high %v1098, %v1098
        %v1101 = vunpack.c.l.s4 1966171168
        %v1102 = vunpack.c.0.s8 %v1101
        %v1103 = vlaneseq
        %v1104 = vshrl.u32 %v1103, 7
        %v1105 = vsub.s32 %v1102, %v1104
        %v1106 = vrot.slane %v1098, %v1105
        %v1108 = vunpack.c.l.s4 1966171168
        %v1109 = vunpack.c.0.s8 %v1108
        %v1110 = vlaneseq
        %v1111 = vshrl.u32 %v1110, 7
        %v1112 = vsub.s32 %v1109, %v1111
        %v1113 = vrot.slane %v1099, %v1112
        %v1114 = vcombine.high %v1106, %v1106
        %v1115 = vcombine.high %v1113, %v1113
        %v1116 = vunpack.i.l.s16 %v770
        %v1117 = vunpack.i.h.s16 %v770
        %v1118 = vunpack.i.l.s16 %v777
        %v1119 = vunpack.i.h.s16 %v777
        %v1120 = vunpack.i.l.s16 %v778
        %v1121 = vunpack.i.h.s16 %v778
        %v1122 = vunpack.i.l.s16 %v779
        %v1123 = vunpack.i.l.s16 %v794
        %v1124 = vunpack.i.h.s16 %v794
        %v1125 = vunpack.i.l.s16 %v801
        %v1126 = vunpack.i.h.s16 %v801
        %v1127 = vunpack.i.l.s16 %v802
        %v1128 = vunpack.i.h.s16 %v802
        %v1129 = vunpack.i.l.s16 %v803
        %v1130 = vunpack.i.l.s16 %v818
        %v1131 = vunpack.i.h.s16 %v818
        %v1132 = vunpack.i.l.s16 %v825
        %v1133 = vunpack.i.h.s16 %v825
        %v1134 = vunpack.i.l.s16 %v826
        %v1135 = vunpack.i.h.s16 %v826
        %v1136 = vunpack.i.l.s16 %v827
        %v1137 = vunpack.i.l.s16 %v842
        %v1138 = vunpack.i.h.s16 %v842
        %v1139 = vunpack.i.l.s16 %v849
        %v1140 = vunpack.i.h.s16 %v849
        %v1141 = vunpack.i.l.s16 %v850
        %v1142 = vunpack.i.h.s16 %v850
        %v1143 = vunpack.i.l.s16 %v851
        %v1144 = vunpack.i.l.s16 %v866
        %v1145 = vunpack.i.h.s16 %v866
        %v1146 = vunpack.i.l.s16 %v873
        %v1147 = vunpack.i.h.s16 %v873
        %v1148 = vunpack.i.l.s16 %v874
        %v1149 = vunpack.i.h.s16 %v874
        %v1150 = vunpack.i.l.s16 %v875
        %v1151 = vunpack.i.l.s16 %v890
        %v1152 = vunpack.i.h.s16 %v890
        %v1153 = vunpack.i.l.s16 %v897
        %v1154 = vunpack.i.h.s16 %v897
        %v1155 = vunpack.i.l.s16 %v898
        %v1156 = vunpack.i.h.s16 %v898
        %v1157 = vunpack.i.l.s16 %v899
        %v1158 = vunpack.i.l.s16 %v914
        %v1159 = vunpack.i.h.s16 %v914
        %v1160 = vunpack.i.l.s16 %v921
        %v1161 = vunpack.i.h.s16 %v921
        %v1162 = vunpack.i.l.s16 %v922
        %v1163 = vunpack.i.h.s16 %v922
        %v1164 = vunpack.i.l.s16 %v923
        %v1165 = vunpack.i.l.s16 %v938
        %v1166 = vunpack.i.h.s16 %v938
        %v1167 = vunpack.i.l.s16 %v945
        %v1168 = vunpack.i.h.s16 %v945
        %v1169 = vunpack.i.l.s16 %v946
        %v1170 = vunpack.i.h.s16 %v946
        %v1171 = vunpack.i.l.s16 %v947
        %v1172 = vunpack.i.l.s16 %v962
        %v1173 = vunpack.i.h.s16 %v962
        %v1174 = vunpack.i.l.s16 %v969
        %v1175 = vunpack.i.h.s16 %v969
        %v1176 = vunpack.i.l.s16 %v970
        %v1177 = vunpack.i.h.s16 %v970
        %v1178 = vunpack.i.l.s16 %v971
        %v1179 = vunpack.i.l.s16 %v986
        %v1180 = vunpack.i.h.s16 %v986
        %v1181 = vunpack.i.l.s16 %v993
        %v1182 = vunpack.i.h.s16 %v993
        %v1183 = vunpack.i.l.s16 %v994
        %v1184 = vunpack.i.h.s16 %v994
        %v1185 = vunpack.i.l.s16 %v995
        %v1186 = vunpack.i.l.s16 %v1010
        %v1187 = vunpack.i.h.s16 %v1010
        %v1188 = vunpack.i.l.s16 %v1017
        %v1189 = vunpack.i.h.s16 %v1017
        %v1190 = vunpack.i.l.s16 %v1018
        %v1191 = vunpack.i.h.s16 %v1018
        %v1192 = vunpack.i.l.s16 %v1019
        %v1193 = vunpack.i.l.s16 %v1034
        %v1194 = vunpack.i.h.s16 %v1034
        %v1195 = vunpack.i.l.s16 %v1041
        %v1196 = vunpack.i.h.s16 %v1041
        %v1197 = vunpack.i.l.s16 %v1042
        %v1198 = vunpack.i.h.s16 %v1042
        %v1199 = vunpack.i.l.s16 %v1043
        %v1200 = vunpack.i.l.s16 %v1058
        %v1201 = vunpack.i.h.s16 %v1058
        %v1202 = vunpack.i.l.s16 %v1065
        %v1203 = vunpack.i.h.s16 %v1065
        %v1204 = vunpack.i.l.s16 %v1066
        %v1205 = vunpack.i.h.s16 %v1066
        %v1206 = vunpack.i.l.s16 %v1067
        %v1207 = vunpack.i.l.s16 %v1082
        %v1208 = vunpack.i.h.s16 %v1082
        %v1209 = vunpack.i.l.s16 %v1089
        %v1210 = vunpack.i.h.s16 %v1089
        %v1211 = vunpack.i.l.s16 %v1090
        %v1212 = vunpack.i.h.s16 %v1090
        %v1213 = vunpack.i.l.s16 %v1091
        %v1214 = vunpack.i.l.s16 %v1106
        %v1215 = vunpack.i.h.s16 %v1106
        %v1216 = vunpack.i.l.s16 %v1113
        %v1217 = vunpack.i.h.s16 %v1113
        %v1218 = vunpack.i.l.s16 %v1114
        %v1219 = vunpack.i.h.s16 %v1114
        %v1220 = vunpack.i.l.s16 %v1115
        %s1221 = scalar_lea.vmem %s2, 2
        %v1222 = vld [vmem:[%s1221] sm:$0x3]
        %v1223 = vpack.i.b16 %v1117, %v1116
        %v1224 = vpack.i.b16 %v1119, %v1118
        %v1225 = vpack.i.b16 %v1121, %v1120
        %v1226 = vpack.i.b16 %v1123, %v1122
        %v1227 = vpack.i.b16 %v1125, %v1124
        %v1228 = vpack.i.b16 %v1127, %v1126
        %v1229 = vpack.i.b16 %v1129, %v1128
        %v1230 = vpack.i.b16 %v1131, %v1130
        %v1231 = vpack.i.b16 %v1133, %v1132
        %v1232 = vpack.i.b16 %v1135, %v1134
        %v1233 = vpack.i.b16 %v1137, %v1136
        %v1234 = vpack.i.b16 %v1139, %v1138
        %v1235 = vpack.i.b16 %v1141, %v1140
        %v1236 = vpack.i.b16 %v1143, %v1142
        %v1237 = vpack.i.b16 %v1145, %v1144
        %v1238 = vpack.i.b16 %v1147, %v1146
        %v1239 = vpack.i.b16 %v1149, %v1148
        %v1240 = vpack.i.b16 %v1151, %v1150
        %v1241 = vpack.i.b16 %v1153, %v1152
        %v1242 = vpack.i.b16 %v1155, %v1154
        %v1243 = vpack.i.b16 %v1157, %v1156
        %v1244 = vpack.i.b16 %v1159, %v1158
        %v1245 = vpack.i.b16 %v1161, %v1160
        %v1246 = vpack.i.b16 %v1163, %v1162
        %v1247 = vpack.i.b16 %v1165, %v1164
        %v1248 = vpack.i.b16 %v1167, %v1166
        %v1249 = vpack.i.b16 %v1169, %v1168
        %v1250 = vpack.i.b16 %v1171, %v1170
        %v1251 = vpack.i.b16 %v1173, %v1172
        %v1252 = vpack.i.b16 %v1175, %v1174
        %v1253 = vpack.i.b16 %v1177, %v1176
        %v1254 = vpack.i.b16 %v1179, %v1178
        %v1255 = vpack.i.b16 %v1181, %v1180
        %v1256 = vpack.i.b16 %v1183, %v1182
        %v1257 = vpack.i.b16 %v1185, %v1184
        %v1258 = vpack.i.b16 %v1187, %v1186
        %v1259 = vpack.i.b16 %v1189, %v1188
        %v1260 = vpack.i.b16 %v1191, %v1190
        %v1261 = vpack.i.b16 %v1193, %v1192
        %v1262 = vpack.i.b16 %v1195, %v1194
        %v1263 = vpack.i.b16 %v1197, %v1196
        %v1264 = vpack.i.b16 %v1199, %v1198
        %v1265 = vpack.i.b16 %v1201, %v1200
        %v1266 = vpack.i.b16 %v1203, %v1202
        %v1267 = vpack.i.b16 %v1205, %v1204
        %v1268 = vpack.i.b16 %v1207, %v1206
        %v1269 = vpack.i.b16 %v1209, %v1208
        %v1270 = vpack.i.b16 %v1211, %v1210
        %v1271 = vpack.i.b16 %v1213, %v1212
        %v1272 = vpack.i.b16 %v1215, %v1214
        %v1273 = vpack.i.b16 %v1217, %v1216
        %v1274 = vpack.i.b16 %v1219, %v1218
        %v1276 = vcombine.low %v1223, %v1224
        %v1277 = vcombine.low %v1225, %v1226
        %v1278 = vcombine.low %v1227, %v1228
        %v1279 = vcombine.low %v1229, %v1230
        %v1281 = vunpack.c.l.s4 1966171168
        %v1282 = vunpack.c.0.s8 %v1281
        %v1283 = vlaneseq
        %v1284 = vshrl.u32 %v1283, 7
        %v1285 = vsub.s32 %v1282, %v1284
        %v1286 = vrot.slane %v1276, %v1285
        %v1288 = vunpack.c.l.s4 1966171168
        %v1289 = vunpack.c.0.s8 %v1288
        %v1290 = vlaneseq
        %v1291 = vshrl.u32 %v1290, 7
        %v1292 = vsub.s32 %v1289, %v1291
        %v1293 = vrot.slane %v1277, %v1292
        %v1295 = vunpack.c.l.s4 1966171168
        %v1296 = vunpack.c.0.s8 %v1295
        %v1297 = vlaneseq
        %v1298 = vshrl.u32 %v1297, 7
        %v1299 = vsub.s32 %v1296, %v1298
        %v1300 = vrot.slane %v1278, %v1299
        %v1302 = vunpack.c.l.s4 1966171168
        %v1303 = vunpack.c.0.s8 %v1302
        %v1304 = vlaneseq
        %v1305 = vshrl.u32 %v1304, 7
        %v1306 = vsub.s32 %v1303, %v1305
        %v1307 = vrot.slane %v1279, %v1306
        %v1308 = vcombine.low %v1286, %v1293
        %v1309 = vcombine.low %v1300, %v1307
        %v1311 = vunpack.c.l.s4 1966171168
        %v1312 = vunpack.c.0.s8 %v1311
        %v1313 = vlaneseq
        %v1314 = vshrl.u32 %v1313, 7
        %v1315 = vsub.s32 %v1312, %v1314
        %v1316 = vrot.slane %v1308, %v1315
        %v1318 = vunpack.c.l.s4 1966171168
        %v1319 = vunpack.c.0.s8 %v1318
        %v1320 = vlaneseq
        %v1321 = vshrl.u32 %v1320, 7
        %v1322 = vsub.s32 %v1319, %v1321
        %v1323 = vrot.slane %v1309, %v1322
        %v1324 = vcombine.low %v1316, %v1323
        %v1325 = vcombine.low %v1231, %v1232
        %v1326 = vcombine.low %v1233, %v1234
        %v1327 = vcombine.low %v1235, %v1236
        %v1328 = vcombine.low %v1237, %v1238
        %v1330 = vunpack.c.l.s4 1966171168
        %v1331 = vunpack.c.0.s8 %v1330
        %v1332 = vlaneseq
        %v1333 = vshrl.u32 %v1332, 7
        %v1334 = vsub.s32 %v1331, %v1333
        %v1335 = vrot.slane %v1325, %v1334
        %v1337 = vunpack.c.l.s4 1966171168
        %v1338 = vunpack.c.0.s8 %v1337
        %v1339 = vlaneseq
        %v1340 = vshrl.u32 %v1339, 7
        %v1341 = vsub.s32 %v1338, %v1340
        %v1342 = vrot.slane %v1326, %v1341
        %v1344 = vunpack.c.l.s4 1966171168
        %v1345 = vunpack.c.0.s8 %v1344
        %v1346 = vlaneseq
        %v1347 = vshrl.u32 %v1346, 7
        %v1348 = vsub.s32 %v1345, %v1347
        %v1349 = vrot.slane %v1327, %v1348
        %v1351 = vunpack.c.l.s4 1966171168
        %v1352 = vunpack.c.0.s8 %v1351
        %v1353 = vlaneseq
        %v1354 = vshrl.u32 %v1353, 7
        %v1355 = vsub.s32 %v1352, %v1354
        %v1356 = vrot.slane %v1328, %v1355
        %v1357 = vcombine.low %v1335, %v1342
        %v1358 = vcombine.low %v1349, %v1356
        %v1360 = vunpack.c.l.s4 1966171168
        %v1361 = vunpack.c.0.s8 %v1360
        %v1362 = vlaneseq
        %v1363 = vshrl.u32 %v1362, 7
        %v1364 = vsub.s32 %v1361, %v1363
        %v1365 = vrot.slane %v1357, %v1364
        %v1367 = vunpack.c.l.s4 1966171168
        %v1368 = vunpack.c.0.s8 %v1367
        %v1369 = vlaneseq
        %v1370 = vshrl.u32 %v1369, 7
        %v1371 = vsub.s32 %v1368, %v1370
        %v1372 = vrot.slane %v1358, %v1371
        %v1373 = vcombine.low %v1365, %v1372
        %v1374 = vcombine.low %v1239, %v1240
        %v1375 = vcombine.low %v1241, %v1242
        %v1376 = vcombine.low %v1243, %v1244
        %v1377 = vcombine.low %v1245, %v1246
        %v1379 = vunpack.c.l.s4 1966171168
        %v1380 = vunpack.c.0.s8 %v1379
        %v1381 = vlaneseq
        %v1382 = vshrl.u32 %v1381, 7
        %v1383 = vsub.s32 %v1380, %v1382
        %v1384 = vrot.slane %v1374, %v1383
        %v1386 = vunpack.c.l.s4 1966171168
        %v1387 = vunpack.c.0.s8 %v1386
        %v1388 = vlaneseq
        %v1389 = vshrl.u32 %v1388, 7
        %v1390 = vsub.s32 %v1387, %v1389
        %v1391 = vrot.slane %v1375, %v1390
        %v1393 = vunpack.c.l.s4 1966171168
        %v1394 = vunpack.c.0.s8 %v1393
        %v1395 = vlaneseq
        %v1396 = vshrl.u32 %v1395, 7
        %v1397 = vsub.s32 %v1394, %v1396
        %v1398 = vrot.slane %v1376, %v1397
        %v1400 = vunpack.c.l.s4 1966171168
        %v1401 = vunpack.c.0.s8 %v1400
        %v1402 = vlaneseq
        %v1403 = vshrl.u32 %v1402, 7
        %v1404 = vsub.s32 %v1401, %v1403
        %v1405 = vrot.slane %v1377, %v1404
        %v1406 = vcombine.low %v1384, %v1391
        %v1407 = vcombine.low %v1398, %v1405
        %v1409 = vunpack.c.l.s4 1966171168
        %v1410 = vunpack.c.0.s8 %v1409
        %v1411 = vlaneseq
        %v1412 = vshrl.u32 %v1411, 7
        %v1413 = vsub.s32 %v1410, %v1412
        %v1414 = vrot.slane %v1406, %v1413
        %v1416 = vunpack.c.l.s4 1966171168
        %v1417 = vunpack.c.0.s8 %v1416
        %v1418 = vlaneseq
        %v1419 = vshrl.u32 %v1418, 7
        %v1420 = vsub.s32 %v1417, %v1419
        %v1421 = vrot.slane %v1407, %v1420
        %v1422 = vcombine.low %v1414, %v1421
        %v1423 = vcombine.low %v1247, %v1248
        %v1424 = vcombine.low %v1249, %v1250
        %v1425 = vcombine.low %v1251, %v1252
        %v1426 = vcombine.low %v1253, %v1254
        %v1428 = vunpack.c.l.s4 1966171168
        %v1429 = vunpack.c.0.s8 %v1428
        %v1430 = vlaneseq
        %v1431 = vshrl.u32 %v1430, 7
        %v1432 = vsub.s32 %v1429, %v1431
        %v1433 = vrot.slane %v1423, %v1432
        %v1435 = vunpack.c.l.s4 1966171168
        %v1436 = vunpack.c.0.s8 %v1435
        %v1437 = vlaneseq
        %v1438 = vshrl.u32 %v1437, 7
        %v1439 = vsub.s32 %v1436, %v1438
        %v1440 = vrot.slane %v1424, %v1439
        %v1442 = vunpack.c.l.s4 1966171168
        %v1443 = vunpack.c.0.s8 %v1442
        %v1444 = vlaneseq
        %v1445 = vshrl.u32 %v1444, 7
        %v1446 = vsub.s32 %v1443, %v1445
        %v1447 = vrot.slane %v1425, %v1446
        %v1449 = vunpack.c.l.s4 1966171168
        %v1450 = vunpack.c.0.s8 %v1449
        %v1451 = vlaneseq
        %v1452 = vshrl.u32 %v1451, 7
        %v1453 = vsub.s32 %v1450, %v1452
        %v1454 = vrot.slane %v1426, %v1453
        %v1455 = vcombine.low %v1433, %v1440
        %v1456 = vcombine.low %v1447, %v1454
        %v1458 = vunpack.c.l.s4 1966171168
        %v1459 = vunpack.c.0.s8 %v1458
        %v1460 = vlaneseq
        %v1461 = vshrl.u32 %v1460, 7
        %v1462 = vsub.s32 %v1459, %v1461
        %v1463 = vrot.slane %v1455, %v1462
        %v1465 = vunpack.c.l.s4 1966171168
        %v1466 = vunpack.c.0.s8 %v1465
        %v1467 = vlaneseq
        %v1468 = vshrl.u32 %v1467, 7
        %v1469 = vsub.s32 %v1466, %v1468
        %v1470 = vrot.slane %v1456, %v1469
        %v1471 = vcombine.low %v1463, %v1470
        %v1472 = vcombine.low %v1255, %v1256
        %v1473 = vcombine.low %v1257, %v1258
        %v1474 = vcombine.low %v1259, %v1260
        %v1475 = vcombine.low %v1261, %v1262
        %v1477 = vunpack.c.l.s4 1966171168
        %v1478 = vunpack.c.0.s8 %v1477
        %v1479 = vlaneseq
        %v1480 = vshrl.u32 %v1479, 7
        %v1481 = vsub.s32 %v1478, %v1480
        %v1482 = vrot.slane %v1472, %v1481
        %v1484 = vunpack.c.l.s4 1966171168
        %v1485 = vunpack.c.0.s8 %v1484
        %v1486 = vlaneseq
        %v1487 = vshrl.u32 %v1486, 7
        %v1488 = vsub.s32 %v1485, %v1487
        %v1489 = vrot.slane %v1473, %v1488
        %v1491 = vunpack.c.l.s4 1966171168
        %v1492 = vunpack.c.0.s8 %v1491
        %v1493 = vlaneseq
        %v1494 = vshrl.u32 %v1493, 7
        %v1495 = vsub.s32 %v1492, %v1494
        %v1496 = vrot.slane %v1474, %v1495
        %v1498 = vunpack.c.l.s4 1966171168
        %v1499 = vunpack.c.0.s8 %v1498
        %v1500 = vlaneseq
        %v1501 = vshrl.u32 %v1500, 7
        %v1502 = vsub.s32 %v1499, %v1501
        %v1503 = vrot.slane %v1475, %v1502
        %v1504 = vcombine.low %v1482, %v1489
        %v1505 = vcombine.low %v1496, %v1503
        %v1507 = vunpack.c.l.s4 1966171168
        %v1508 = vunpack.c.0.s8 %v1507
        %v1509 = vlaneseq
        %v1510 = vshrl.u32 %v1509, 7
        %v1511 = vsub.s32 %v1508, %v1510
        %v1512 = vrot.slane %v1504, %v1511
        %v1514 = vunpack.c.l.s4 1966171168
        %v1515 = vunpack.c.0.s8 %v1514
        %v1516 = vlaneseq
        %v1517 = vshrl.u32 %v1516, 7
        %v1518 = vsub.s32 %v1515, %v1517
        %v1519 = vrot.slane %v1505, %v1518
        %v1520 = vcombine.low %v1512, %v1519
        %v1521 = vcombine.low %v1263, %v1264
        %v1522 = vcombine.low %v1265, %v1266
        %v1523 = vcombine.low %v1267, %v1268
        %v1524 = vcombine.low %v1269, %v1270
        %v1526 = vunpack.c.l.s4 1966171168
        %v1527 = vunpack.c.0.s8 %v1526
        %v1528 = vlaneseq
        %v1529 = vshrl.u32 %v1528, 7
        %v1530 = vsub.s32 %v1527, %v1529
        %v1531 = vrot.slane %v1521, %v1530
        %v1533 = vunpack.c.l.s4 1966171168
        %v1534 = vunpack.c.0.s8 %v1533
        %v1535 = vlaneseq
        %v1536 = vshrl.u32 %v1535, 7
        %v1537 = vsub.s32 %v1534, %v1536
        %v1538 = vrot.slane %v1522, %v1537
        %v1540 = vunpack.c.l.s4 1966171168
        %v1541 = vunpack.c.0.s8 %v1540
        %v1542 = vlaneseq
        %v1543 = vshrl.u32 %v1542, 7
        %v1544 = vsub.s32 %v1541, %v1543
        %v1545 = vrot.slane %v1523, %v1544
        %v1547 = vunpack.c.l.s4 1966171168
        %v1548 = vunpack.c.0.s8 %v1547
        %v1549 = vlaneseq
        %v1550 = vshrl.u32 %v1549, 7
        %v1551 = vsub.s32 %v1548, %v1550
        %v1552 = vrot.slane %v1524, %v1551
        %v1553 = vcombine.low %v1531, %v1538
        %v1554 = vcombine.low %v1545, %v1552
        %v1556 = vunpack.c.l.s4 1966171168
        %v1557 = vunpack.c.0.s8 %v1556
        %v1558 = vlaneseq
        %v1559 = vshrl.u32 %v1558, 7
        %v1560 = vsub.s32 %v1557, %v1559
        %v1561 = vrot.slane %v1553, %v1560
        %v1563 = vunpack.c.l.s4 1966171168
        %v1564 = vunpack.c.0.s8 %v1563
        %v1565 = vlaneseq
        %v1566 = vshrl.u32 %v1565, 7
        %v1567 = vsub.s32 %v1564, %v1566
        %v1568 = vrot.slane %v1554, %v1567
        %v1569 = vcombine.low %v1561, %v1568
        %v1570 = vcombine.low %v1271, %v1272
        %v1571 = vcombine.low %v1273, %v1274
        %v1573 = vunpack.c.l.s4 1966171168
        %v1574 = vunpack.c.0.s8 %v1573
        %v1575 = vlaneseq
        %v1576 = vshrl.u32 %v1575, 7
        %v1577 = vsub.s32 %v1574, %v1576
        %v1578 = vrot.slane %v1570, %v1577
        %v1580 = vunpack.c.l.s4 1966171168
        %v1581 = vunpack.c.0.s8 %v1580
        %v1582 = vlaneseq
        %v1583 = vshrl.u32 %v1582, 7
        %v1584 = vsub.s32 %v1581, %v1583
        %v1585 = vrot.slane %v1571, %v1584
        %v1587 = vunpack.c.l.s4 1966171168
        %v1588 = vunpack.c.0.s8 %v1587
        %v1589 = vlaneseq
        %v1590 = vshrl.u32 %v1589, 7
        %v1591 = vsub.s32 %v1588, %v1590
        %v1592 = vrot.slane %v1220, %v1591
        %v1593 = vcombine.low %v1578, %v1585
        %v1595 = vunpack.c.l.s4 1966171168
        %v1596 = vunpack.c.0.s8 %v1595
        %v1597 = vlaneseq
        %v1598 = vshrl.u32 %v1597, 7
        %v1599 = vsub.s32 %v1596, %v1598
        %v1600 = vrot.slane %v1593, %v1599
        %v1602 = vunpack.c.l.s4 1966171168
        %v1603 = vunpack.c.0.s8 %v1602
        %v1604 = vlaneseq
        %v1605 = vshrl.u32 %v1604, 7
        %v1606 = vsub.s32 %v1603, %v1605
        %v1607 = vrot.slane %v1592, %v1606
        %v1608 = vcombine.low %v1600, %v1607
        %vm1609 = vcmask 31744
        %v1611 = vsel %vm1609, %v1324, 0
        %v1614 = vsel %vm1609, %v1373, 0
        %v1617 = vsel %vm1609, %v1422, 0
        %v1620 = vsel %vm1609, %v1471, 0
        %v1623 = vsel %vm1609, %v1520, 0
        %v1626 = vsel %vm1609, %v1569, 0
        %v1629 = vsel %vm1609, %v1608, 0
        %vm1631 = vcmask 1041408
        %v1633 = vsel %vm1631, %v1222, 0
        %1635 = vmatprep.subr.bf16.mxu0 0
        %1636 = vmatpush1.bf16.msra.mxu0 %v1633
        %1637 = vmatprep.subr.bf16.mxu0 0
        %1638 = vmatpush1.bf16.msra.mxu0 0
        %1639 = vmatprep.subr.bf16.mxu0 0
        %1640 = vmatpush1.bf16.msra.mxu0 0
        %1641 = vmatprep.subr.bf16.mxu0 0
        %1642 = vmatpush1.bf16.msra.mxu0 0
        %1643 = vmatprep.subr.bf16.mxu0 0
        %1644 = vmatpush1.bf16.msra.mxu0 0
        %1645 = vmatprep.subr.bf16.mxu0 0
        %1646 = vmatpush1.bf16.msra.mxu0 0
        %1647 = vmatprep.subr.bf16.mxu0 0
        %1648 = vmatpush1.bf16.msra.mxu0 0
        %1649 = vmatprep.subr.bf16.mxu0 0
        %1650 = vmatpush1.bf16.msra.mxu0 0
        %1651 = vmatprep.subr.bf16.mxu0 0
        %1652 = vmatpush1.bf16.msra.mxu0 0
        %1653 = vmatprep.subr.bf16.mxu0 0
        %1654 = vmatpush1.bf16.msra.mxu0 0
        %1655 = vmatprep.subr.bf16.mxu0 0
        %1656 = vmatpush1.bf16.msra.mxu0 0
        %1657 = vmatprep.subr.bf16.mxu0 0
        %1658 = vmatpush1.bf16.msra.mxu0 0
        %1659 = vmatprep.subr.bf16.mxu0 0
        %1660 = vmatpush1.bf16.msra.mxu0 0
        %1661 = vmatprep.subr.bf16.mxu0 0
        %1662 = vmatpush1.bf16.msra.mxu0 0
        %1663 = vmatprep.subr.bf16.mxu0 0
        %1664 = vmatpush1.bf16.msra.mxu0 0
        %1665 = vmatprep.subr.bf16.mxu0 0
        %1666 = vmatpush1.bf16.msra.mxu0 0
        %1667 = vmatprep.mubr.bf16.mxu0 0
        %1668 = vmatmul.mubr.bf16.gmra.mrb[0].mxu0 %v1611
        %v1669 = vpop.f32.mrb[0].mxu0
        %v1670 = vadd.f32 0.0, %v1669
        %v1671 = vpop.f32.mrb[0].mxu0
        %v1672 = vpop.f32.mrb[0].mxu0
        %v1673 = vadd.f32 0.0, %v1672
        %v1674 = vpop.f32.mrb[0].mxu0
        %1675 = vmatprep.mubr.bf16.mxu0 0
        %1676 = vmatmul.mubr.bf16.gmra.mrb[0].mxu0 %v1614
        %v1677 = vpop.f32.mrb[0].mxu0
        %v1678 = vadd.f32 0.0, %v1677
        %v1679 = vpop.f32.mrb[0].mxu0
        %v1680 = vpop.f32.mrb[0].mxu0
        %v1681 = vadd.f32 0.0, %v1680
        %v1682 = vpop.f32.mrb[0].mxu0
        %1683 = vmatprep.mubr.bf16.mxu0 0
        %1684 = vmatmul.mubr.bf16.gmra.mrb[0].mxu0 %v1617
        %v1685 = vpop.f32.mrb[0].mxu0
        %v1686 = vadd.f32 0.0, %v1685
        %v1687 = vpop.f32.mrb[0].mxu0
        %v1688 = vpop.f32.mrb[0].mxu0
        %v1689 = vadd.f32 0.0, %v1688
        %v1690 = vpop.f32.mrb[0].mxu0
        %1691 = vmatprep.mubr.bf16.mxu0 0
        %1692 = vmatmul.mubr.bf16.gmra.mrb[0].mxu0 %v1620
        %v1693 = vpop.f32.mrb[0].mxu0
        %v1694 = vadd.f32 0.0, %v1693
        %v1695 = vpop.f32.mrb[0].mxu0
        %v1696 = vpop.f32.mrb[0].mxu0
        %v1697 = vadd.f32 0.0, %v1696
        %v1698 = vpop.f32.mrb[0].mxu0
        %1699 = vmatprep.mubr.bf16.mxu0 0
        %1700 = vmatmul.mubr.bf16.gmra.mrb[0].mxu0 %v1623
        %v1701 = vpop.f32.mrb[0].mxu0
        %v1702 = vadd.f32 0.0, %v1701
        %v1703 = vpop.f32.mrb[0].mxu0
        %v1704 = vpop.f32.mrb[0].mxu0
        %v1705 = vadd.f32 0.0, %v1704
        %v1706 = vpop.f32.mrb[0].mxu0
        %1707 = vmatprep.mubr.bf16.mxu0 0
        %1708 = vmatmul.mubr.bf16.gmra.mrb[0].mxu0 %v1626
        %v1709 = vpop.f32.mrb[0].mxu0
        %v1710 = vadd.f32 0.0, %v1709
        %v1711 = vpop.f32.mrb[0].mxu0
        %v1712 = vpop.f32.mrb[0].mxu0
        %v1713 = vadd.f32 0.0, %v1712
        %v1714 = vpop.f32.mrb[0].mxu0
        %1715 = vmatprep.mubr.bf16.mxu0 0
        %1716 = vmatmul.mubr.bf16.gmra.mrb[0].mxu0 %v1629
        %v1717 = vpop.f32.mrb[0].mxu0
        %v1718 = vadd.f32 0.0, %v1717
        %v1719 = vpop.f32.mrb[0].mxu0
        %v1720 = vpop.f32.mrb[0].mxu0
        %v1721 = vadd.f32 0.0, %v1720
        %v1722 = vpop.f32.mrb[0].mxu0
        %1723 = vdwg.mxu0
        %v1724 = vpack.i.b16 %v621, %v620
        %v1725 = vpack.i.b16 %v623, %v622
        %v1726 = vpack.i.b16 %v625, %v624
        %v1727 = vpack.i.b16 %v627, %v626
        %v1728 = vpack.i.b16 %v629, %v628
        %v1729 = vpack.i.b16 %v631, %v630
        %v1730 = vpack.i.b16 %v633, %v632
        %v1731 = vpack.i.b16 %v635, %v634
        %v1732 = vpack.i.b16 %v637, %v636
        %v1733 = vpack.i.b16 %v639, %v638
        %v1734 = vpack.i.b16 %v641, %v640
        %v1735 = vpack.i.b16 %v643, %v642
        %v1736 = vpack.i.b16 %v645, %v644
        %v1737 = vpack.i.b16 %v647, %v646
        %v1738 = vpack.i.b16 %v649, %v648
        %v1739 = vpack.i.b16 %v651, %v650
        %v1740 = vpack.i.b16 %v653, %v652
        %v1741 = vpack.i.b16 %v655, %v654
        %v1742 = vpack.i.b16 %v657, %v656
        %v1743 = vpack.i.b16 %v659, %v658
        %v1744 = vpack.i.b16 %v661, %v660
        %v1745 = vpack.i.b16 %v663, %v662
        %v1746 = vpack.i.b16 %v665, %v664
        %v1747 = vpack.i.b16 %v667, %v666
        %v1748 = vpack.i.b16 %v669, %v668
        %v1749 = vpack.i.b16 %v671, %v670
        %v1750 = vpack.i.b16 %v673, %v672
        %v1751 = vpack.i.b16 %v675, %v674
        %v1752 = vpack.i.b16 %v677, %v676
        %v1753 = vpack.i.b16 %v679, %v678
        %v1754 = vpack.i.b16 %v681, %v680
        %v1755 = vpack.i.b16 %v683, %v682
        %v1756 = vpack.i.b16 %v685, %v684
        %v1757 = vpack.i.b16 %v687, %v686
        %v1758 = vpack.i.b16 %v689, %v688
        %v1759 = vpack.i.b16 %v691, %v690
        %v1760 = vpack.i.b16 %v693, %v692
        %v1761 = vpack.i.b16 %v695, %v694
        %v1762 = vpack.i.b16 %v697, %v696
        %v1763 = vpack.i.b16 %v699, %v698
        %v1764 = vpack.i.b16 %v701, %v700
        %v1765 = vpack.i.b16 %v703, %v702
        %v1766 = vpack.i.b16 %v705, %v704
        %v1767 = vpack.i.b16 %v707, %v706
        %v1768 = vpack.i.b16 %v709, %v708
        %v1769 = vpack.i.b16 %v711, %v710
        %v1770 = vpack.i.b16 %v713, %v712
        %v1771 = vpack.i.b16 %v715, %v714
        %v1772 = vpack.i.b16 %v717, %v716
        %v1773 = vpack.i.b16 %v719, %v718
        %v1774 = vpack.i.b16 %v721, %v720
        %v1775 = vpack.i.b16 %v723, %v722
        %v1777 = vcombine.low %v1724, %v1725
        %v1778 = vcombine.low %v1726, %v1727
        %v1779 = vcombine.low %v1728, %v1729
        %v1780 = vcombine.low %v1730, %v1731
        %v1782 = vunpack.c.l.s4 1966171168
        %v1783 = vunpack.c.0.s8 %v1782
        %v1784 = vlaneseq
        %v1785 = vshrl.u32 %v1784, 7
        %v1786 = vsub.s32 %v1783, %v1785
        %v1787 = vrot.slane %v1777, %v1786
        %v1789 = vunpack.c.l.s4 1966171168
        %v1790 = vunpack.c.0.s8 %v1789
        %v1791 = vlaneseq
        %v1792 = vshrl.u32 %v1791, 7
        %v1793 = vsub.s32 %v1790, %v1792
        %v1794 = vrot.slane %v1778, %v1793
        %v1796 = vunpack.c.l.s4 1966171168
        %v1797 = vunpack.c.0.s8 %v1796
        %v1798 = vlaneseq
        %v1799 = vshrl.u32 %v1798, 7
        %v1800 = vsub.s32 %v1797, %v1799
        %v1801 = vrot.slane %v1779, %v1800
        %v1803 = vunpack.c.l.s4 1966171168
        %v1804 = vunpack.c.0.s8 %v1803
        %v1805 = vlaneseq
        %v1806 = vshrl.u32 %v1805, 7
        %v1807 = vsub.s32 %v1804, %v1806
        %v1808 = vrot.slane %v1780, %v1807
        %v1809 = vcombine.low %v1787, %v1794
        %v1810 = vcombine.low %v1801, %v1808
        %v1812 = vunpack.c.l.s4 1966171168
        %v1813 = vunpack.c.0.s8 %v1812
        %v1814 = vlaneseq
        %v1815 = vshrl.u32 %v1814, 7
        %v1816 = vsub.s32 %v1813, %v1815
        %v1817 = vrot.slane %v1809, %v1816
        %v1819 = vunpack.c.l.s4 1966171168
        %v1820 = vunpack.c.0.s8 %v1819
        %v1821 = vlaneseq
        %v1822 = vshrl.u32 %v1821, 7
        %v1823 = vsub.s32 %v1820, %v1822
        %v1824 = vrot.slane %v1810, %v1823
        %v1825 = vcombine.low %v1817, %v1824
        %v1826 = vcombine.low %v1732, %v1733
        %v1827 = vcombine.low %v1734, %v1735
        %v1828 = vcombine.low %v1736, %v1737
        %v1829 = vcombine.low %v1738, %v1739
        %v1831 = vunpack.c.l.s4 1966171168
        %v1832 = vunpack.c.0.s8 %v1831
        %v1833 = vlaneseq
        %v1834 = vshrl.u32 %v1833, 7
        %v1835 = vsub.s32 %v1832, %v1834
        %v1836 = vrot.slane %v1826, %v1835
        %v1838 = vunpack.c.l.s4 1966171168
        %v1839 = vunpack.c.0.s8 %v1838
        %v1840 = vlaneseq
        %v1841 = vshrl.u32 %v1840, 7
        %v1842 = vsub.s32 %v1839, %v1841
        %v1843 = vrot.slane %v1827, %v1842
        %v1845 = vunpack.c.l.s4 1966171168
        %v1846 = vunpack.c.0.s8 %v1845
        %v1847 = vlaneseq
        %v1848 = vshrl.u32 %v1847, 7
        %v1849 = vsub.s32 %v1846, %v1848
        %v1850 = vrot.slane %v1828, %v1849
        %v1852 = vunpack.c.l.s4 1966171168
        %v1853 = vunpack.c.0.s8 %v1852
        %v1854 = vlaneseq
        %v1855 = vshrl.u32 %v1854, 7
        %v1856 = vsub.s32 %v1853, %v1855
        %v1857 = vrot.slane %v1829, %v1856
        %v1858 = vcombine.low %v1836, %v1843
        %v1859 = vcombine.low %v1850, %v1857
        %v1861 = vunpack.c.l.s4 1966171168
        %v1862 = vunpack.c.0.s8 %v1861
        %v1863 = vlaneseq
        %v1864 = vshrl.u32 %v1863, 7
        %v1865 = vsub.s32 %v1862, %v1864
        %v1866 = vrot.slane %v1858, %v1865
        %v1868 = vunpack.c.l.s4 1966171168
        %v1869 = vunpack.c.0.s8 %v1868
        %v1870 = vlaneseq
        %v1871 = vshrl.u32 %v1870, 7
        %v1872 = vsub.s32 %v1869, %v1871
        %v1873 = vrot.slane %v1859, %v1872
        %v1874 = vcombine.low %v1866, %v1873
        %v1875 = vcombine.low %v1740, %v1741
        %v1876 = vcombine.low %v1742, %v1743
        %v1877 = vcombine.low %v1744, %v1745
        %v1878 = vcombine.low %v1746, %v1747
        %v1880 = vunpack.c.l.s4 1966171168
        %v1881 = vunpack.c.0.s8 %v1880
        %v1882 = vlaneseq
        %v1883 = vshrl.u32 %v1882, 7
        %v1884 = vsub.s32 %v1881, %v1883
        %v1885 = vrot.slane %v1875, %v1884
        %v1887 = vunpack.c.l.s4 1966171168
        %v1888 = vunpack.c.0.s8 %v1887
        %v1889 = vlaneseq
        %v1890 = vshrl.u32 %v1889, 7
        %v1891 = vsub.s32 %v1888, %v1890
        %v1892 = vrot.slane %v1876, %v1891
        %v1894 = vunpack.c.l.s4 1966171168
        %v1895 = vunpack.c.0.s8 %v1894
        %v1896 = vlaneseq
        %v1897 = vshrl.u32 %v1896, 7
        %v1898 = vsub.s32 %v1895, %v1897
        %v1899 = vrot.slane %v1877, %v1898
        %v1901 = vunpack.c.l.s4 1966171168
        %v1902 = vunpack.c.0.s8 %v1901
        %v1903 = vlaneseq
        %v1904 = vshrl.u32 %v1903, 7
        %v1905 = vsub.s32 %v1902, %v1904
        %v1906 = vrot.slane %v1878, %v1905
        %v1907 = vcombine.low %v1885, %v1892
        %v1908 = vcombine.low %v1899, %v1906
        %v1910 = vunpack.c.l.s4 1966171168
        %v1911 = vunpack.c.0.s8 %v1910
        %v1912 = vlaneseq
        %v1913 = vshrl.u32 %v1912, 7
        %v1914 = vsub.s32 %v1911, %v1913
        %v1915 = vrot.slane %v1907, %v1914
        %v1917 = vunpack.c.l.s4 1966171168
        %v1918 = vunpack.c.0.s8 %v1917
        %v1919 = vlaneseq
        %v1920 = vshrl.u32 %v1919, 7
        %v1921 = vsub.s32 %v1918, %v1920
        %v1922 = vrot.slane %v1908, %v1921
        %v1923 = vcombine.low %v1915, %v1922
        %v1924 = vcombine.low %v1748, %v1749
        %v1925 = vcombine.low %v1750, %v1751
        %v1926 = vcombine.low %v1752, %v1753
        %v1927 = vcombine.low %v1754, %v1755
        %v1929 = vunpack.c.l.s4 1966171168
        %v1930 = vunpack.c.0.s8 %v1929
        %v1931 = vlaneseq
        %v1932 = vshrl.u32 %v1931, 7
        %v1933 = vsub.s32 %v1930, %v1932
        %v1934 = vrot.slane %v1924, %v1933
        %v1936 = vunpack.c.l.s4 1966171168
        %v1937 = vunpack.c.0.s8 %v1936
        %v1938 = vlaneseq
        %v1939 = vshrl.u32 %v1938, 7
        %v1940 = vsub.s32 %v1937, %v1939
        %v1941 = vrot.slane %v1925, %v1940
        %v1943 = vunpack.c.l.s4 1966171168
        %v1944 = vunpack.c.0.s8 %v1943
        %v1945 = vlaneseq
        %v1946 = vshrl.u32 %v1945, 7
        %v1947 = vsub.s32 %v1944, %v1946
        %v1948 = vrot.slane %v1926, %v1947
        %v1950 = vunpack.c.l.s4 1966171168
        %v1951 = vunpack.c.0.s8 %v1950
        %v1952 = vlaneseq
        %v1953 = vshrl.u32 %v1952, 7
        %v1954 = vsub.s32 %v1951, %v1953
        %v1955 = vrot.slane %v1927, %v1954
        %v1956 = vcombine.low %v1934, %v1941
        %v1957 = vcombine.low %v1948, %v1955
        %v1959 = vunpack.c.l.s4 1966171168
        %v1960 = vunpack.c.0.s8 %v1959
        %v1961 = vlaneseq
        %v1962 = vshrl.u32 %v1961, 7
        %v1963 = vsub.s32 %v1960, %v1962
        %v1964 = vrot.slane %v1956, %v1963
        %v1966 = vunpack.c.l.s4 1966171168
        %v1967 = vunpack.c.0.s8 %v1966
        %v1968 = vlaneseq
        %v1969 = vshrl.u32 %v1968, 7
        %v1970 = vsub.s32 %v1967, %v1969
        %v1971 = vrot.slane %v1957, %v1970
        %v1972 = vcombine.low %v1964, %v1971
        %v1973 = vcombine.low %v1756, %v1757
        %v1974 = vcombine.low %v1758, %v1759
        %v1975 = vcombine.low %v1760, %v1761
        %v1976 = vcombine.low %v1762, %v1763
        %v1978 = vunpack.c.l.s4 1966171168
        %v1979 = vunpack.c.0.s8 %v1978
        %v1980 = vlaneseq
        %v1981 = vshrl.u32 %v1980, 7
        %v1982 = vsub.s32 %v1979, %v1981
        %v1983 = vrot.slane %v1973, %v1982
        %v1985 = vunpack.c.l.s4 1966171168
        %v1986 = vunpack.c.0.s8 %v1985
        %v1987 = vlaneseq
        %v1988 = vshrl.u32 %v1987, 7
        %v1989 = vsub.s32 %v1986, %v1988
        %v1990 = vrot.slane %v1974, %v1989
        %v1992 = vunpack.c.l.s4 1966171168
        %v1993 = vunpack.c.0.s8 %v1992
        %v1994 = vlaneseq
        %v1995 = vshrl.u32 %v1994, 7
        %v1996 = vsub.s32 %v1993, %v1995
        %v1997 = vrot.slane %v1975, %v1996
        %v1999 = vunpack.c.l.s4 1966171168
        %v2000 = vunpack.c.0.s8 %v1999
        %v2001 = vlaneseq
        %v2002 = vshrl.u32 %v2001, 7
        %v2003 = vsub.s32 %v2000, %v2002
        %v2004 = vrot.slane %v1976, %v2003
        %v2005 = vcombine.low %v1983, %v1990
        %v2006 = vcombine.low %v1997, %v2004
        %v2008 = vunpack.c.l.s4 1966171168
        %v2009 = vunpack.c.0.s8 %v2008
        %v2010 = vlaneseq
        %v2011 = vshrl.u32 %v2010, 7
        %v2012 = vsub.s32 %v2009, %v2011
        %v2013 = vrot.slane %v2005, %v2012
        %v2015 = vunpack.c.l.s4 1966171168
        %v2016 = vunpack.c.0.s8 %v2015
        %v2017 = vlaneseq
        %v2018 = vshrl.u32 %v2017, 7
        %v2019 = vsub.s32 %v2016, %v2018
        %v2020 = vrot.slane %v2006, %v2019
        %v2021 = vcombine.low %v2013, %v2020
        %v2022 = vcombine.low %v1764, %v1765
        %v2023 = vcombine.low %v1766, %v1767
        %v2024 = vcombine.low %v1768, %v1769
        %v2025 = vcombine.low %v1770, %v1771
        %v2027 = vunpack.c.l.s4 1966171168
        %v2028 = vunpack.c.0.s8 %v2027
        %v2029 = vlaneseq
        %v2030 = vshrl.u32 %v2029, 7
        %v2031 = vsub.s32 %v2028, %v2030
        %v2032 = vrot.slane %v2022, %v2031
        %v2034 = vunpack.c.l.s4 1966171168
        %v2035 = vunpack.c.0.s8 %v2034
        %v2036 = vlaneseq
        %v2037 = vshrl.u32 %v2036, 7
        %v2038 = vsub.s32 %v2035, %v2037
        %v2039 = vrot.slane %v2023, %v2038
        %v2041 = vunpack.c.l.s4 1966171168
        %v2042 = vunpack.c.0.s8 %v2041
        %v2043 = vlaneseq
        %v2044 = vshrl.u32 %v2043, 7
        %v2045 = vsub.s32 %v2042, %v2044
        %v2046 = vrot.slane %v2024, %v2045
        %v2048 = vunpack.c.l.s4 1966171168
        %v2049 = vunpack.c.0.s8 %v2048
        %v2050 = vlaneseq
        %v2051 = vshrl.u32 %v2050, 7
        %v2052 = vsub.s32 %v2049, %v2051
        %v2053 = vrot.slane %v2025, %v2052
        %v2054 = vcombine.low %v2032, %v2039
        %v2055 = vcombine.low %v2046, %v2053
        %v2057 = vunpack.c.l.s4 1966171168
        %v2058 = vunpack.c.0.s8 %v2057
        %v2059 = vlaneseq
        %v2060 = vshrl.u32 %v2059, 7
        %v2061 = vsub.s32 %v2058, %v2060
        %v2062 = vrot.slane %v2054, %v2061
        %v2064 = vunpack.c.l.s4 1966171168
        %v2065 = vunpack.c.0.s8 %v2064
        %v2066 = vlaneseq
        %v2067 = vshrl.u32 %v2066, 7
        %v2068 = vsub.s32 %v2065, %v2067
        %v2069 = vrot.slane %v2055, %v2068
        %v2070 = vcombine.low %v2062, %v2069
        %v2071 = vcombine.low %v1772, %v1773
        %v2072 = vcombine.low %v1774, %v1775
        %v2074 = vunpack.c.l.s4 1966171168
        %v2075 = vunpack.c.0.s8 %v2074
        %v2076 = vlaneseq
        %v2077 = vshrl.u32 %v2076, 7
        %v2078 = vsub.s32 %v2075, %v2077
        %v2079 = vrot.slane %v2071, %v2078
        %v2081 = vunpack.c.l.s4 1966171168
        %v2082 = vunpack.c.0.s8 %v2081
        %v2083 = vlaneseq
        %v2084 = vshrl.u32 %v2083, 7
        %v2085 = vsub.s32 %v2082, %v2084
        %v2086 = vrot.slane %v2072, %v2085
        %v2088 = vunpack.c.l.s4 1966171168
        %v2089 = vunpack.c.0.s8 %v2088
        %v2090 = vlaneseq
        %v2091 = vshrl.u32 %v2090, 7
        %v2092 = vsub.s32 %v2089, %v2091
        %v2093 = vrot.slane %v724, %v2092
        %v2094 = vcombine.low %v2079, %v2086
        %v2096 = vunpack.c.l.s4 1966171168
        %v2097 = vunpack.c.0.s8 %v2096
        %v2098 = vlaneseq
        %v2099 = vshrl.u32 %v2098, 7
        %v2100 = vsub.s32 %v2097, %v2099
        %v2101 = vrot.slane %v2094, %v2100
        %v2103 = vunpack.c.l.s4 1966171168
        %v2104 = vunpack.c.0.s8 %v2103
        %v2105 = vlaneseq
        %v2106 = vshrl.u32 %v2105, 7
        %v2107 = vsub.s32 %v2104, %v2106
        %v2108 = vrot.slane %v2093, %v2107
        %v2109 = vcombine.low %v2101, %v2108
        %v2111 = vsel %vm1609, %v1825, 0
        %v2114 = vsel %vm1609, %v1874, 0
        %v2117 = vsel %vm1609, %v1923, 0
        %v2120 = vsel %vm1609, %v1972, 0
        %v2123 = vsel %vm1609, %v2021, 0
        %v2126 = vsel %vm1609, %v2070, 0
        %v2129 = vsel %vm1609, %v2109, 0
        %v2132 = vsel %vm1631, %v725, 0
        %2134 = vmatprep.subr.bf16.mxu0 0
        %2135 = vmatpush1.bf16.msra.mxu0 %v2132
        %2136 = vmatprep.subr.bf16.mxu0 0
        %2137 = vmatpush1.bf16.msra.mxu0 0
        %2138 = vmatprep.subr.bf16.mxu0 0
        %2139 = vmatpush1.bf16.msra.mxu0 0
        %2140 = vmatprep.subr.bf16.mxu0 0
        %2141 = vmatpush1.bf16.msra.mxu0 0
        %2142 = vmatprep.subr.bf16.mxu0 0
        %2143 = vmatpush1.bf16.msra.mxu0 0
        %2144 = vmatprep.subr.bf16.mxu0 0
        %2145 = vmatpush1.bf16.msra.mxu0 0
        %2146 = vmatprep.subr.bf16.mxu0 0
        %2147 = vmatpush1.bf16.msra.mxu0 0
        %2148 = vmatprep.subr.bf16.mxu0 0
        %2149 = vmatpush1.bf16.msra.mxu0 0
        %2150 = vmatprep.subr.bf16.mxu0 0
        %2151 = vmatpush1.bf16.msra.mxu0 0
        %2152 = vmatprep.subr.bf16.mxu0 0
        %2153 = vmatpush1.bf16.msra.mxu0 0
        %2154 = vmatprep.subr.bf16.mxu0 0
        %2155 = vmatpush1.bf16.msra.mxu0 0
        %2156 = vmatprep.subr.bf16.mxu0 0
        %2157 = vmatpush1.bf16.msra.mxu0 0
        %2158 = vmatprep.subr.bf16.mxu0 0
        %2159 = vmatpush1.bf16.msra.mxu0 0
        %2160 = vmatprep.subr.bf16.mxu0 0
        %2161 = vmatpush1.bf16.msra.mxu0 0
        %2162 = vmatprep.subr.bf16.mxu0 0
        %2163 = vmatpush1.bf16.msra.mxu0 0
        %2164 = vmatprep.subr.bf16.mxu0 0
        %2165 = vmatpush1.bf16.msra.mxu0 0
        %2166 = vmatprep.mubr.bf16.mxu0 0
        %2167 = vmatmul.mubr.bf16.gmra.mrb[0].mxu0 %v2111
        %v2168 = vpop.f32.mrb[0].mxu0
        %v2169 = vadd.f32 %v1670, %v2168
        %v2170 = vpop.f32.mrb[0].mxu0
        %v2171 = vpop.f32.mrb[0].mxu0
        %v2172 = vadd.f32 %v1673, %v2171
        %v2173 = vpop.f32.mrb[0].mxu0
        %2174 = vmatprep.mubr.bf16.mxu0 0
        %2175 = vmatmul.mubr.bf16.gmra.mrb[0].mxu0 %v2114
        %v2176 = vpop.f32.mrb[0].mxu0
        %v2177 = vadd.f32 %v1678, %v2176
        %v2178 = vpop.f32.mrb[0].mxu0
        %v2179 = vpop.f32.mrb[0].mxu0
        %v2180 = vadd.f32 %v1681, %v2179
        %v2181 = vpop.f32.mrb[0].mxu0
        %2182 = vmatprep.mubr.bf16.mxu0 0
        %2183 = vmatmul.mubr.bf16.gmra.mrb[0].mxu0 %v2117
        %v2184 = vpop.f32.mrb[0].mxu0
        %v2185 = vadd.f32 %v1686, %v2184
        %v2186 = vpop.f32.mrb[0].mxu0
        %v2187 = vpop.f32.mrb[0].mxu0
        %v2188 = vadd.f32 %v1689, %v2187
        %v2189 = vpop.f32.mrb[0].mxu0
        %2190 = vmatprep.mubr.bf16.mxu0 0
        %2191 = vmatmul.mubr.bf16.gmra.mrb[0].mxu0 %v2120
        %v2192 = vpop.f32.mrb[0].mxu0
        %v2193 = vadd.f32 %v1694, %v2192
        %v2194 = vpop.f32.mrb[0].mxu0
        %v2195 = vpop.f32.mrb[0].mxu0
        %v2196 = vadd.f32 %v1697, %v2195
        %v2197 = vpop.f32.mrb[0].mxu0
        %2198 = vmatprep.mubr.bf16.mxu0 0
        %2199 = vmatmul.mubr.bf16.gmra.mrb[0].mxu0 %v2123
        %v2200 = vpop.f32.mrb[0].mxu0
        %v2201 = vadd.f32 %v1702, %v2200
        %v2202 = vpop.f32.mrb[0].mxu0
        %v2203 = vpop.f32.mrb[0].mxu0
        %v2204 = vadd.f32 %v1705, %v2203
        %v2205 = vpop.f32.mrb[0].mxu0
        %2206 = vmatprep.mubr.bf16.mxu0 0
        %2207 = vmatmul.mubr.bf16.gmra.mrb[0].mxu0 %v2126
        %v2208 = vpop.f32.mrb[0].mxu0
        %v2209 = vadd.f32 %v1710, %v2208
        %v2210 = vpop.f32.mrb[0].mxu0
        %v2211 = vpop.f32.mrb[0].mxu0
        %v2212 = vadd.f32 %v1713, %v2211
        %v2213 = vpop.f32.mrb[0].mxu0
        %2214 = vmatprep.mubr.bf16.mxu0 0
        %2215 = vmatmul.mubr.bf16.gmra.mrb[0].mxu0 %v2129
        %v2216 = vpop.f32.mrb[0].mxu0
        %v2217 = vadd.f32 %v1718, %v2216
        %v2218 = vpop.f32.mrb[0].mxu0
        %v2219 = vpop.f32.mrb[0].mxu0
        %v2220 = vadd.f32 %v1721, %v2219
        %v2221 = vpop.f32.mrb[0].mxu0
        %2222 = vdwg.mxu0
        %v2223 = vld [vmem:[%s218] sm:$0xf]
        %v2224 = vld [vmem:[%s218 + $0x4] sm:$0xf]
        %v2225 = vld [vmem:[%s218 + $0x8] sm:$0xf]
        %v2226 = vld [vmem:[%s218 + $0xc] sm:$0xf]
        %v2227 = vld [vmem:[%s218 + $0x10] sm:$0xf]
        %v2228 = vld [vmem:[%s218 + $0x14] sm:$0xf]
        %v2229 = vld [vmem:[%s218 + $0x18] sm:$0xf]
        %v2230 = vld [vmem:[%s218 + $0x1c] sm:$0xf]
        %v2231 = vld [vmem:[%s218 + $0x20] sm:$0xf]
        %v2232 = vld [vmem:[%s218 + $0x24] sm:$0xf]
        %v2233 = vld [vmem:[%s218 + $0x28] sm:$0xf]
        %v2234 = vld [vmem:[%s218 + $0x2c] sm:$0xf]
        %v2235 = vld [vmem:[%s218 + $0x30] sm:$0xf]
        %v2236 = vld [vmem:[%s218 + $0x34] sm:$0xf]
        %v2237 = vld [vmem:[%s218 + $0x38] sm:$0xf]
        %v2254 = vunpack.c.l.s4 1966171168
        %v2255 = vunpack.c.0.s8 %v2254
        %v2256 = vlaneseq
        %v2257 = vshrl.u32 %v2256, 7
        %v2258 = vsub.s32 %v2255, %v2257
        %v2259 = vrot.slane %v2223, %v2258
        %v2260 = vcombine.high %v2259, %v2259
        %v2262 = vunpack.c.l.s4 1966171168
        %v2263 = vunpack.c.0.s8 %v2262
        %v2264 = vlaneseq
        %v2265 = vshrl.u32 %v2264, 7
        %v2266 = vsub.s32 %v2263, %v2265
        %v2267 = vrot.slane %v2259, %v2266
        %v2269 = vunpack.c.l.s4 1966171168
        %v2270 = vunpack.c.0.s8 %v2269
        %v2271 = vlaneseq
        %v2272 = vshrl.u32 %v2271, 7
        %v2273 = vsub.s32 %v2270, %v2272
        %v2274 = vrot.slane %v2260, %v2273
        %v2275 = vcombine.high %v2267, %v2267
        %v2276 = vcombine.high %v2274, %v2274
        %v2278 = vunpack.c.l.s4 1966171168
        %v2279 = vunpack.c.0.s8 %v2278
        %v2280 = vlaneseq
        %v2281 = vshrl.u32 %v2280, 7
        %v2282 = vsub.s32 %v2279, %v2281
        %v2283 = vrot.slane %v2224, %v2282
        %v2284 = vcombine.high %v2283, %v2283
        %v2286 = vunpack.c.l.s4 1966171168
        %v2287 = vunpack.c.0.s8 %v2286
        %v2288 = vlaneseq
        %v2289 = vshrl.u32 %v2288, 7
        %v2290 = vsub.s32 %v2287, %v2289
        %v2291 = vrot.slane %v2283, %v2290
        %v2293 = vunpack.c.l.s4 1966171168
        %v2294 = vunpack.c.0.s8 %v2293
        %v2295 = vlaneseq
        %v2296 = vshrl.u32 %v2295, 7
        %v2297 = vsub.s32 %v2294, %v2296
        %v2298 = vrot.slane %v2284, %v2297
        %v2299 = vcombine.high %v2291, %v2291
        %v2300 = vcombine.high %v2298, %v2298
        %v2302 = vunpack.c.l.s4 1966171168
        %v2303 = vunpack.c.0.s8 %v2302
        %v2304 = vlaneseq
        %v2305 = vshrl.u32 %v2304, 7
        %v2306 = vsub.s32 %v2303, %v2305
        %v2307 = vrot.slane %v2225, %v2306
        %v2308 = vcombine.high %v2307, %v2307
        %v2310 = vunpack.c.l.s4 1966171168
        %v2311 = vunpack.c.0.s8 %v2310
        %v2312 = vlaneseq
        %v2313 = vshrl.u32 %v2312, 7
        %v2314 = vsub.s32 %v2311, %v2313
        %v2315 = vrot.slane %v2307, %v2314
        %v2317 = vunpack.c.l.s4 1966171168
        %v2318 = vunpack.c.0.s8 %v2317
        %v2319 = vlaneseq
        %v2320 = vshrl.u32 %v2319, 7
        %v2321 = vsub.s32 %v2318, %v2320
        %v2322 = vrot.slane %v2308, %v2321
        %v2323 = vcombine.high %v2315, %v2315
        %v2324 = vcombine.high %v2322, %v2322
        %v2326 = vunpack.c.l.s4 1966171168
        %v2327 = vunpack.c.0.s8 %v2326
        %v2328 = vlaneseq
        %v2329 = vshrl.u32 %v2328, 7
        %v2330 = vsub.s32 %v2327, %v2329
        %v2331 = vrot.slane %v2226, %v2330
        %v2332 = vcombine.high %v2331, %v2331
        %v2334 = vunpack.c.l.s4 1966171168
        %v2335 = vunpack.c.0.s8 %v2334
        %v2336 = vlaneseq
        %v2337 = vshrl.u32 %v2336, 7
        %v2338 = vsub.s32 %v2335, %v2337
        %v2339 = vrot.slane %v2331, %v2338
        %v2341 = vunpack.c.l.s4 1966171168
        %v2342 = vunpack.c.0.s8 %v2341
        %v2343 = vlaneseq
        %v2344 = vshrl.u32 %v2343, 7
        %v2345 = vsub.s32 %v2342, %v2344
        %v2346 = vrot.slane %v2332, %v2345
        %v2347 = vcombine.high %v2339, %v2339
        %v2348 = vcombine.high %v2346, %v2346
        %v2350 = vunpack.c.l.s4 1966171168
        %v2351 = vunpack.c.0.s8 %v2350
        %v2352 = vlaneseq
        %v2353 = vshrl.u32 %v2352, 7
        %v2354 = vsub.s32 %v2351, %v2353
        %v2355 = vrot.slane %v2227, %v2354
        %v2356 = vcombine.high %v2355, %v2355
        %v2358 = vunpack.c.l.s4 1966171168
        %v2359 = vunpack.c.0.s8 %v2358
        %v2360 = vlaneseq
        %v2361 = vshrl.u32 %v2360, 7
        %v2362 = vsub.s32 %v2359, %v2361
        %v2363 = vrot.slane %v2355, %v2362
        %v2365 = vunpack.c.l.s4 1966171168
        %v2366 = vunpack.c.0.s8 %v2365
        %v2367 = vlaneseq
        %v2368 = vshrl.u32 %v2367, 7
        %v2369 = vsub.s32 %v2366, %v2368
        %v2370 = vrot.slane %v2356, %v2369
        %v2371 = vcombine.high %v2363, %v2363
        %v2372 = vcombine.high %v2370, %v2370
        %v2374 = vunpack.c.l.s4 1966171168
        %v2375 = vunpack.c.0.s8 %v2374
        %v2376 = vlaneseq
        %v2377 = vshrl.u32 %v2376, 7
        %v2378 = vsub.s32 %v2375, %v2377
        %v2379 = vrot.slane %v2228, %v2378
        %v2380 = vcombine.high %v2379, %v2379
        %v2382 = vunpack.c.l.s4 1966171168
        %v2383 = vunpack.c.0.s8 %v2382
        %v2384 = vlaneseq
        %v2385 = vshrl.u32 %v2384, 7
        %v2386 = vsub.s32 %v2383, %v2385
        %v2387 = vrot.slane %v2379, %v2386
        %v2389 = vunpack.c.l.s4 1966171168
        %v2390 = vunpack.c.0.s8 %v2389
        %v2391 = vlaneseq
        %v2392 = vshrl.u32 %v2391, 7
        %v2393 = vsub.s32 %v2390, %v2392
        %v2394 = vrot.slane %v2380, %v2393
        %v2395 = vcombine.high %v2387, %v2387
        %v2396 = vcombine.high %v2394, %v2394
        %v2398 = vunpack.c.l.s4 1966171168
        %v2399 = vunpack.c.0.s8 %v2398
        %v2400 = vlaneseq
        %v2401 = vshrl.u32 %v2400, 7
        %v2402 = vsub.s32 %v2399, %v2401
        %v2403 = vrot.slane %v2229, %v2402
        %v2404 = vcombine.high %v2403, %v2403
        %v2406 = vunpack.c.l.s4 1966171168
        %v2407 = vunpack.c.0.s8 %v2406
        %v2408 = vlaneseq
        %v2409 = vshrl.u32 %v2408, 7
        %v2410 = vsub.s32 %v2407, %v2409
        %v2411 = vrot.slane %v2403, %v2410
        %v2413 = vunpack.c.l.s4 1966171168
        %v2414 = vunpack.c.0.s8 %v2413
        %v2415 = vlaneseq
        %v2416 = vshrl.u32 %v2415, 7
        %v2417 = vsub.s32 %v2414, %v2416
        %v2418 = vrot.slane %v2404, %v2417
        %v2419 = vcombine.high %v2411, %v2411
        %v2420 = vcombine.high %v2418, %v2418
        %v2422 = vunpack.c.l.s4 1966171168
        %v2423 = vunpack.c.0.s8 %v2422
        %v2424 = vlaneseq
        %v2425 = vshrl.u32 %v2424, 7
        %v2426 = vsub.s32 %v2423, %v2425
        %v2427 = vrot.slane %v2230, %v2426
        %v2428 = vcombine.high %v2427, %v2427
        %v2430 = vunpack.c.l.s4 1966171168
        %v2431 = vunpack.c.0.s8 %v2430
        %v2432 = vlaneseq
        %v2433 = vshrl.u32 %v2432, 7
        %v2434 = vsub.s32 %v2431, %v2433
        %v2435 = vrot.slane %v2427, %v2434
        %v2437 = vunpack.c.l.s4 1966171168
        %v2438 = vunpack.c.0.s8 %v2437
        %v2439 = vlaneseq
        %v2440 = vshrl.u32 %v2439, 7
        %v2441 = vsub.s32 %v2438, %v2440
        %v2442 = vrot.slane %v2428, %v2441
        %v2443 = vcombine.high %v2435, %v2435
        %v2444 = vcombine.high %v2442, %v2442
        %v2446 = vunpack.c.l.s4 1966171168
        %v2447 = vunpack.c.0.s8 %v2446
        %v2448 = vlaneseq
        %v2449 = vshrl.u32 %v2448, 7
        %v2450 = vsub.s32 %v2447, %v2449
        %v2451 = vrot.slane %v2231, %v2450
        %v2452 = vcombine.high %v2451, %v2451
        %v2454 = vunpack.c.l.s4 1966171168
        %v2455 = vunpack.c.0.s8 %v2454
        %v2456 = vlaneseq
        %v2457 = vshrl.u32 %v2456, 7
        %v2458 = vsub.s32 %v2455, %v2457
        %v2459 = vrot.slane %v2451, %v2458
        %v2461 = vunpack.c.l.s4 1966171168
        %v2462 = vunpack.c.0.s8 %v2461
        %v2463 = vlaneseq
        %v2464 = vshrl.u32 %v2463, 7
        %v2465 = vsub.s32 %v2462, %v2464
        %v2466 = vrot.slane %v2452, %v2465
        %v2467 = vcombine.high %v2459, %v2459
        %v2468 = vcombine.high %v2466, %v2466
        %v2470 = vunpack.c.l.s4 1966171168
        %v2471 = vunpack.c.0.s8 %v2470
        %v2472 = vlaneseq
        %v2473 = vshrl.u32 %v2472, 7
        %v2474 = vsub.s32 %v2471, %v2473
        %v2475 = vrot.slane %v2232, %v2474
        %v2476 = vcombine.high %v2475, %v2475
        %v2478 = vunpack.c.l.s4 1966171168
        %v2479 = vunpack.c.0.s8 %v2478
        %v2480 = vlaneseq
        %v2481 = vshrl.u32 %v2480, 7
        %v2482 = vsub.s32 %v2479, %v2481
        %v2483 = vrot.slane %v2475, %v2482
        %v2485 = vunpack.c.l.s4 1966171168
        %v2486 = vunpack.c.0.s8 %v2485
        %v2487 = vlaneseq
        %v2488 = vshrl.u32 %v2487, 7
        %v2489 = vsub.s32 %v2486, %v2488
        %v2490 = vrot.slane %v2476, %v2489
        %v2491 = vcombine.high %v2483, %v2483
        %v2492 = vcombine.high %v2490, %v2490
        %v2494 = vunpack.c.l.s4 1966171168
        %v2495 = vunpack.c.0.s8 %v2494
        %v2496 = vlaneseq
        %v2497 = vshrl.u32 %v2496, 7
        %v2498 = vsub.s32 %v2495, %v2497
        %v2499 = vrot.slane %v2233, %v2498
        %v2500 = vcombine.high %v2499, %v2499
        %v2502 = vunpack.c.l.s4 1966171168
        %v2503 = vunpack.c.0.s8 %v2502
        %v2504 = vlaneseq
        %v2505 = vshrl.u32 %v2504, 7
        %v2506 = vsub.s32 %v2503, %v2505
        %v2507 = vrot.slane %v2499, %v2506
        %v2509 = vunpack.c.l.s4 1966171168
        %v2510 = vunpack.c.0.s8 %v2509
        %v2511 = vlaneseq
        %v2512 = vshrl.u32 %v2511, 7
        %v2513 = vsub.s32 %v2510, %v2512
        %v2514 = vrot.slane %v2500, %v2513
        %v2515 = vcombine.high %v2507, %v2507
        %v2516 = vcombine.high %v2514, %v2514
        %v2518 = vunpack.c.l.s4 1966171168
        %v2519 = vunpack.c.0.s8 %v2518
        %v2520 = vlaneseq
        %v2521 = vshrl.u32 %v2520, 7
        %v2522 = vsub.s32 %v2519, %v2521
        %v2523 = vrot.slane %v2234, %v2522
        %v2524 = vcombine.high %v2523, %v2523
        %v2526 = vunpack.c.l.s4 1966171168
        %v2527 = vunpack.c.0.s8 %v2526
        %v2528 = vlaneseq
        %v2529 = vshrl.u32 %v2528, 7
        %v2530 = vsub.s32 %v2527, %v2529
        %v2531 = vrot.slane %v2523, %v2530
        %v2533 = vunpack.c.l.s4 1966171168
        %v2534 = vunpack.c.0.s8 %v2533
        %v2535 = vlaneseq
        %v2536 = vshrl.u32 %v2535, 7
        %v2537 = vsub.s32 %v2534, %v2536
        %v2538 = vrot.slane %v2524, %v2537
        %v2539 = vcombine.high %v2531, %v2531
        %v2540 = vcombine.high %v2538, %v2538
        %v2542 = vunpack.c.l.s4 1966171168
        %v2543 = vunpack.c.0.s8 %v2542
        %v2544 = vlaneseq
        %v2545 = vshrl.u32 %v2544, 7
        %v2546 = vsub.s32 %v2543, %v2545
        %v2547 = vrot.slane %v2235, %v2546
        %v2548 = vcombine.high %v2547, %v2547
        %v2550 = vunpack.c.l.s4 1966171168
        %v2551 = vunpack.c.0.s8 %v2550
        %v2552 = vlaneseq
        %v2553 = vshrl.u32 %v2552, 7
        %v2554 = vsub.s32 %v2551, %v2553
        %v2555 = vrot.slane %v2547, %v2554
        %v2557 = vunpack.c.l.s4 1966171168
        %v2558 = vunpack.c.0.s8 %v2557
        %v2559 = vlaneseq
        %v2560 = vshrl.u32 %v2559, 7
        %v2561 = vsub.s32 %v2558, %v2560
        %v2562 = vrot.slane %v2548, %v2561
        %v2563 = vcombine.high %v2555, %v2555
        %v2564 = vcombine.high %v2562, %v2562
        %v2566 = vunpack.c.l.s4 1966171168
        %v2567 = vunpack.c.0.s8 %v2566
        %v2568 = vlaneseq
        %v2569 = vshrl.u32 %v2568, 7
        %v2570 = vsub.s32 %v2567, %v2569
        %v2571 = vrot.slane %v2236, %v2570
        %v2572 = vcombine.high %v2571, %v2571
        %v2574 = vunpack.c.l.s4 1966171168
        %v2575 = vunpack.c.0.s8 %v2574
        %v2576 = vlaneseq
        %v2577 = vshrl.u32 %v2576, 7
        %v2578 = vsub.s32 %v2575, %v2577
        %v2579 = vrot.slane %v2571, %v2578
        %v2581 = vunpack.c.l.s4 1966171168
        %v2582 = vunpack.c.0.s8 %v2581
        %v2583 = vlaneseq
        %v2584 = vshrl.u32 %v2583, 7
        %v2585 = vsub.s32 %v2582, %v2584
        %v2586 = vrot.slane %v2572, %v2585
        %v2587 = vcombine.high %v2579, %v2579
        %v2588 = vcombine.high %v2586, %v2586
        %v2590 = vunpack.c.l.s4 1966171168
        %v2591 = vunpack.c.0.s8 %v2590
        %v2592 = vlaneseq
        %v2593 = vshrl.u32 %v2592, 7
        %v2594 = vsub.s32 %v2591, %v2593
        %v2595 = vrot.slane %v2237, %v2594
        %v2596 = vcombine.high %v2595, %v2595
        %v2598 = vunpack.c.l.s4 1966171168
        %v2599 = vunpack.c.0.s8 %v2598
        %v2600 = vlaneseq
        %v2601 = vshrl.u32 %v2600, 7
        %v2602 = vsub.s32 %v2599, %v2601
        %v2603 = vrot.slane %v2595, %v2602
        %v2605 = vunpack.c.l.s4 1966171168
        %v2606 = vunpack.c.0.s8 %v2605
        %v2607 = vlaneseq
        %v2608 = vshrl.u32 %v2607, 7
        %v2609 = vsub.s32 %v2606, %v2608
        %v2610 = vrot.slane %v2596, %v2609
        %v2611 = vcombine.high %v2603, %v2603
        %v2612 = vcombine.high %v2610, %v2610
        %v2613 = vunpack.i.h.s16 %v2267
        %v2614 = vunpack.i.l.s16 %v2274
        %v2615 = vunpack.i.h.s16 %v2274
        %v2616 = vunpack.i.l.s16 %v2275
        %v2617 = vunpack.i.h.s16 %v2275
        %v2618 = vunpack.i.l.s16 %v2276
        %v2619 = vunpack.i.h.s16 %v2276
        %v2620 = vunpack.i.h.s16 %v2291
        %v2621 = vunpack.i.l.s16 %v2298
        %v2622 = vunpack.i.h.s16 %v2298
        %v2623 = vunpack.i.l.s16 %v2299
        %v2624 = vunpack.i.h.s16 %v2299
        %v2625 = vunpack.i.l.s16 %v2300
        %v2626 = vunpack.i.h.s16 %v2300
        %v2627 = vunpack.i.h.s16 %v2315
        %v2628 = vunpack.i.l.s16 %v2322
        %v2629 = vunpack.i.h.s16 %v2322
        %v2630 = vunpack.i.l.s16 %v2323
        %v2631 = vunpack.i.h.s16 %v2323
        %v2632 = vunpack.i.l.s16 %v2324
        %v2633 = vunpack.i.h.s16 %v2324
        %v2634 = vunpack.i.h.s16 %v2339
        %v2635 = vunpack.i.l.s16 %v2346
        %v2636 = vunpack.i.h.s16 %v2346
        %v2637 = vunpack.i.l.s16 %v2347
        %v2638 = vunpack.i.h.s16 %v2347
        %v2639 = vunpack.i.l.s16 %v2348
        %v2640 = vunpack.i.h.s16 %v2348
        %v2641 = vunpack.i.h.s16 %v2363
        %v2642 = vunpack.i.l.s16 %v2370
        %v2643 = vunpack.i.h.s16 %v2370
        %v2644 = vunpack.i.l.s16 %v2371
        %v2645 = vunpack.i.h.s16 %v2371
        %v2646 = vunpack.i.l.s16 %v2372
        %v2647 = vunpack.i.h.s16 %v2372
        %v2648 = vunpack.i.h.s16 %v2387
        %v2649 = vunpack.i.l.s16 %v2394
        %v2650 = vunpack.i.h.s16 %v2394
        %v2651 = vunpack.i.l.s16 %v2395
        %v2652 = vunpack.i.h.s16 %v2395
        %v2653 = vunpack.i.l.s16 %v2396
        %v2654 = vunpack.i.h.s16 %v2396
        %v2655 = vunpack.i.h.s16 %v2411
        %v2656 = vunpack.i.l.s16 %v2418
        %v2657 = vunpack.i.h.s16 %v2418
        %v2658 = vunpack.i.l.s16 %v2419
        %v2659 = vunpack.i.h.s16 %v2419
        %v2660 = vunpack.i.l.s16 %v2420
        %v2661 = vunpack.i.h.s16 %v2420
        %v2662 = vunpack.i.h.s16 %v2435
        %v2663 = vunpack.i.l.s16 %v2442
        %v2664 = vunpack.i.h.s16 %v2442
        %v2665 = vunpack.i.l.s16 %v2443
        %v2666 = vunpack.i.h.s16 %v2443
        %v2667 = vunpack.i.l.s16 %v2444
        %v2668 = vunpack.i.h.s16 %v2444
        %v2669 = vunpack.i.h.s16 %v2459
        %v2670 = vunpack.i.l.s16 %v2466
        %v2671 = vunpack.i.h.s16 %v2466
        %v2672 = vunpack.i.l.s16 %v2467
        %v2673 = vunpack.i.h.s16 %v2467
        %v2674 = vunpack.i.l.s16 %v2468
        %v2675 = vunpack.i.h.s16 %v2468
        %v2676 = vunpack.i.h.s16 %v2483
        %v2677 = vunpack.i.l.s16 %v2490
        %v2678 = vunpack.i.h.s16 %v2490
        %v2679 = vunpack.i.l.s16 %v2491
        %v2680 = vunpack.i.h.s16 %v2491
        %v2681 = vunpack.i.l.s16 %v2492
        %v2682 = vunpack.i.h.s16 %v2492
        %v2683 = vunpack.i.h.s16 %v2507
        %v2684 = vunpack.i.l.s16 %v2514
        %v2685 = vunpack.i.h.s16 %v2514
        %v2686 = vunpack.i.l.s16 %v2515
        %v2687 = vunpack.i.h.s16 %v2515
        %v2688 = vunpack.i.l.s16 %v2516
        %v2689 = vunpack.i.h.s16 %v2516
        %v2690 = vunpack.i.h.s16 %v2531
        %v2691 = vunpack.i.l.s16 %v2538
        %v2692 = vunpack.i.h.s16 %v2538
        %v2693 = vunpack.i.l.s16 %v2539
        %v2694 = vunpack.i.h.s16 %v2539
        %v2695 = vunpack.i.l.s16 %v2540
        %v2696 = vunpack.i.h.s16 %v2540
        %v2697 = vunpack.i.h.s16 %v2555
        %v2698 = vunpack.i.l.s16 %v2562
        %v2699 = vunpack.i.h.s16 %v2562
        %v2700 = vunpack.i.l.s16 %v2563
        %v2701 = vunpack.i.h.s16 %v2563
        %v2702 = vunpack.i.l.s16 %v2564
        %v2703 = vunpack.i.h.s16 %v2564
        %v2704 = vunpack.i.h.s16 %v2579
        %v2705 = vunpack.i.l.s16 %v2586
        %v2706 = vunpack.i.h.s16 %v2586
        %v2707 = vunpack.i.l.s16 %v2587
        %v2708 = vunpack.i.h.s16 %v2587
        %v2709 = vunpack.i.l.s16 %v2588
        %v2710 = vunpack.i.h.s16 %v2588
        %v2711 = vunpack.i.h.s16 %v2603
        %v2712 = vunpack.i.l.s16 %v2610
        %v2713 = vunpack.i.h.s16 %v2610
        %v2714 = vunpack.i.l.s16 %v2611
        %v2715 = vunpack.i.h.s16 %v2611
        %v2716 = vunpack.i.l.s16 %v2612
        %v2717 = vunpack.i.h.s16 %v2612
        %s2718 = scalar_lea.vmem %s2, 4
        %v2719 = vld [vmem:[%s2718] sm:$0x3]
        %v2720 = vpack.i.b16 %v2614, %v2613
        %v2721 = vpack.i.b16 %v2616, %v2615
        %v2722 = vpack.i.b16 %v2618, %v2617
        %v2723 = vpack.i.b16 %v2620, %v2619
        %v2724 = vpack.i.b16 %v2622, %v2621
        %v2725 = vpack.i.b16 %v2624, %v2623
        %v2726 = vpack.i.b16 %v2626, %v2625
        %v2727 = vpack.i.b16 %v2628, %v2627
        %v2728 = vpack.i.b16 %v2630, %v2629
        %v2729 = vpack.i.b16 %v2632, %v2631
        %v2730 = vpack.i.b16 %v2634, %v2633
        %v2731 = vpack.i.b16 %v2636, %v2635
        %v2732 = vpack.i.b16 %v2638, %v2637
        %v2733 = vpack.i.b16 %v2640, %v2639
        %v2734 = vpack.i.b16 %v2642, %v2641
        %v2735 = vpack.i.b16 %v2644, %v2643
        %v2736 = vpack.i.b16 %v2646, %v2645
        %v2737 = vpack.i.b16 %v2648, %v2647
        %v2738 = vpack.i.b16 %v2650, %v2649
        %v2739 = vpack.i.b16 %v2652, %v2651
        %v2740 = vpack.i.b16 %v2654, %v2653
        %v2741 = vpack.i.b16 %v2656, %v2655
        %v2742 = vpack.i.b16 %v2658, %v2657
        %v2743 = vpack.i.b16 %v2660, %v2659
        %v2744 = vpack.i.b16 %v2662, %v2661
        %v2745 = vpack.i.b16 %v2664, %v2663
        %v2746 = vpack.i.b16 %v2666, %v2665
        %v2747 = vpack.i.b16 %v2668, %v2667
        %v2748 = vpack.i.b16 %v2670, %v2669
        %v2749 = vpack.i.b16 %v2672, %v2671
        %v2750 = vpack.i.b16 %v2674, %v2673
        %v2751 = vpack.i.b16 %v2676, %v2675
        %v2752 = vpack.i.b16 %v2678, %v2677
        %v2753 = vpack.i.b16 %v2680, %v2679
        %v2754 = vpack.i.b16 %v2682, %v2681
        %v2755 = vpack.i.b16 %v2684, %v2683
        %v2756 = vpack.i.b16 %v2686, %v2685
        %v2757 = vpack.i.b16 %v2688, %v2687
        %v2758 = vpack.i.b16 %v2690, %v2689
        %v2759 = vpack.i.b16 %v2692, %v2691
        %v2760 = vpack.i.b16 %v2694, %v2693
        %v2761 = vpack.i.b16 %v2696, %v2695
        %v2762 = vpack.i.b16 %v2698, %v2697
        %v2763 = vpack.i.b16 %v2700, %v2699
        %v2764 = vpack.i.b16 %v2702, %v2701
        %v2765 = vpack.i.b16 %v2704, %v2703
        %v2766 = vpack.i.b16 %v2706, %v2705
        %v2767 = vpack.i.b16 %v2708, %v2707
        %v2768 = vpack.i.b16 %v2710, %v2709
        %v2769 = vpack.i.b16 %v2712, %v2711
        %v2770 = vpack.i.b16 %v2714, %v2713
        %v2771 = vpack.i.b16 %v2716, %v2715
        %v2773 = vcombine.low %v2720, %v2721
        %v2774 = vcombine.low %v2722, %v2723
        %v2775 = vcombine.low %v2724, %v2725
        %v2776 = vcombine.low %v2726, %v2727
        %v2778 = vunpack.c.l.s4 1966171168
        %v2779 = vunpack.c.0.s8 %v2778
        %v2780 = vlaneseq
        %v2781 = vshrl.u32 %v2780, 7
        %v2782 = vsub.s32 %v2779, %v2781
        %v2783 = vrot.slane %v2773, %v2782
        %v2785 = vunpack.c.l.s4 1966171168
        %v2786 = vunpack.c.0.s8 %v2785
        %v2787 = vlaneseq
        %v2788 = vshrl.u32 %v2787, 7
        %v2789 = vsub.s32 %v2786, %v2788
        %v2790 = vrot.slane %v2774, %v2789
        %v2792 = vunpack.c.l.s4 1966171168
        %v2793 = vunpack.c.0.s8 %v2792
        %v2794 = vlaneseq
        %v2795 = vshrl.u32 %v2794, 7
        %v2796 = vsub.s32 %v2793, %v2795
        %v2797 = vrot.slane %v2775, %v2796
        %v2799 = vunpack.c.l.s4 1966171168
        %v2800 = vunpack.c.0.s8 %v2799
        %v2801 = vlaneseq
        %v2802 = vshrl.u32 %v2801, 7
        %v2803 = vsub.s32 %v2800, %v2802
        %v2804 = vrot.slane %v2776, %v2803
        %v2805 = vcombine.low %v2783, %v2790
        %v2806 = vcombine.low %v2797, %v2804
        %v2808 = vunpack.c.l.s4 1966171168
        %v2809 = vunpack.c.0.s8 %v2808
        %v2810 = vlaneseq
        %v2811 = vshrl.u32 %v2810, 7
        %v2812 = vsub.s32 %v2809, %v2811
        %v2813 = vrot.slane %v2805, %v2812
        %v2815 = vunpack.c.l.s4 1966171168
        %v2816 = vunpack.c.0.s8 %v2815
        %v2817 = vlaneseq
        %v2818 = vshrl.u32 %v2817, 7
        %v2819 = vsub.s32 %v2816, %v2818
        %v2820 = vrot.slane %v2806, %v2819
        %v2821 = vcombine.low %v2813, %v2820
        %v2822 = vcombine.low %v2728, %v2729
        %v2823 = vcombine.low %v2730, %v2731
        %v2824 = vcombine.low %v2732, %v2733
        %v2825 = vcombine.low %v2734, %v2735
        %v2827 = vunpack.c.l.s4 1966171168
        %v2828 = vunpack.c.0.s8 %v2827
        %v2829 = vlaneseq
        %v2830 = vshrl.u32 %v2829, 7
        %v2831 = vsub.s32 %v2828, %v2830
        %v2832 = vrot.slane %v2822, %v2831
        %v2834 = vunpack.c.l.s4 1966171168
        %v2835 = vunpack.c.0.s8 %v2834
        %v2836 = vlaneseq
        %v2837 = vshrl.u32 %v2836, 7
        %v2838 = vsub.s32 %v2835, %v2837
        %v2839 = vrot.slane %v2823, %v2838
        %v2841 = vunpack.c.l.s4 1966171168
        %v2842 = vunpack.c.0.s8 %v2841
        %v2843 = vlaneseq
        %v2844 = vshrl.u32 %v2843, 7
        %v2845 = vsub.s32 %v2842, %v2844
        %v2846 = vrot.slane %v2824, %v2845
        %v2848 = vunpack.c.l.s4 1966171168
        %v2849 = vunpack.c.0.s8 %v2848
        %v2850 = vlaneseq
        %v2851 = vshrl.u32 %v2850, 7
        %v2852 = vsub.s32 %v2849, %v2851
        %v2853 = vrot.slane %v2825, %v2852
        %v2854 = vcombine.low %v2832, %v2839
        %v2855 = vcombine.low %v2846, %v2853
        %v2857 = vunpack.c.l.s4 1966171168
        %v2858 = vunpack.c.0.s8 %v2857
        %v2859 = vlaneseq
        %v2860 = vshrl.u32 %v2859, 7
        %v2861 = vsub.s32 %v2858, %v2860
        %v2862 = vrot.slane %v2854, %v2861
        %v2864 = vunpack.c.l.s4 1966171168
        %v2865 = vunpack.c.0.s8 %v2864
        %v2866 = vlaneseq
        %v2867 = vshrl.u32 %v2866, 7
        %v2868 = vsub.s32 %v2865, %v2867
        %v2869 = vrot.slane %v2855, %v2868
        %v2870 = vcombine.low %v2862, %v2869
        %v2871 = vcombine.low %v2736, %v2737
        %v2872 = vcombine.low %v2738, %v2739
        %v2873 = vcombine.low %v2740, %v2741
        %v2874 = vcombine.low %v2742, %v2743
        %v2876 = vunpack.c.l.s4 1966171168
        %v2877 = vunpack.c.0.s8 %v2876
        %v2878 = vlaneseq
        %v2879 = vshrl.u32 %v2878, 7
        %v2880 = vsub.s32 %v2877, %v2879
        %v2881 = vrot.slane %v2871, %v2880
        %v2883 = vunpack.c.l.s4 1966171168
        %v2884 = vunpack.c.0.s8 %v2883
        %v2885 = vlaneseq
        %v2886 = vshrl.u32 %v2885, 7
        %v2887 = vsub.s32 %v2884, %v2886
        %v2888 = vrot.slane %v2872, %v2887
        %v2890 = vunpack.c.l.s4 1966171168
        %v2891 = vunpack.c.0.s8 %v2890
        %v2892 = vlaneseq
        %v2893 = vshrl.u32 %v2892, 7
        %v2894 = vsub.s32 %v2891, %v2893
        %v2895 = vrot.slane %v2873, %v2894
        %v2897 = vunpack.c.l.s4 1966171168
        %v2898 = vunpack.c.0.s8 %v2897
        %v2899 = vlaneseq
        %v2900 = vshrl.u32 %v2899, 7
        %v2901 = vsub.s32 %v2898, %v2900
        %v2902 = vrot.slane %v2874, %v2901
        %v2903 = vcombine.low %v2881, %v2888
        %v2904 = vcombine.low %v2895, %v2902
        %v2906 = vunpack.c.l.s4 1966171168
        %v2907 = vunpack.c.0.s8 %v2906
        %v2908 = vlaneseq
        %v2909 = vshrl.u32 %v2908, 7
        %v2910 = vsub.s32 %v2907, %v2909
        %v2911 = vrot.slane %v2903, %v2910
        %v2913 = vunpack.c.l.s4 1966171168
        %v2914 = vunpack.c.0.s8 %v2913
        %v2915 = vlaneseq
        %v2916 = vshrl.u32 %v2915, 7
        %v2917 = vsub.s32 %v2914, %v2916
        %v2918 = vrot.slane %v2904, %v2917
        %v2919 = vcombine.low %v2911, %v2918
        %v2920 = vcombine.low %v2744, %v2745
        %v2921 = vcombine.low %v2746, %v2747
        %v2922 = vcombine.low %v2748, %v2749
        %v2923 = vcombine.low %v2750, %v2751
        %v2925 = vunpack.c.l.s4 1966171168
        %v2926 = vunpack.c.0.s8 %v2925
        %v2927 = vlaneseq
        %v2928 = vshrl.u32 %v2927, 7
        %v2929 = vsub.s32 %v2926, %v2928
        %v2930 = vrot.slane %v2920, %v2929
        %v2932 = vunpack.c.l.s4 1966171168
        %v2933 = vunpack.c.0.s8 %v2932
        %v2934 = vlaneseq
        %v2935 = vshrl.u32 %v2934, 7
        %v2936 = vsub.s32 %v2933, %v2935
        %v2937 = vrot.slane %v2921, %v2936
        %v2939 = vunpack.c.l.s4 1966171168
        %v2940 = vunpack.c.0.s8 %v2939
        %v2941 = vlaneseq
        %v2942 = vshrl.u32 %v2941, 7
        %v2943 = vsub.s32 %v2940, %v2942
        %v2944 = vrot.slane %v2922, %v2943
        %v2946 = vunpack.c.l.s4 1966171168
        %v2947 = vunpack.c.0.s8 %v2946
        %v2948 = vlaneseq
        %v2949 = vshrl.u32 %v2948, 7
        %v2950 = vsub.s32 %v2947, %v2949
        %v2951 = vrot.slane %v2923, %v2950
        %v2952 = vcombine.low %v2930, %v2937
        %v2953 = vcombine.low %v2944, %v2951
        %v2955 = vunpack.c.l.s4 1966171168
        %v2956 = vunpack.c.0.s8 %v2955
        %v2957 = vlaneseq
        %v2958 = vshrl.u32 %v2957, 7
        %v2959 = vsub.s32 %v2956, %v2958
        %v2960 = vrot.slane %v2952, %v2959
        %v2962 = vunpack.c.l.s4 1966171168
        %v2963 = vunpack.c.0.s8 %v2962
        %v2964 = vlaneseq
        %v2965 = vshrl.u32 %v2964, 7
        %v2966 = vsub.s32 %v2963, %v2965
        %v2967 = vrot.slane %v2953, %v2966
        %v2968 = vcombine.low %v2960, %v2967
        %v2969 = vcombine.low %v2752, %v2753
        %v2970 = vcombine.low %v2754, %v2755
        %v2971 = vcombine.low %v2756, %v2757
        %v2972 = vcombine.low %v2758, %v2759
        %v2974 = vunpack.c.l.s4 1966171168
        %v2975 = vunpack.c.0.s8 %v2974
        %v2976 = vlaneseq
        %v2977 = vshrl.u32 %v2976, 7
        %v2978 = vsub.s32 %v2975, %v2977
        %v2979 = vrot.slane %v2969, %v2978
        %v2981 = vunpack.c.l.s4 1966171168
        %v2982 = vunpack.c.0.s8 %v2981
        %v2983 = vlaneseq
        %v2984 = vshrl.u32 %v2983, 7
        %v2985 = vsub.s32 %v2982, %v2984
        %v2986 = vrot.slane %v2970, %v2985
        %v2988 = vunpack.c.l.s4 1966171168
        %v2989 = vunpack.c.0.s8 %v2988
        %v2990 = vlaneseq
        %v2991 = vshrl.u32 %v2990, 7
        %v2992 = vsub.s32 %v2989, %v2991
        %v2993 = vrot.slane %v2971, %v2992
        %v2995 = vunpack.c.l.s4 1966171168
        %v2996 = vunpack.c.0.s8 %v2995
        %v2997 = vlaneseq
        %v2998 = vshrl.u32 %v2997, 7
        %v2999 = vsub.s32 %v2996, %v2998
        %v3000 = vrot.slane %v2972, %v2999
        %v3001 = vcombine.low %v2979, %v2986
        %v3002 = vcombine.low %v2993, %v3000
        %v3004 = vunpack.c.l.s4 1966171168
        %v3005 = vunpack.c.0.s8 %v3004
        %v3006 = vlaneseq
        %v3007 = vshrl.u32 %v3006, 7
        %v3008 = vsub.s32 %v3005, %v3007
        %v3009 = vrot.slane %v3001, %v3008
        %v3011 = vunpack.c.l.s4 1966171168
        %v3012 = vunpack.c.0.s8 %v3011
        %v3013 = vlaneseq
        %v3014 = vshrl.u32 %v3013, 7
        %v3015 = vsub.s32 %v3012, %v3014
        %v3016 = vrot.slane %v3002, %v3015
        %v3017 = vcombine.low %v3009, %v3016
        %v3018 = vcombine.low %v2760, %v2761
        %v3019 = vcombine.low %v2762, %v2763
        %v3020 = vcombine.low %v2764, %v2765
        %v3021 = vcombine.low %v2766, %v2767
        %v3023 = vunpack.c.l.s4 1966171168
        %v3024 = vunpack.c.0.s8 %v3023
        %v3025 = vlaneseq
        %v3026 = vshrl.u32 %v3025, 7
        %v3027 = vsub.s32 %v3024, %v3026
        %v3028 = vrot.slane %v3018, %v3027
        %v3030 = vunpack.c.l.s4 1966171168
        %v3031 = vunpack.c.0.s8 %v3030
        %v3032 = vlaneseq
        %v3033 = vshrl.u32 %v3032, 7
        %v3034 = vsub.s32 %v3031, %v3033
        %v3035 = vrot.slane %v3019, %v3034
        %v3037 = vunpack.c.l.s4 1966171168
        %v3038 = vunpack.c.0.s8 %v3037
        %v3039 = vlaneseq
        %v3040 = vshrl.u32 %v3039, 7
        %v3041 = vsub.s32 %v3038, %v3040
        %v3042 = vrot.slane %v3020, %v3041
        %v3044 = vunpack.c.l.s4 1966171168
        %v3045 = vunpack.c.0.s8 %v3044
        %v3046 = vlaneseq
        %v3047 = vshrl.u32 %v3046, 7
        %v3048 = vsub.s32 %v3045, %v3047
        %v3049 = vrot.slane %v3021, %v3048
        %v3050 = vcombine.low %v3028, %v3035
        %v3051 = vcombine.low %v3042, %v3049
        %v3053 = vunpack.c.l.s4 1966171168
        %v3054 = vunpack.c.0.s8 %v3053
        %v3055 = vlaneseq
        %v3056 = vshrl.u32 %v3055, 7
        %v3057 = vsub.s32 %v3054, %v3056
        %v3058 = vrot.slane %v3050, %v3057
        %v3060 = vunpack.c.l.s4 1966171168
        %v3061 = vunpack.c.0.s8 %v3060
        %v3062 = vlaneseq
        %v3063 = vshrl.u32 %v3062, 7
        %v3064 = vsub.s32 %v3061, %v3063
        %v3065 = vrot.slane %v3051, %v3064
        %v3066 = vcombine.low %v3058, %v3065
        %v3067 = vcombine.low %v2768, %v2769
        %v3068 = vcombine.low %v2770, %v2771
        %v3070 = vunpack.c.l.s4 1966171168
        %v3071 = vunpack.c.0.s8 %v3070
        %v3072 = vlaneseq
        %v3073 = vshrl.u32 %v3072, 7
        %v3074 = vsub.s32 %v3071, %v3073
        %v3075 = vrot.slane %v3067, %v3074
        %v3077 = vunpack.c.l.s4 1966171168
        %v3078 = vunpack.c.0.s8 %v3077
        %v3079 = vlaneseq
        %v3080 = vshrl.u32 %v3079, 7
        %v3081 = vsub.s32 %v3078, %v3080
        %v3082 = vrot.slane %v3068, %v3081
        %v3084 = vunpack.c.l.s4 1966171168
        %v3085 = vunpack.c.0.s8 %v3084
        %v3086 = vlaneseq
        %v3087 = vshrl.u32 %v3086, 7
        %v3088 = vsub.s32 %v3085, %v3087
        %v3089 = vrot.slane %v2717, %v3088
        %v3090 = vcombine.low %v3075, %v3082
        %v3092 = vunpack.c.l.s4 1966171168
        %v3093 = vunpack.c.0.s8 %v3092
        %v3094 = vlaneseq
        %v3095 = vshrl.u32 %v3094, 7
        %v3096 = vsub.s32 %v3093, %v3095
        %v3097 = vrot.slane %v3090, %v3096
        %v3099 = vunpack.c.l.s4 1966171168
        %v3100 = vunpack.c.0.s8 %v3099
        %v3101 = vlaneseq
        %v3102 = vshrl.u32 %v3101, 7
        %v3103 = vsub.s32 %v3100, %v3102
        %v3104 = vrot.slane %v3089, %v3103
        %v3105 = vcombine.low %v3097, %v3104
        %v3107 = vsel %vm1609, %v2821, 0
        %v3110 = vsel %vm1609, %v2870, 0
        %v3113 = vsel %vm1609, %v2919, 0
        %v3116 = vsel %vm1609, %v2968, 0
        %v3119 = vsel %vm1609, %v3017, 0
        %v3122 = vsel %vm1609, %v3066, 0
        %v3125 = vsel %vm1609, %v3105, 0
        %v3128 = vsel %vm1631, %v2719, 0
        %3130 = vmatprep.subr.bf16.mxu0 0
        %3131 = vmatpush1.bf16.msra.mxu0 %v3128
        %3132 = vmatprep.subr.bf16.mxu0 0
        %3133 = vmatpush1.bf16.msra.mxu0 0
        %3134 = vmatprep.subr.bf16.mxu0 0
        %3135 = vmatpush1.bf16.msra.mxu0 0
        %3136 = vmatprep.subr.bf16.mxu0 0
        %3137 = vmatpush1.bf16.msra.mxu0 0
        %3138 = vmatprep.subr.bf16.mxu0 0
        %3139 = vmatpush1.bf16.msra.mxu0 0
        %3140 = vmatprep.subr.bf16.mxu0 0
        %3141 = vmatpush1.bf16.msra.mxu0 0
        %3142 = vmatprep.subr.bf16.mxu0 0
        %3143 = vmatpush1.bf16.msra.mxu0 0
        %3144 = vmatprep.subr.bf16.mxu0 0
        %3145 = vmatpush1.bf16.msra.mxu0 0
        %3146 = vmatprep.subr.bf16.mxu0 0
        %3147 = vmatpush1.bf16.msra.mxu0 0
        %3148 = vmatprep.subr.bf16.mxu0 0
        %3149 = vmatpush1.bf16.msra.mxu0 0
        %3150 = vmatprep.subr.bf16.mxu0 0
        %3151 = vmatpush1.bf16.msra.mxu0 0
        %3152 = vmatprep.subr.bf16.mxu0 0
        %3153 = vmatpush1.bf16.msra.mxu0 0
        %3154 = vmatprep.subr.bf16.mxu0 0
        %3155 = vmatpush1.bf16.msra.mxu0 0
        %3156 = vmatprep.subr.bf16.mxu0 0
        %3157 = vmatpush1.bf16.msra.mxu0 0
        %3158 = vmatprep.subr.bf16.mxu0 0
        %3159 = vmatpush1.bf16.msra.mxu0 0
        %3160 = vmatprep.subr.bf16.mxu0 0
        %3161 = vmatpush1.bf16.msra.mxu0 0
        %3162 = vmatprep.mubr.bf16.mxu0 0
        %3163 = vmatmul.mubr.bf16.gmra.mrb[0].mxu0 %v3107
        %v3164 = vpop.f32.mrb[0].mxu0
        %v3165 = vadd.f32 0.0, %v3164
        %v3166 = vpop.f32.mrb[0].mxu0
        %v3167 = vpop.f32.mrb[0].mxu0
        %v3168 = vadd.f32 0.0, %v3167
        %v3169 = vpop.f32.mrb[0].mxu0
        %3170 = vmatprep.mubr.bf16.mxu0 0
        %3171 = vmatmul.mubr.bf16.gmra.mrb[0].mxu0 %v3110
        %v3172 = vpop.f32.mrb[0].mxu0
        %v3173 = vadd.f32 0.0, %v3172
        %v3174 = vpop.f32.mrb[0].mxu0
        %v3175 = vpop.f32.mrb[0].mxu0
        %v3176 = vadd.f32 0.0, %v3175
        %v3177 = vpop.f32.mrb[0].mxu0
        %3178 = vmatprep.mubr.bf16.mxu0 0
        %3179 = vmatmul.mubr.bf16.gmra.mrb[0].mxu0 %v3113
        %v3180 = vpop.f32.mrb[0].mxu0
        %v3181 = vadd.f32 0.0, %v3180
        %v3182 = vpop.f32.mrb[0].mxu0
        %v3183 = vpop.f32.mrb[0].mxu0
        %v3184 = vadd.f32 0.0, %v3183
        %v3185 = vpop.f32.mrb[0].mxu0
        %3186 = vmatprep.mubr.bf16.mxu0 0
        %3187 = vmatmul.mubr.bf16.gmra.mrb[0].mxu0 %v3116
        %v3188 = vpop.f32.mrb[0].mxu0
        %v3189 = vadd.f32 0.0, %v3188
        %v3190 = vpop.f32.mrb[0].mxu0
        %v3191 = vpop.f32.mrb[0].mxu0
        %v3192 = vadd.f32 0.0, %v3191
        %v3193 = vpop.f32.mrb[0].mxu0
        %3194 = vmatprep.mubr.bf16.mxu0 0
        %3195 = vmatmul.mubr.bf16.gmra.mrb[0].mxu0 %v3119
        %v3196 = vpop.f32.mrb[0].mxu0
        %v3197 = vadd.f32 0.0, %v3196
        %v3198 = vpop.f32.mrb[0].mxu0
        %v3199 = vpop.f32.mrb[0].mxu0
        %v3200 = vadd.f32 0.0, %v3199
        %v3201 = vpop.f32.mrb[0].mxu0
        %3202 = vmatprep.mubr.bf16.mxu0 0
        %3203 = vmatmul.mubr.bf16.gmra.mrb[0].mxu0 %v3122
        %v3204 = vpop.f32.mrb[0].mxu0
        %v3205 = vadd.f32 0.0, %v3204
        %v3206 = vpop.f32.mrb[0].mxu0
        %v3207 = vpop.f32.mrb[0].mxu0
        %v3208 = vadd.f32 0.0, %v3207
        %v3209 = vpop.f32.mrb[0].mxu0
        %3210 = vmatprep.mubr.bf16.mxu0 0
        %3211 = vmatmul.mubr.bf16.gmra.mrb[0].mxu0 %v3125
        %v3212 = vpop.f32.mrb[0].mxu0
        %v3213 = vadd.f32 0.0, %v3212
        %v3214 = vpop.f32.mrb[0].mxu0
        %v3215 = vpop.f32.mrb[0].mxu0
        %v3216 = vadd.f32 0.0, %v3215
        %v3217 = vpop.f32.mrb[0].mxu0
        %3218 = vdwg.mxu0
        %v3219 = vadd.f32 %v2169, %v3165
        %v3220 = vadd.f32 %v2172, %v3168
        %v3221 = vadd.f32 %v2177, %v3173
        %v3222 = vadd.f32 %v2180, %v3176
        %v3223 = vadd.f32 %v2185, %v3181
        %v3224 = vadd.f32 %v2188, %v3184
        %v3225 = vadd.f32 %v2193, %v3189
        %v3226 = vadd.f32 %v2196, %v3192
        %v3227 = vadd.f32 %v2201, %v3197
        %v3228 = vadd.f32 %v2204, %v3200
        %v3229 = vadd.f32 %v2209, %v3205
        %v3230 = vadd.f32 %v2212, %v3208
        %v3231 = vadd.f32 %v2217, %v3213
        %v3232 = vadd.f32 %v2220, %v3216
        %s3233 = scalar_lea.vmem %s218, 4
        %v3234 = vld [vmem:[%s3233] sm:$0xf]
        %v3235 = vld [vmem:[%s3233 + $0x4] sm:$0xf]
        %v3236 = vld [vmem:[%s3233 + $0x8] sm:$0xf]
        %v3237 = vld [vmem:[%s3233 + $0xc] sm:$0xf]
        %v3238 = vld [vmem:[%s3233 + $0x10] sm:$0xf]
        %v3239 = vld [vmem:[%s3233 + $0x14] sm:$0xf]
        %v3240 = vld [vmem:[%s3233 + $0x18] sm:$0xf]
        %v3241 = vld [vmem:[%s3233 + $0x1c] sm:$0xf]
        %v3242 = vld [vmem:[%s3233 + $0x20] sm:$0xf]
        %v3243 = vld [vmem:[%s3233 + $0x24] sm:$0xf]
        %v3244 = vld [vmem:[%s3233 + $0x28] sm:$0xf]
        %v3245 = vld [vmem:[%s3233 + $0x2c] sm:$0xf]
        %v3246 = vld [vmem:[%s3233 + $0x30] sm:$0xf]
        %v3247 = vld [vmem:[%s3233 + $0x34] sm:$0xf]
        %v3248 = vld [vmem:[%s3233 + $0x38] sm:$0xf]
        %v3265 = vunpack.c.l.s4 1966171168
        %v3266 = vunpack.c.0.s8 %v3265
        %v3267 = vlaneseq
        %v3268 = vshrl.u32 %v3267, 7
        %v3269 = vsub.s32 %v3266, %v3268
        %v3270 = vrot.slane %v3234, %v3269
        %v3271 = vcombine.high %v3270, %v3270
        %v3273 = vunpack.c.l.s4 1966171168
        %v3274 = vunpack.c.0.s8 %v3273
        %v3275 = vlaneseq
        %v3276 = vshrl.u32 %v3275, 7
        %v3277 = vsub.s32 %v3274, %v3276
        %v3278 = vrot.slane %v3270, %v3277
        %v3280 = vunpack.c.l.s4 1966171168
        %v3281 = vunpack.c.0.s8 %v3280
        %v3282 = vlaneseq
        %v3283 = vshrl.u32 %v3282, 7
        %v3284 = vsub.s32 %v3281, %v3283
        %v3285 = vrot.slane %v3271, %v3284
        %v3286 = vcombine.high %v3278, %v3278
        %v3287 = vcombine.high %v3285, %v3285
        %v3289 = vunpack.c.l.s4 1966171168
        %v3290 = vunpack.c.0.s8 %v3289
        %v3291 = vlaneseq
        %v3292 = vshrl.u32 %v3291, 7
        %v3293 = vsub.s32 %v3290, %v3292
        %v3294 = vrot.slane %v3235, %v3293
        %v3295 = vcombine.high %v3294, %v3294
        %v3297 = vunpack.c.l.s4 1966171168
        %v3298 = vunpack.c.0.s8 %v3297
        %v3299 = vlaneseq
        %v3300 = vshrl.u32 %v3299, 7
        %v3301 = vsub.s32 %v3298, %v3300
        %v3302 = vrot.slane %v3294, %v3301
        %v3304 = vunpack.c.l.s4 1966171168
        %v3305 = vunpack.c.0.s8 %v3304
        %v3306 = vlaneseq
        %v3307 = vshrl.u32 %v3306, 7
        %v3308 = vsub.s32 %v3305, %v3307
        %v3309 = vrot.slane %v3295, %v3308
        %v3310 = vcombine.high %v3302, %v3302
        %v3311 = vcombine.high %v3309, %v3309
        %v3313 = vunpack.c.l.s4 1966171168
        %v3314 = vunpack.c.0.s8 %v3313
        %v3315 = vlaneseq
        %v3316 = vshrl.u32 %v3315, 7
        %v3317 = vsub.s32 %v3314, %v3316
        %v3318 = vrot.slane %v3236, %v3317
        %v3319 = vcombine.high %v3318, %v3318
        %v3321 = vunpack.c.l.s4 1966171168
        %v3322 = vunpack.c.0.s8 %v3321
        %v3323 = vlaneseq
        %v3324 = vshrl.u32 %v3323, 7
        %v3325 = vsub.s32 %v3322, %v3324
        %v3326 = vrot.slane %v3318, %v3325
        %v3328 = vunpack.c.l.s4 1966171168
        %v3329 = vunpack.c.0.s8 %v3328
        %v3330 = vlaneseq
        %v3331 = vshrl.u32 %v3330, 7
        %v3332 = vsub.s32 %v3329, %v3331
        %v3333 = vrot.slane %v3319, %v3332
        %v3334 = vcombine.high %v3326, %v3326
        %v3335 = vcombine.high %v3333, %v3333
        %v3337 = vunpack.c.l.s4 1966171168
        %v3338 = vunpack.c.0.s8 %v3337
        %v3339 = vlaneseq
        %v3340 = vshrl.u32 %v3339, 7
        %v3341 = vsub.s32 %v3338, %v3340
        %v3342 = vrot.slane %v3237, %v3341
        %v3343 = vcombine.high %v3342, %v3342
        %v3345 = vunpack.c.l.s4 1966171168
        %v3346 = vunpack.c.0.s8 %v3345
        %v3347 = vlaneseq
        %v3348 = vshrl.u32 %v3347, 7
        %v3349 = vsub.s32 %v3346, %v3348
        %v3350 = vrot.slane %v3342, %v3349
        %v3352 = vunpack.c.l.s4 1966171168
        %v3353 = vunpack.c.0.s8 %v3352
        %v3354 = vlaneseq
        %v3355 = vshrl.u32 %v3354, 7
        %v3356 = vsub.s32 %v3353, %v3355
        %v3357 = vrot.slane %v3343, %v3356
        %v3358 = vcombine.high %v3350, %v3350
        %v3359 = vcombine.high %v3357, %v3357
        %v3361 = vunpack.c.l.s4 1966171168
        %v3362 = vunpack.c.0.s8 %v3361
        %v3363 = vlaneseq
        %v3364 = vshrl.u32 %v3363, 7
        %v3365 = vsub.s32 %v3362, %v3364
        %v3366 = vrot.slane %v3238, %v3365
        %v3367 = vcombine.high %v3366, %v3366
        %v3369 = vunpack.c.l.s4 1966171168
        %v3370 = vunpack.c.0.s8 %v3369
        %v3371 = vlaneseq
        %v3372 = vshrl.u32 %v3371, 7
        %v3373 = vsub.s32 %v3370, %v3372
        %v3374 = vrot.slane %v3366, %v3373
        %v3376 = vunpack.c.l.s4 1966171168
        %v3377 = vunpack.c.0.s8 %v3376
        %v3378 = vlaneseq
        %v3379 = vshrl.u32 %v3378, 7
        %v3380 = vsub.s32 %v3377, %v3379
        %v3381 = vrot.slane %v3367, %v3380
        %v3382 = vcombine.high %v3374, %v3374
        %v3383 = vcombine.high %v3381, %v3381
        %v3385 = vunpack.c.l.s4 1966171168
        %v3386 = vunpack.c.0.s8 %v3385
        %v3387 = vlaneseq
        %v3388 = vshrl.u32 %v3387, 7
        %v3389 = vsub.s32 %v3386, %v3388
        %v3390 = vrot.slane %v3239, %v3389
        %v3391 = vcombine.high %v3390, %v3390
        %v3393 = vunpack.c.l.s4 1966171168
        %v3394 = vunpack.c.0.s8 %v3393
        %v3395 = vlaneseq
        %v3396 = vshrl.u32 %v3395, 7
        %v3397 = vsub.s32 %v3394, %v3396
        %v3398 = vrot.slane %v3390, %v3397
        %v3400 = vunpack.c.l.s4 1966171168
        %v3401 = vunpack.c.0.s8 %v3400
        %v3402 = vlaneseq
        %v3403 = vshrl.u32 %v3402, 7
        %v3404 = vsub.s32 %v3401, %v3403
        %v3405 = vrot.slane %v3391, %v3404
        %v3406 = vcombine.high %v3398, %v3398
        %v3407 = vcombine.high %v3405, %v3405
        %v3409 = vunpack.c.l.s4 1966171168
        %v3410 = vunpack.c.0.s8 %v3409
        %v3411 = vlaneseq
        %v3412 = vshrl.u32 %v3411, 7
        %v3413 = vsub.s32 %v3410, %v3412
        %v3414 = vrot.slane %v3240, %v3413
        %v3415 = vcombine.high %v3414, %v3414
        %v3417 = vunpack.c.l.s4 1966171168
        %v3418 = vunpack.c.0.s8 %v3417
        %v3419 = vlaneseq
        %v3420 = vshrl.u32 %v3419, 7
        %v3421 = vsub.s32 %v3418, %v3420
        %v3422 = vrot.slane %v3414, %v3421
        %v3424 = vunpack.c.l.s4 1966171168
        %v3425 = vunpack.c.0.s8 %v3424
        %v3426 = vlaneseq
        %v3427 = vshrl.u32 %v3426, 7
        %v3428 = vsub.s32 %v3425, %v3427
        %v3429 = vrot.slane %v3415, %v3428
        %v3430 = vcombine.high %v3422, %v3422
        %v3431 = vcombine.high %v3429, %v3429
        %v3433 = vunpack.c.l.s4 1966171168
        %v3434 = vunpack.c.0.s8 %v3433
        %v3435 = vlaneseq
        %v3436 = vshrl.u32 %v3435, 7
        %v3437 = vsub.s32 %v3434, %v3436
        %v3438 = vrot.slane %v3241, %v3437
        %v3439 = vcombine.high %v3438, %v3438
        %v3441 = vunpack.c.l.s4 1966171168
        %v3442 = vunpack.c.0.s8 %v3441
        %v3443 = vlaneseq
        %v3444 = vshrl.u32 %v3443, 7
        %v3445 = vsub.s32 %v3442, %v3444
        %v3446 = vrot.slane %v3438, %v3445
        %v3448 = vunpack.c.l.s4 1966171168
        %v3449 = vunpack.c.0.s8 %v3448
        %v3450 = vlaneseq
        %v3451 = vshrl.u32 %v3450, 7
        %v3452 = vsub.s32 %v3449, %v3451
        %v3453 = vrot.slane %v3439, %v3452
        %v3454 = vcombine.high %v3446, %v3446
        %v3455 = vcombine.high %v3453, %v3453
        %v3457 = vunpack.c.l.s4 1966171168
        %v3458 = vunpack.c.0.s8 %v3457
        %v3459 = vlaneseq
        %v3460 = vshrl.u32 %v3459, 7
        %v3461 = vsub.s32 %v3458, %v3460
        %v3462 = vrot.slane %v3242, %v3461
        %v3463 = vcombine.high %v3462, %v3462
        %v3465 = vunpack.c.l.s4 1966171168
        %v3466 = vunpack.c.0.s8 %v3465
        %v3467 = vlaneseq
        %v3468 = vshrl.u32 %v3467, 7
        %v3469 = vsub.s32 %v3466, %v3468
        %v3470 = vrot.slane %v3462, %v3469
        %v3472 = vunpack.c.l.s4 1966171168
        %v3473 = vunpack.c.0.s8 %v3472
        %v3474 = vlaneseq
        %v3475 = vshrl.u32 %v3474, 7
        %v3476 = vsub.s32 %v3473, %v3475
        %v3477 = vrot.slane %v3463, %v3476
        %v3478 = vcombine.high %v3470, %v3470
        %v3479 = vcombine.high %v3477, %v3477
        %v3481 = vunpack.c.l.s4 1966171168
        %v3482 = vunpack.c.0.s8 %v3481
        %v3483 = vlaneseq
        %v3484 = vshrl.u32 %v3483, 7
        %v3485 = vsub.s32 %v3482, %v3484
        %v3486 = vrot.slane %v3243, %v3485
        %v3487 = vcombine.high %v3486, %v3486
        %v3489 = vunpack.c.l.s4 1966171168
        %v3490 = vunpack.c.0.s8 %v3489
        %v3491 = vlaneseq
        %v3492 = vshrl.u32 %v3491, 7
        %v3493 = vsub.s32 %v3490, %v3492
        %v3494 = vrot.slane %v3486, %v3493
        %v3496 = vunpack.c.l.s4 1966171168
        %v3497 = vunpack.c.0.s8 %v3496
        %v3498 = vlaneseq
        %v3499 = vshrl.u32 %v3498, 7
        %v3500 = vsub.s32 %v3497, %v3499
        %v3501 = vrot.slane %v3487, %v3500
        %v3502 = vcombine.high %v3494, %v3494
        %v3503 = vcombine.high %v3501, %v3501
        %v3505 = vunpack.c.l.s4 1966171168
        %v3506 = vunpack.c.0.s8 %v3505
        %v3507 = vlaneseq
        %v3508 = vshrl.u32 %v3507, 7
        %v3509 = vsub.s32 %v3506, %v3508
        %v3510 = vrot.slane %v3244, %v3509
        %v3511 = vcombine.high %v3510, %v3510
        %v3513 = vunpack.c.l.s4 1966171168
        %v3514 = vunpack.c.0.s8 %v3513
        %v3515 = vlaneseq
        %v3516 = vshrl.u32 %v3515, 7
        %v3517 = vsub.s32 %v3514, %v3516
        %v3518 = vrot.slane %v3510, %v3517
        %v3520 = vunpack.c.l.s4 1966171168
        %v3521 = vunpack.c.0.s8 %v3520
        %v3522 = vlaneseq
        %v3523 = vshrl.u32 %v3522, 7
        %v3524 = vsub.s32 %v3521, %v3523
        %v3525 = vrot.slane %v3511, %v3524
        %v3526 = vcombine.high %v3518, %v3518
        %v3527 = vcombine.high %v3525, %v3525
        %v3529 = vunpack.c.l.s4 1966171168
        %v3530 = vunpack.c.0.s8 %v3529
        %v3531 = vlaneseq
        %v3532 = vshrl.u32 %v3531, 7
        %v3533 = vsub.s32 %v3530, %v3532
        %v3534 = vrot.slane %v3245, %v3533
        %v3535 = vcombine.high %v3534, %v3534
        %v3537 = vunpack.c.l.s4 1966171168
        %v3538 = vunpack.c.0.s8 %v3537
        %v3539 = vlaneseq
        %v3540 = vshrl.u32 %v3539, 7
        %v3541 = vsub.s32 %v3538, %v3540
        %v3542 = vrot.slane %v3534, %v3541
        %v3544 = vunpack.c.l.s4 1966171168
        %v3545 = vunpack.c.0.s8 %v3544
        %v3546 = vlaneseq
        %v3547 = vshrl.u32 %v3546, 7
        %v3548 = vsub.s32 %v3545, %v3547
        %v3549 = vrot.slane %v3535, %v3548
        %v3550 = vcombine.high %v3542, %v3542
        %v3551 = vcombine.high %v3549, %v3549
        %v3553 = vunpack.c.l.s4 1966171168
        %v3554 = vunpack.c.0.s8 %v3553
        %v3555 = vlaneseq
        %v3556 = vshrl.u32 %v3555, 7
        %v3557 = vsub.s32 %v3554, %v3556
        %v3558 = vrot.slane %v3246, %v3557
        %v3559 = vcombine.high %v3558, %v3558
        %v3561 = vunpack.c.l.s4 1966171168
        %v3562 = vunpack.c.0.s8 %v3561
        %v3563 = vlaneseq
        %v3564 = vshrl.u32 %v3563, 7
        %v3565 = vsub.s32 %v3562, %v3564
        %v3566 = vrot.slane %v3558, %v3565
        %v3568 = vunpack.c.l.s4 1966171168
        %v3569 = vunpack.c.0.s8 %v3568
        %v3570 = vlaneseq
        %v3571 = vshrl.u32 %v3570, 7
        %v3572 = vsub.s32 %v3569, %v3571
        %v3573 = vrot.slane %v3559, %v3572
        %v3574 = vcombine.high %v3566, %v3566
        %v3575 = vcombine.high %v3573, %v3573
        %v3577 = vunpack.c.l.s4 1966171168
        %v3578 = vunpack.c.0.s8 %v3577
        %v3579 = vlaneseq
        %v3580 = vshrl.u32 %v3579, 7
        %v3581 = vsub.s32 %v3578, %v3580
        %v3582 = vrot.slane %v3247, %v3581
        %v3583 = vcombine.high %v3582, %v3582
        %v3585 = vunpack.c.l.s4 1966171168
        %v3586 = vunpack.c.0.s8 %v3585
        %v3587 = vlaneseq
        %v3588 = vshrl.u32 %v3587, 7
        %v3589 = vsub.s32 %v3586, %v3588
        %v3590 = vrot.slane %v3582, %v3589
        %v3592 = vunpack.c.l.s4 1966171168
        %v3593 = vunpack.c.0.s8 %v3592
        %v3594 = vlaneseq
        %v3595 = vshrl.u32 %v3594, 7
        %v3596 = vsub.s32 %v3593, %v3595
        %v3597 = vrot.slane %v3583, %v3596
        %v3598 = vcombine.high %v3590, %v3590
        %v3599 = vcombine.high %v3597, %v3597
        %v3601 = vunpack.c.l.s4 1966171168
        %v3602 = vunpack.c.0.s8 %v3601
        %v3603 = vlaneseq
        %v3604 = vshrl.u32 %v3603, 7
        %v3605 = vsub.s32 %v3602, %v3604
        %v3606 = vrot.slane %v3248, %v3605
        %v3607 = vcombine.high %v3606, %v3606
        %v3609 = vunpack.c.l.s4 1966171168
        %v3610 = vunpack.c.0.s8 %v3609
        %v3611 = vlaneseq
        %v3612 = vshrl.u32 %v3611, 7
        %v3613 = vsub.s32 %v3610, %v3612
        %v3614 = vrot.slane %v3606, %v3613
        %v3616 = vunpack.c.l.s4 1966171168
        %v3617 = vunpack.c.0.s8 %v3616
        %v3618 = vlaneseq
        %v3619 = vshrl.u32 %v3618, 7
        %v3620 = vsub.s32 %v3617, %v3619
        %v3621 = vrot.slane %v3607, %v3620
        %v3622 = vcombine.high %v3614, %v3614
        %v3623 = vcombine.high %v3621, %v3621
        %v3624 = vunpack.i.l.s16 %v3278
        %v3625 = vunpack.i.h.s16 %v3278
        %v3626 = vunpack.i.l.s16 %v3285
        %v3627 = vunpack.i.h.s16 %v3285
        %v3628 = vunpack.i.l.s16 %v3286
        %v3629 = vunpack.i.h.s16 %v3286
        %v3630 = vunpack.i.l.s16 %v3287
        %v3631 = vunpack.i.l.s16 %v3302
        %v3632 = vunpack.i.h.s16 %v3302
        %v3633 = vunpack.i.l.s16 %v3309
        %v3634 = vunpack.i.h.s16 %v3309
        %v3635 = vunpack.i.l.s16 %v3310
        %v3636 = vunpack.i.h.s16 %v3310
        %v3637 = vunpack.i.l.s16 %v3311
        %v3638 = vunpack.i.l.s16 %v3326
        %v3639 = vunpack.i.h.s16 %v3326
        %v3640 = vunpack.i.l.s16 %v3333
        %v3641 = vunpack.i.h.s16 %v3333
        %v3642 = vunpack.i.l.s16 %v3334
        %v3643 = vunpack.i.h.s16 %v3334
        %v3644 = vunpack.i.l.s16 %v3335
        %v3645 = vunpack.i.l.s16 %v3350
        %v3646 = vunpack.i.h.s16 %v3350
        %v3647 = vunpack.i.l.s16 %v3357
        %v3648 = vunpack.i.h.s16 %v3357
        %v3649 = vunpack.i.l.s16 %v3358
        %v3650 = vunpack.i.h.s16 %v3358
        %v3651 = vunpack.i.l.s16 %v3359
        %v3652 = vunpack.i.l.s16 %v3374
        %v3653 = vunpack.i.h.s16 %v3374
        %v3654 = vunpack.i.l.s16 %v3381
        %v3655 = vunpack.i.h.s16 %v3381
        %v3656 = vunpack.i.l.s16 %v3382
        %v3657 = vunpack.i.h.s16 %v3382
        %v3658 = vunpack.i.l.s16 %v3383
        %v3659 = vunpack.i.l.s16 %v3398
        %v3660 = vunpack.i.h.s16 %v3398
        %v3661 = vunpack.i.l.s16 %v3405
        %v3662 = vunpack.i.h.s16 %v3405
        %v3663 = vunpack.i.l.s16 %v3406
        %v3664 = vunpack.i.h.s16 %v3406
        %v3665 = vunpack.i.l.s16 %v3407
        %v3666 = vunpack.i.l.s16 %v3422
        %v3667 = vunpack.i.h.s16 %v3422
        %v3668 = vunpack.i.l.s16 %v3429
        %v3669 = vunpack.i.h.s16 %v3429
        %v3670 = vunpack.i.l.s16 %v3430
        %v3671 = vunpack.i.h.s16 %v3430
        %v3672 = vunpack.i.l.s16 %v3431
        %v3673 = vunpack.i.l.s16 %v3446
        %v3674 = vunpack.i.h.s16 %v3446
        %v3675 = vunpack.i.l.s16 %v3453
        %v3676 = vunpack.i.h.s16 %v3453
        %v3677 = vunpack.i.l.s16 %v3454
        %v3678 = vunpack.i.h.s16 %v3454
        %v3679 = vunpack.i.l.s16 %v3455
        %v3680 = vunpack.i.l.s16 %v3470
        %v3681 = vunpack.i.h.s16 %v3470
        %v3682 = vunpack.i.l.s16 %v3477
        %v3683 = vunpack.i.h.s16 %v3477
        %v3684 = vunpack.i.l.s16 %v3478
        %v3685 = vunpack.i.h.s16 %v3478
        %v3686 = vunpack.i.l.s16 %v3479
        %v3687 = vunpack.i.l.s16 %v3494
        %v3688 = vunpack.i.h.s16 %v3494
        %v3689 = vunpack.i.l.s16 %v3501
        %v3690 = vunpack.i.h.s16 %v3501
        %v3691 = vunpack.i.l.s16 %v3502
        %v3692 = vunpack.i.h.s16 %v3502
        %v3693 = vunpack.i.l.s16 %v3503
        %v3694 = vunpack.i.l.s16 %v3518
        %v3695 = vunpack.i.h.s16 %v3518
        %v3696 = vunpack.i.l.s16 %v3525
        %v3697 = vunpack.i.h.s16 %v3525
        %v3698 = vunpack.i.l.s16 %v3526
        %v3699 = vunpack.i.h.s16 %v3526
        %v3700 = vunpack.i.l.s16 %v3527
        %v3701 = vunpack.i.l.s16 %v3542
        %v3702 = vunpack.i.h.s16 %v3542
        %v3703 = vunpack.i.l.s16 %v3549
        %v3704 = vunpack.i.h.s16 %v3549
        %v3705 = vunpack.i.l.s16 %v3550
        %v3706 = vunpack.i.h.s16 %v3550
        %v3707 = vunpack.i.l.s16 %v3551
        %v3708 = vunpack.i.l.s16 %v3566
        %v3709 = vunpack.i.h.s16 %v3566
        %v3710 = vunpack.i.l.s16 %v3573
        %v3711 = vunpack.i.h.s16 %v3573
        %v3712 = vunpack.i.l.s16 %v3574
        %v3713 = vunpack.i.h.s16 %v3574
        %v3714 = vunpack.i.l.s16 %v3575
        %v3715 = vunpack.i.l.s16 %v3590
        %v3716 = vunpack.i.h.s16 %v3590
        %v3717 = vunpack.i.l.s16 %v3597
        %v3718 = vunpack.i.h.s16 %v3597
        %v3719 = vunpack.i.l.s16 %v3598
        %v3720 = vunpack.i.h.s16 %v3598
        %v3721 = vunpack.i.l.s16 %v3599
        %v3722 = vunpack.i.l.s16 %v3614
        %v3723 = vunpack.i.h.s16 %v3614
        %v3724 = vunpack.i.l.s16 %v3621
        %v3725 = vunpack.i.h.s16 %v3621
        %v3726 = vunpack.i.l.s16 %v3622
        %v3727 = vunpack.i.h.s16 %v3622
        %v3728 = vunpack.i.l.s16 %v3623
        %s3729 = scalar_lea.vmem %s2, 6
        %v3730 = vld [vmem:[%s3729] sm:$0x3]
        %v3731 = vpack.i.b16 %v3625, %v3624
        %v3732 = vpack.i.b16 %v3627, %v3626
        %v3733 = vpack.i.b16 %v3629, %v3628
        %v3734 = vpack.i.b16 %v3631, %v3630
        %v3735 = vpack.i.b16 %v3633, %v3632
        %v3736 = vpack.i.b16 %v3635, %v3634
        %v3737 = vpack.i.b16 %v3637, %v3636
        %v3738 = vpack.i.b16 %v3639, %v3638
        %v3739 = vpack.i.b16 %v3641, %v3640
        %v3740 = vpack.i.b16 %v3643, %v3642
        %v3741 = vpack.i.b16 %v3645, %v3644
        %v3742 = vpack.i.b16 %v3647, %v3646
        %v3743 = vpack.i.b16 %v3649, %v3648
        %v3744 = vpack.i.b16 %v3651, %v3650
        %v3745 = vpack.i.b16 %v3653, %v3652
        %v3746 = vpack.i.b16 %v3655, %v3654
        %v3747 = vpack.i.b16 %v3657, %v3656
        %v3748 = vpack.i.b16 %v3659, %v3658
        %v3749 = vpack.i.b16 %v3661, %v3660
        %v3750 = vpack.i.b16 %v3663, %v3662
        %v3751 = vpack.i.b16 %v3665, %v3664
        %v3752 = vpack.i.b16 %v3667, %v3666
        %v3753 = vpack.i.b16 %v3669, %v3668
        %v3754 = vpack.i.b16 %v3671, %v3670
        %v3755 = vpack.i.b16 %v3673, %v3672
        %v3756 = vpack.i.b16 %v3675, %v3674
        %v3757 = vpack.i.b16 %v3677, %v3676
        %v3758 = vpack.i.b16 %v3679, %v3678
        %v3759 = vpack.i.b16 %v3681, %v3680
        %v3760 = vpack.i.b16 %v3683, %v3682
        %v3761 = vpack.i.b16 %v3685, %v3684
        %v3762 = vpack.i.b16 %v3687, %v3686
        %v3763 = vpack.i.b16 %v3689, %v3688
        %v3764 = vpack.i.b16 %v3691, %v3690
        %v3765 = vpack.i.b16 %v3693, %v3692
        %v3766 = vpack.i.b16 %v3695, %v3694
        %v3767 = vpack.i.b16 %v3697, %v3696
        %v3768 = vpack.i.b16 %v3699, %v3698
        %v3769 = vpack.i.b16 %v3701, %v3700
        %v3770 = vpack.i.b16 %v3703, %v3702
        %v3771 = vpack.i.b16 %v3705, %v3704
        %v3772 = vpack.i.b16 %v3707, %v3706
        %v3773 = vpack.i.b16 %v3709, %v3708
        %v3774 = vpack.i.b16 %v3711, %v3710
        %v3775 = vpack.i.b16 %v3713, %v3712
        %v3776 = vpack.i.b16 %v3715, %v3714
        %v3777 = vpack.i.b16 %v3717, %v3716
        %v3778 = vpack.i.b16 %v3719, %v3718
        %v3779 = vpack.i.b16 %v3721, %v3720
        %v3780 = vpack.i.b16 %v3723, %v3722
        %v3781 = vpack.i.b16 %v3725, %v3724
        %v3782 = vpack.i.b16 %v3727, %v3726
        %v3784 = vcombine.low %v3731, %v3732
        %v3785 = vcombine.low %v3733, %v3734
        %v3786 = vcombine.low %v3735, %v3736
        %v3787 = vcombine.low %v3737, %v3738
        %v3789 = vunpack.c.l.s4 1966171168
        %v3790 = vunpack.c.0.s8 %v3789
        %v3791 = vlaneseq
        %v3792 = vshrl.u32 %v3791, 7
        %v3793 = vsub.s32 %v3790, %v3792
        %v3794 = vrot.slane %v3784, %v3793
        %v3796 = vunpack.c.l.s4 1966171168
        %v3797 = vunpack.c.0.s8 %v3796
        %v3798 = vlaneseq
        %v3799 = vshrl.u32 %v3798, 7
        %v3800 = vsub.s32 %v3797, %v3799
        %v3801 = vrot.slane %v3785, %v3800
        %v3803 = vunpack.c.l.s4 1966171168
        %v3804 = vunpack.c.0.s8 %v3803
        %v3805 = vlaneseq
        %v3806 = vshrl.u32 %v3805, 7
        %v3807 = vsub.s32 %v3804, %v3806
        %v3808 = vrot.slane %v3786, %v3807
        %v3810 = vunpack.c.l.s4 1966171168
        %v3811 = vunpack.c.0.s8 %v3810
        %v3812 = vlaneseq
        %v3813 = vshrl.u32 %v3812, 7
        %v3814 = vsub.s32 %v3811, %v3813
        %v3815 = vrot.slane %v3787, %v3814
        %v3816 = vcombine.low %v3794, %v3801
        %v3817 = vcombine.low %v3808, %v3815
        %v3819 = vunpack.c.l.s4 1966171168
        %v3820 = vunpack.c.0.s8 %v3819
        %v3821 = vlaneseq
        %v3822 = vshrl.u32 %v3821, 7
        %v3823 = vsub.s32 %v3820, %v3822
        %v3824 = vrot.slane %v3816, %v3823
        %v3826 = vunpack.c.l.s4 1966171168
        %v3827 = vunpack.c.0.s8 %v3826
        %v3828 = vlaneseq
        %v3829 = vshrl.u32 %v3828, 7
        %v3830 = vsub.s32 %v3827, %v3829
        %v3831 = vrot.slane %v3817, %v3830
        %v3832 = vcombine.low %v3824, %v3831
        %v3833 = vcombine.low %v3739, %v3740
        %v3834 = vcombine.low %v3741, %v3742
        %v3835 = vcombine.low %v3743, %v3744
        %v3836 = vcombine.low %v3745, %v3746
        %v3838 = vunpack.c.l.s4 1966171168
        %v3839 = vunpack.c.0.s8 %v3838
        %v3840 = vlaneseq
        %v3841 = vshrl.u32 %v3840, 7
        %v3842 = vsub.s32 %v3839, %v3841
        %v3843 = vrot.slane %v3833, %v3842
        %v3845 = vunpack.c.l.s4 1966171168
        %v3846 = vunpack.c.0.s8 %v3845
        %v3847 = vlaneseq
        %v3848 = vshrl.u32 %v3847, 7
        %v3849 = vsub.s32 %v3846, %v3848
        %v3850 = vrot.slane %v3834, %v3849
        %v3852 = vunpack.c.l.s4 1966171168
        %v3853 = vunpack.c.0.s8 %v3852
        %v3854 = vlaneseq
        %v3855 = vshrl.u32 %v3854, 7
        %v3856 = vsub.s32 %v3853, %v3855
        %v3857 = vrot.slane %v3835, %v3856
        %v3859 = vunpack.c.l.s4 1966171168
        %v3860 = vunpack.c.0.s8 %v3859
        %v3861 = vlaneseq
        %v3862 = vshrl.u32 %v3861, 7
        %v3863 = vsub.s32 %v3860, %v3862
        %v3864 = vrot.slane %v3836, %v3863
        %v3865 = vcombine.low %v3843, %v3850
        %v3866 = vcombine.low %v3857, %v3864
        %v3868 = vunpack.c.l.s4 1966171168
        %v3869 = vunpack.c.0.s8 %v3868
        %v3870 = vlaneseq
        %v3871 = vshrl.u32 %v3870, 7
        %v3872 = vsub.s32 %v3869, %v3871
        %v3873 = vrot.slane %v3865, %v3872
        %v3875 = vunpack.c.l.s4 1966171168
        %v3876 = vunpack.c.0.s8 %v3875
        %v3877 = vlaneseq
        %v3878 = vshrl.u32 %v3877, 7
        %v3879 = vsub.s32 %v3876, %v3878
        %v3880 = vrot.slane %v3866, %v3879
        %v3881 = vcombine.low %v3873, %v3880
        %v3882 = vcombine.low %v3747, %v3748
        %v3883 = vcombine.low %v3749, %v3750
        %v3884 = vcombine.low %v3751, %v3752
        %v3885 = vcombine.low %v3753, %v3754
        %v3887 = vunpack.c.l.s4 1966171168
        %v3888 = vunpack.c.0.s8 %v3887
        %v3889 = vlaneseq
        %v3890 = vshrl.u32 %v3889, 7
        %v3891 = vsub.s32 %v3888, %v3890
        %v3892 = vrot.slane %v3882, %v3891
        %v3894 = vunpack.c.l.s4 1966171168
        %v3895 = vunpack.c.0.s8 %v3894
        %v3896 = vlaneseq
        %v3897 = vshrl.u32 %v3896, 7
        %v3898 = vsub.s32 %v3895, %v3897
        %v3899 = vrot.slane %v3883, %v3898
        %v3901 = vunpack.c.l.s4 1966171168
        %v3902 = vunpack.c.0.s8 %v3901
        %v3903 = vlaneseq
        %v3904 = vshrl.u32 %v3903, 7
        %v3905 = vsub.s32 %v3902, %v3904
        %v3906 = vrot.slane %v3884, %v3905
        %v3908 = vunpack.c.l.s4 1966171168
        %v3909 = vunpack.c.0.s8 %v3908
        %v3910 = vlaneseq
        %v3911 = vshrl.u32 %v3910, 7
        %v3912 = vsub.s32 %v3909, %v3911
        %v3913 = vrot.slane %v3885, %v3912
        %v3914 = vcombine.low %v3892, %v3899
        %v3915 = vcombine.low %v3906, %v3913
        %v3917 = vunpack.c.l.s4 1966171168
        %v3918 = vunpack.c.0.s8 %v3917
        %v3919 = vlaneseq
        %v3920 = vshrl.u32 %v3919, 7
        %v3921 = vsub.s32 %v3918, %v3920
        %v3922 = vrot.slane %v3914, %v3921
        %v3924 = vunpack.c.l.s4 1966171168
        %v3925 = vunpack.c.0.s8 %v3924
        %v3926 = vlaneseq
        %v3927 = vshrl.u32 %v3926, 7
        %v3928 = vsub.s32 %v3925, %v3927
        %v3929 = vrot.slane %v3915, %v3928
        %v3930 = vcombine.low %v3922, %v3929
        %v3931 = vcombine.low %v3755, %v3756
        %v3932 = vcombine.low %v3757, %v3758
        %v3933 = vcombine.low %v3759, %v3760
        %v3934 = vcombine.low %v3761, %v3762
        %v3936 = vunpack.c.l.s4 1966171168
        %v3937 = vunpack.c.0.s8 %v3936
        %v3938 = vlaneseq
        %v3939 = vshrl.u32 %v3938, 7
        %v3940 = vsub.s32 %v3937, %v3939
        %v3941 = vrot.slane %v3931, %v3940
        %v3943 = vunpack.c.l.s4 1966171168
        %v3944 = vunpack.c.0.s8 %v3943
        %v3945 = vlaneseq
        %v3946 = vshrl.u32 %v3945, 7
        %v3947 = vsub.s32 %v3944, %v3946
        %v3948 = vrot.slane %v3932, %v3947
        %v3950 = vunpack.c.l.s4 1966171168
        %v3951 = vunpack.c.0.s8 %v3950
        %v3952 = vlaneseq
        %v3953 = vshrl.u32 %v3952, 7
        %v3954 = vsub.s32 %v3951, %v3953
        %v3955 = vrot.slane %v3933, %v3954
        %v3957 = vunpack.c.l.s4 1966171168
        %v3958 = vunpack.c.0.s8 %v3957
        %v3959 = vlaneseq
        %v3960 = vshrl.u32 %v3959, 7
        %v3961 = vsub.s32 %v3958, %v3960
        %v3962 = vrot.slane %v3934, %v3961
        %v3963 = vcombine.low %v3941, %v3948
        %v3964 = vcombine.low %v3955, %v3962
        %v3966 = vunpack.c.l.s4 1966171168
        %v3967 = vunpack.c.0.s8 %v3966
        %v3968 = vlaneseq
        %v3969 = vshrl.u32 %v3968, 7
        %v3970 = vsub.s32 %v3967, %v3969
        %v3971 = vrot.slane %v3963, %v3970
        %v3973 = vunpack.c.l.s4 1966171168
        %v3974 = vunpack.c.0.s8 %v3973
        %v3975 = vlaneseq
        %v3976 = vshrl.u32 %v3975, 7
        %v3977 = vsub.s32 %v3974, %v3976
        %v3978 = vrot.slane %v3964, %v3977
        %v3979 = vcombine.low %v3971, %v3978
        %v3980 = vcombine.low %v3763, %v3764
        %v3981 = vcombine.low %v3765, %v3766
        %v3982 = vcombine.low %v3767, %v3768
        %v3983 = vcombine.low %v3769, %v3770
        %v3985 = vunpack.c.l.s4 1966171168
        %v3986 = vunpack.c.0.s8 %v3985
        %v3987 = vlaneseq
        %v3988 = vshrl.u32 %v3987, 7
        %v3989 = vsub.s32 %v3986, %v3988
        %v3990 = vrot.slane %v3980, %v3989
        %v3992 = vunpack.c.l.s4 1966171168
        %v3993 = vunpack.c.0.s8 %v3992
        %v3994 = vlaneseq
        %v3995 = vshrl.u32 %v3994, 7
        %v3996 = vsub.s32 %v3993, %v3995
        %v3997 = vrot.slane %v3981, %v3996
        %v3999 = vunpack.c.l.s4 1966171168
        %v4000 = vunpack.c.0.s8 %v3999
        %v4001 = vlaneseq
        %v4002 = vshrl.u32 %v4001, 7
        %v4003 = vsub.s32 %v4000, %v4002
        %v4004 = vrot.slane %v3982, %v4003
        %v4006 = vunpack.c.l.s4 1966171168
        %v4007 = vunpack.c.0.s8 %v4006
        %v4008 = vlaneseq
        %v4009 = vshrl.u32 %v4008, 7
        %v4010 = vsub.s32 %v4007, %v4009
        %v4011 = vrot.slane %v3983, %v4010
        %v4012 = vcombine.low %v3990, %v3997
        %v4013 = vcombine.low %v4004, %v4011
        %v4015 = vunpack.c.l.s4 1966171168
        %v4016 = vunpack.c.0.s8 %v4015
        %v4017 = vlaneseq
        %v4018 = vshrl.u32 %v4017, 7
        %v4019 = vsub.s32 %v4016, %v4018
        %v4020 = vrot.slane %v4012, %v4019
        %v4022 = vunpack.c.l.s4 1966171168
        %v4023 = vunpack.c.0.s8 %v4022
        %v4024 = vlaneseq
        %v4025 = vshrl.u32 %v4024, 7
        %v4026 = vsub.s32 %v4023, %v4025
        %v4027 = vrot.slane %v4013, %v4026
        %v4028 = vcombine.low %v4020, %v4027
        %v4029 = vcombine.low %v3771, %v3772
        %v4030 = vcombine.low %v3773, %v3774
        %v4031 = vcombine.low %v3775, %v3776
        %v4032 = vcombine.low %v3777, %v3778
        %v4034 = vunpack.c.l.s4 1966171168
        %v4035 = vunpack.c.0.s8 %v4034
        %v4036 = vlaneseq
        %v4037 = vshrl.u32 %v4036, 7
        %v4038 = vsub.s32 %v4035, %v4037
        %v4039 = vrot.slane %v4029, %v4038
        %v4041 = vunpack.c.l.s4 1966171168
        %v4042 = vunpack.c.0.s8 %v4041
        %v4043 = vlaneseq
        %v4044 = vshrl.u32 %v4043, 7
        %v4045 = vsub.s32 %v4042, %v4044
        %v4046 = vrot.slane %v4030, %v4045
        %v4048 = vunpack.c.l.s4 1966171168
        %v4049 = vunpack.c.0.s8 %v4048
        %v4050 = vlaneseq
        %v4051 = vshrl.u32 %v4050, 7
        %v4052 = vsub.s32 %v4049, %v4051
        %v4053 = vrot.slane %v4031, %v4052
        %v4055 = vunpack.c.l.s4 1966171168
        %v4056 = vunpack.c.0.s8 %v4055
        %v4057 = vlaneseq
        %v4058 = vshrl.u32 %v4057, 7
        %v4059 = vsub.s32 %v4056, %v4058
        %v4060 = vrot.slane %v4032, %v4059
        %v4061 = vcombine.low %v4039, %v4046
        %v4062 = vcombine.low %v4053, %v4060
        %v4064 = vunpack.c.l.s4 1966171168
        %v4065 = vunpack.c.0.s8 %v4064
        %v4066 = vlaneseq
        %v4067 = vshrl.u32 %v4066, 7
        %v4068 = vsub.s32 %v4065, %v4067
        %v4069 = vrot.slane %v4061, %v4068
        %v4071 = vunpack.c.l.s4 1966171168
        %v4072 = vunpack.c.0.s8 %v4071
        %v4073 = vlaneseq
        %v4074 = vshrl.u32 %v4073, 7
        %v4075 = vsub.s32 %v4072, %v4074
        %v4076 = vrot.slane %v4062, %v4075
        %v4077 = vcombine.low %v4069, %v4076
        %v4078 = vcombine.low %v3779, %v3780
        %v4079 = vcombine.low %v3781, %v3782
        %v4081 = vunpack.c.l.s4 1966171168
        %v4082 = vunpack.c.0.s8 %v4081
        %v4083 = vlaneseq
        %v4084 = vshrl.u32 %v4083, 7
        %v4085 = vsub.s32 %v4082, %v4084
        %v4086 = vrot.slane %v4078, %v4085
        %v4088 = vunpack.c.l.s4 1966171168
        %v4089 = vunpack.c.0.s8 %v4088
        %v4090 = vlaneseq
        %v4091 = vshrl.u32 %v4090, 7
        %v4092 = vsub.s32 %v4089, %v4091
        %v4093 = vrot.slane %v4079, %v4092
        %v4095 = vunpack.c.l.s4 1966171168
        %v4096 = vunpack.c.0.s8 %v4095
        %v4097 = vlaneseq
        %v4098 = vshrl.u32 %v4097, 7
        %v4099 = vsub.s32 %v4096, %v4098
        %v4100 = vrot.slane %v3728, %v4099
        %v4101 = vcombine.low %v4086, %v4093
        %v4103 = vunpack.c.l.s4 1966171168
        %v4104 = vunpack.c.0.s8 %v4103
        %v4105 = vlaneseq
        %v4106 = vshrl.u32 %v4105, 7
        %v4107 = vsub.s32 %v4104, %v4106
        %v4108 = vrot.slane %v4101, %v4107
        %v4110 = vunpack.c.l.s4 1966171168
        %v4111 = vunpack.c.0.s8 %v4110
        %v4112 = vlaneseq
        %v4113 = vshrl.u32 %v4112, 7
        %v4114 = vsub.s32 %v4111, %v4113
        %v4115 = vrot.slane %v4100, %v4114
        %v4116 = vcombine.low %v4108, %v4115
        %v4118 = vsel %vm1609, %v3832, 0
        %v4121 = vsel %vm1609, %v3881, 0
        %v4124 = vsel %vm1609, %v3930, 0
        %v4127 = vsel %vm1609, %v3979, 0
        %v4130 = vsel %vm1609, %v4028, 0
        %v4133 = vsel %vm1609, %v4077, 0
        %v4136 = vsel %vm1609, %v4116, 0
        %v4139 = vsel %vm1631, %v3730, 0
        %4141 = vmatprep.subr.bf16.mxu0 0
        %4142 = vmatpush1.bf16.msra.mxu0 %v4139
        %4143 = vmatprep.subr.bf16.mxu0 0
        %4144 = vmatpush1.bf16.msra.mxu0 0
        %4145 = vmatprep.subr.bf16.mxu0 0
        %4146 = vmatpush1.bf16.msra.mxu0 0
        %4147 = vmatprep.subr.bf16.mxu0 0
        %4148 = vmatpush1.bf16.msra.mxu0 0
        %4149 = vmatprep.subr.bf16.mxu0 0
        %4150 = vmatpush1.bf16.msra.mxu0 0
        %4151 = vmatprep.subr.bf16.mxu0 0
        %4152 = vmatpush1.bf16.msra.mxu0 0
        %4153 = vmatprep.subr.bf16.mxu0 0
        %4154 = vmatpush1.bf16.msra.mxu0 0
        %4155 = vmatprep.subr.bf16.mxu0 0
        %4156 = vmatpush1.bf16.msra.mxu0 0
        %4157 = vmatprep.subr.bf16.mxu0 0
        %4158 = vmatpush1.bf16.msra.mxu0 0
        %4159 = vmatprep.subr.bf16.mxu0 0
        %4160 = vmatpush1.bf16.msra.mxu0 0
        %4161 = vmatprep.subr.bf16.mxu0 0
        %4162 = vmatpush1.bf16.msra.mxu0 0
        %4163 = vmatprep.subr.bf16.mxu0 0
        %4164 = vmatpush1.bf16.msra.mxu0 0
        %4165 = vmatprep.subr.bf16.mxu0 0
        %4166 = vmatpush1.bf16.msra.mxu0 0
        %4167 = vmatprep.subr.bf16.mxu0 0
        %4168 = vmatpush1.bf16.msra.mxu0 0
        %4169 = vmatprep.subr.bf16.mxu0 0
        %4170 = vmatpush1.bf16.msra.mxu0 0
        %4171 = vmatprep.subr.bf16.mxu0 0
        %4172 = vmatpush1.bf16.msra.mxu0 0
        %4173 = vmatprep.mubr.bf16.mxu0 0
        %4174 = vmatmul.mubr.bf16.gmra.mrb[0].mxu0 %v4118
        %v4175 = vpop.f32.mrb[0].mxu0
        %v4176 = vadd.f32 0.0, %v4175
        %v4177 = vpop.f32.mrb[0].mxu0
        %v4178 = vpop.f32.mrb[0].mxu0
        %v4179 = vadd.f32 0.0, %v4178
        %v4180 = vpop.f32.mrb[0].mxu0
        %4181 = vmatprep.mubr.bf16.mxu0 0
        %4182 = vmatmul.mubr.bf16.gmra.mrb[0].mxu0 %v4121
        %v4183 = vpop.f32.mrb[0].mxu0
        %v4184 = vadd.f32 0.0, %v4183
        %v4185 = vpop.f32.mrb[0].mxu0
        %v4186 = vpop.f32.mrb[0].mxu0
        %v4187 = vadd.f32 0.0, %v4186
        %v4188 = vpop.f32.mrb[0].mxu0
        %4189 = vmatprep.mubr.bf16.mxu0 0
        %4190 = vmatmul.mubr.bf16.gmra.mrb[0].mxu0 %v4124
        %v4191 = vpop.f32.mrb[0].mxu0
        %v4192 = vadd.f32 0.0, %v4191
        %v4193 = vpop.f32.mrb[0].mxu0
        %v4194 = vpop.f32.mrb[0].mxu0
        %v4195 = vadd.f32 0.0, %v4194
        %v4196 = vpop.f32.mrb[0].mxu0
        %4197 = vmatprep.mubr.bf16.mxu0 0
        %4198 = vmatmul.mubr.bf16.gmra.mrb[0].mxu0 %v4127
        %v4199 = vpop.f32.mrb[0].mxu0
        %v4200 = vadd.f32 0.0, %v4199
        %v4201 = vpop.f32.mrb[0].mxu0
        %v4202 = vpop.f32.mrb[0].mxu0
        %v4203 = vadd.f32 0.0, %v4202
        %v4204 = vpop.f32.mrb[0].mxu0
        %4205 = vmatprep.mubr.bf16.mxu0 0
        %4206 = vmatmul.mubr.bf16.gmra.mrb[0].mxu0 %v4130
        %v4207 = vpop.f32.mrb[0].mxu0
        %v4208 = vadd.f32 0.0, %v4207
        %v4209 = vpop.f32.mrb[0].mxu0
        %v4210 = vpop.f32.mrb[0].mxu0
        %v4211 = vadd.f32 0.0, %v4210
        %v4212 = vpop.f32.mrb[0].mxu0
        %4213 = vmatprep.mubr.bf16.mxu0 0
        %4214 = vmatmul.mubr.bf16.gmra.mrb[0].mxu0 %v4133
        %v4215 = vpop.f32.mrb[0].mxu0
        %v4216 = vadd.f32 0.0, %v4215
        %v4217 = vpop.f32.mrb[0].mxu0
        %v4218 = vpop.f32.mrb[0].mxu0
        %v4219 = vadd.f32 0.0, %v4218
        %v4220 = vpop.f32.mrb[0].mxu0
        %4221 = vmatprep.mubr.bf16.mxu0 0
        %4222 = vmatmul.mubr.bf16.gmra.mrb[0].mxu0 %v4136
        %v4223 = vpop.f32.mrb[0].mxu0
        %v4224 = vadd.f32 0.0, %v4223
        %v4225 = vpop.f32.mrb[0].mxu0
        %v4226 = vpop.f32.mrb[0].mxu0
        %v4227 = vadd.f32 0.0, %v4226
        %v4228 = vpop.f32.mrb[0].mxu0
        %4229 = vdwg.mxu0
        %v4230 = vadd.f32 %v3219, %v4176
        %v4231 = vadd.f32 %v3220, %v4179
        %v4232 = vadd.f32 %v3221, %v4184
        %v4233 = vadd.f32 %v3222, %v4187
        %v4234 = vadd.f32 %v3223, %v4192
        %v4235 = vadd.f32 %v3224, %v4195
        %v4236 = vadd.f32 %v3225, %v4200
        %v4237 = vadd.f32 %v3226, %v4203
        %v4238 = vadd.f32 %v3227, %v4208
        %v4239 = vadd.f32 %v3228, %v4211
        %v4240 = vadd.f32 %v3229, %v4216
        %v4241 = vadd.f32 %v3230, %v4219
        %v4242 = vadd.f32 %v3231, %v4224
        %v4243 = vadd.f32 %v3232, %v4227
        %s4244 = scalar_lea.vmem %s223, 4
        %v4245 = vld [vmem:[%s4244] sm:$0xf]
        %v4246 = vld [vmem:[%s4244 + $0x4] sm:$0xf]
        %v4247 = vld [vmem:[%s4244 + $0x8] sm:$0xf]
        %v4248 = vld [vmem:[%s4244 + $0xc] sm:$0xf]
        %v4249 = vld [vmem:[%s4244 + $0x10] sm:$0xf]
        %v4250 = vld [vmem:[%s4244 + $0x14] sm:$0xf]
        %v4251 = vld [vmem:[%s4244 + $0x18] sm:$0xf]
        %v4252 = vld [vmem:[%s4244 + $0x1c] sm:$0xf]
        %v4253 = vld [vmem:[%s4244 + $0x20] sm:$0xf]
        %v4254 = vld [vmem:[%s4244 + $0x24] sm:$0xf]
        %v4255 = vld [vmem:[%s4244 + $0x28] sm:$0xf]
        %v4256 = vld [vmem:[%s4244 + $0x2c] sm:$0xf]
        %v4257 = vld [vmem:[%s4244 + $0x30] sm:$0xf]
        %v4258 = vld [vmem:[%s4244 + $0x34] sm:$0xf]
        %v4259 = vld [vmem:[%s4244 + $0x38] sm:$0xf]
        %v4276 = vunpack.c.l.s4 1966171168
        %v4277 = vunpack.c.0.s8 %v4276
        %v4278 = vlaneseq
        %v4279 = vshrl.u32 %v4278, 7
        %v4280 = vsub.s32 %v4277, %v4279
        %v4281 = vrot.slane %v4245, %v4280
        %v4282 = vcombine.high %v4281, %v4281
        %v4284 = vunpack.c.l.s4 1966171168
        %v4285 = vunpack.c.0.s8 %v4284
        %v4286 = vlaneseq
        %v4287 = vshrl.u32 %v4286, 7
        %v4288 = vsub.s32 %v4285, %v4287
        %v4289 = vrot.slane %v4281, %v4288
        %v4291 = vunpack.c.l.s4 1966171168
        %v4292 = vunpack.c.0.s8 %v4291
        %v4293 = vlaneseq
        %v4294 = vshrl.u32 %v4293, 7
        %v4295 = vsub.s32 %v4292, %v4294
        %v4296 = vrot.slane %v4282, %v4295
        %v4297 = vcombine.high %v4289, %v4289
        %v4298 = vcombine.high %v4296, %v4296
        %v4300 = vunpack.c.l.s4 1966171168
        %v4301 = vunpack.c.0.s8 %v4300
        %v4302 = vlaneseq
        %v4303 = vshrl.u32 %v4302, 7
        %v4304 = vsub.s32 %v4301, %v4303
        %v4305 = vrot.slane %v4246, %v4304
        %v4306 = vcombine.high %v4305, %v4305
        %v4308 = vunpack.c.l.s4 1966171168
        %v4309 = vunpack.c.0.s8 %v4308
        %v4310 = vlaneseq
        %v4311 = vshrl.u32 %v4310, 7
        %v4312 = vsub.s32 %v4309, %v4311
        %v4313 = vrot.slane %v4305, %v4312
        %v4315 = vunpack.c.l.s4 1966171168
        %v4316 = vunpack.c.0.s8 %v4315
        %v4317 = vlaneseq
        %v4318 = vshrl.u32 %v4317, 7
        %v4319 = vsub.s32 %v4316, %v4318
        %v4320 = vrot.slane %v4306, %v4319
        %v4321 = vcombine.high %v4313, %v4313
        %v4322 = vcombine.high %v4320, %v4320
        %v4324 = vunpack.c.l.s4 1966171168
        %v4325 = vunpack.c.0.s8 %v4324
        %v4326 = vlaneseq
        %v4327 = vshrl.u32 %v4326, 7
        %v4328 = vsub.s32 %v4325, %v4327
        %v4329 = vrot.slane %v4247, %v4328
        %v4330 = vcombine.high %v4329, %v4329
        %v4332 = vunpack.c.l.s4 1966171168
        %v4333 = vunpack.c.0.s8 %v4332
        %v4334 = vlaneseq
        %v4335 = vshrl.u32 %v4334, 7
        %v4336 = vsub.s32 %v4333, %v4335
        %v4337 = vrot.slane %v4329, %v4336
        %v4339 = vunpack.c.l.s4 1966171168
        %v4340 = vunpack.c.0.s8 %v4339
        %v4341 = vlaneseq
        %v4342 = vshrl.u32 %v4341, 7
        %v4343 = vsub.s32 %v4340, %v4342
        %v4344 = vrot.slane %v4330, %v4343
        %v4345 = vcombine.high %v4337, %v4337
        %v4346 = vcombine.high %v4344, %v4344
        %v4348 = vunpack.c.l.s4 1966171168
        %v4349 = vunpack.c.0.s8 %v4348
        %v4350 = vlaneseq
        %v4351 = vshrl.u32 %v4350, 7
        %v4352 = vsub.s32 %v4349, %v4351
        %v4353 = vrot.slane %v4248, %v4352
        %v4354 = vcombine.high %v4353, %v4353
        %v4356 = vunpack.c.l.s4 1966171168
        %v4357 = vunpack.c.0.s8 %v4356
        %v4358 = vlaneseq
        %v4359 = vshrl.u32 %v4358, 7
        %v4360 = vsub.s32 %v4357, %v4359
        %v4361 = vrot.slane %v4353, %v4360
        %v4363 = vunpack.c.l.s4 1966171168
        %v4364 = vunpack.c.0.s8 %v4363
        %v4365 = vlaneseq
        %v4366 = vshrl.u32 %v4365, 7
        %v4367 = vsub.s32 %v4364, %v4366
        %v4368 = vrot.slane %v4354, %v4367
        %v4369 = vcombine.high %v4361, %v4361
        %v4370 = vcombine.high %v4368, %v4368
        %v4372 = vunpack.c.l.s4 1966171168
        %v4373 = vunpack.c.0.s8 %v4372
        %v4374 = vlaneseq
        %v4375 = vshrl.u32 %v4374, 7
        %v4376 = vsub.s32 %v4373, %v4375
        %v4377 = vrot.slane %v4249, %v4376
        %v4378 = vcombine.high %v4377, %v4377
        %v4380 = vunpack.c.l.s4 1966171168
        %v4381 = vunpack.c.0.s8 %v4380
        %v4382 = vlaneseq
        %v4383 = vshrl.u32 %v4382, 7
        %v4384 = vsub.s32 %v4381, %v4383
        %v4385 = vrot.slane %v4377, %v4384
        %v4387 = vunpack.c.l.s4 1966171168
        %v4388 = vunpack.c.0.s8 %v4387
        %v4389 = vlaneseq
        %v4390 = vshrl.u32 %v4389, 7
        %v4391 = vsub.s32 %v4388, %v4390
        %v4392 = vrot.slane %v4378, %v4391
        %v4393 = vcombine.high %v4385, %v4385
        %v4394 = vcombine.high %v4392, %v4392
        %v4396 = vunpack.c.l.s4 1966171168
        %v4397 = vunpack.c.0.s8 %v4396
        %v4398 = vlaneseq
        %v4399 = vshrl.u32 %v4398, 7
        %v4400 = vsub.s32 %v4397, %v4399
        %v4401 = vrot.slane %v4250, %v4400
        %v4402 = vcombine.high %v4401, %v4401
        %v4404 = vunpack.c.l.s4 1966171168
        %v4405 = vunpack.c.0.s8 %v4404
        %v4406 = vlaneseq
        %v4407 = vshrl.u32 %v4406, 7
        %v4408 = vsub.s32 %v4405, %v4407
        %v4409 = vrot.slane %v4401, %v4408
        %v4411 = vunpack.c.l.s4 1966171168
        %v4412 = vunpack.c.0.s8 %v4411
        %v4413 = vlaneseq
        %v4414 = vshrl.u32 %v4413, 7
        %v4415 = vsub.s32 %v4412, %v4414
        %v4416 = vrot.slane %v4402, %v4415
        %v4417 = vcombine.high %v4409, %v4409
        %v4418 = vcombine.high %v4416, %v4416
        %v4420 = vunpack.c.l.s4 1966171168
        %v4421 = vunpack.c.0.s8 %v4420
        %v4422 = vlaneseq
        %v4423 = vshrl.u32 %v4422, 7
        %v4424 = vsub.s32 %v4421, %v4423
        %v4425 = vrot.slane %v4251, %v4424
        %v4426 = vcombine.high %v4425, %v4425
        %v4428 = vunpack.c.l.s4 1966171168
        %v4429 = vunpack.c.0.s8 %v4428
        %v4430 = vlaneseq
        %v4431 = vshrl.u32 %v4430, 7
        %v4432 = vsub.s32 %v4429, %v4431
        %v4433 = vrot.slane %v4425, %v4432
        %v4435 = vunpack.c.l.s4 1966171168
        %v4436 = vunpack.c.0.s8 %v4435
        %v4437 = vlaneseq
        %v4438 = vshrl.u32 %v4437, 7
        %v4439 = vsub.s32 %v4436, %v4438
        %v4440 = vrot.slane %v4426, %v4439
        %v4441 = vcombine.high %v4433, %v4433
        %v4442 = vcombine.high %v4440, %v4440
        %v4444 = vunpack.c.l.s4 1966171168
        %v4445 = vunpack.c.0.s8 %v4444
        %v4446 = vlaneseq
        %v4447 = vshrl.u32 %v4446, 7
        %v4448 = vsub.s32 %v4445, %v4447
        %v4449 = vrot.slane %v4252, %v4448
        %v4450 = vcombine.high %v4449, %v4449
        %v4452 = vunpack.c.l.s4 1966171168
        %v4453 = vunpack.c.0.s8 %v4452
        %v4454 = vlaneseq
        %v4455 = vshrl.u32 %v4454, 7
        %v4456 = vsub.s32 %v4453, %v4455
        %v4457 = vrot.slane %v4449, %v4456
        %v4459 = vunpack.c.l.s4 1966171168
        %v4460 = vunpack.c.0.s8 %v4459
        %v4461 = vlaneseq
        %v4462 = vshrl.u32 %v4461, 7
        %v4463 = vsub.s32 %v4460, %v4462
        %v4464 = vrot.slane %v4450, %v4463
        %v4465 = vcombine.high %v4457, %v4457
        %v4466 = vcombine.high %v4464, %v4464
        %v4468 = vunpack.c.l.s4 1966171168
        %v4469 = vunpack.c.0.s8 %v4468
        %v4470 = vlaneseq
        %v4471 = vshrl.u32 %v4470, 7
        %v4472 = vsub.s32 %v4469, %v4471
        %v4473 = vrot.slane %v4253, %v4472
        %v4474 = vcombine.high %v4473, %v4473
        %v4476 = vunpack.c.l.s4 1966171168
        %v4477 = vunpack.c.0.s8 %v4476
        %v4478 = vlaneseq
        %v4479 = vshrl.u32 %v4478, 7
        %v4480 = vsub.s32 %v4477, %v4479
        %v4481 = vrot.slane %v4473, %v4480
        %v4483 = vunpack.c.l.s4 1966171168
        %v4484 = vunpack.c.0.s8 %v4483
        %v4485 = vlaneseq
        %v4486 = vshrl.u32 %v4485, 7
        %v4487 = vsub.s32 %v4484, %v4486
        %v4488 = vrot.slane %v4474, %v4487
        %v4489 = vcombine.high %v4481, %v4481
        %v4490 = vcombine.high %v4488, %v4488
        %v4492 = vunpack.c.l.s4 1966171168
        %v4493 = vunpack.c.0.s8 %v4492
        %v4494 = vlaneseq
        %v4495 = vshrl.u32 %v4494, 7
        %v4496 = vsub.s32 %v4493, %v4495
        %v4497 = vrot.slane %v4254, %v4496
        %v4498 = vcombine.high %v4497, %v4497
        %v4500 = vunpack.c.l.s4 1966171168
        %v4501 = vunpack.c.0.s8 %v4500
        %v4502 = vlaneseq
        %v4503 = vshrl.u32 %v4502, 7
        %v4504 = vsub.s32 %v4501, %v4503
        %v4505 = vrot.slane %v4497, %v4504
        %v4507 = vunpack.c.l.s4 1966171168
        %v4508 = vunpack.c.0.s8 %v4507
        %v4509 = vlaneseq
        %v4510 = vshrl.u32 %v4509, 7
        %v4511 = vsub.s32 %v4508, %v4510
        %v4512 = vrot.slane %v4498, %v4511
        %v4513 = vcombine.high %v4505, %v4505
        %v4514 = vcombine.high %v4512, %v4512
        %v4516 = vunpack.c.l.s4 1966171168
        %v4517 = vunpack.c.0.s8 %v4516
        %v4518 = vlaneseq
        %v4519 = vshrl.u32 %v4518, 7
        %v4520 = vsub.s32 %v4517, %v4519
        %v4521 = vrot.slane %v4255, %v4520
        %v4522 = vcombine.high %v4521, %v4521
        %v4524 = vunpack.c.l.s4 1966171168
        %v4525 = vunpack.c.0.s8 %v4524
        %v4526 = vlaneseq
        %v4527 = vshrl.u32 %v4526, 7
        %v4528 = vsub.s32 %v4525, %v4527
        %v4529 = vrot.slane %v4521, %v4528
        %v4531 = vunpack.c.l.s4 1966171168
        %v4532 = vunpack.c.0.s8 %v4531
        %v4533 = vlaneseq
        %v4534 = vshrl.u32 %v4533, 7
        %v4535 = vsub.s32 %v4532, %v4534
        %v4536 = vrot.slane %v4522, %v4535
        %v4537 = vcombine.high %v4529, %v4529
        %v4538 = vcombine.high %v4536, %v4536
        %v4540 = vunpack.c.l.s4 1966171168
        %v4541 = vunpack.c.0.s8 %v4540
        %v4542 = vlaneseq
        %v4543 = vshrl.u32 %v4542, 7
        %v4544 = vsub.s32 %v4541, %v4543
        %v4545 = vrot.slane %v4256, %v4544
        %v4546 = vcombine.high %v4545, %v4545
        %v4548 = vunpack.c.l.s4 1966171168
        %v4549 = vunpack.c.0.s8 %v4548
        %v4550 = vlaneseq
        %v4551 = vshrl.u32 %v4550, 7
        %v4552 = vsub.s32 %v4549, %v4551
        %v4553 = vrot.slane %v4545, %v4552
        %v4555 = vunpack.c.l.s4 1966171168
        %v4556 = vunpack.c.0.s8 %v4555
        %v4557 = vlaneseq
        %v4558 = vshrl.u32 %v4557, 7
        %v4559 = vsub.s32 %v4556, %v4558
        %v4560 = vrot.slane %v4546, %v4559
        %v4561 = vcombine.high %v4553, %v4553
        %v4562 = vcombine.high %v4560, %v4560
        %v4564 = vunpack.c.l.s4 1966171168
        %v4565 = vunpack.c.0.s8 %v4564
        %v4566 = vlaneseq
        %v4567 = vshrl.u32 %v4566, 7
        %v4568 = vsub.s32 %v4565, %v4567
        %v4569 = vrot.slane %v4257, %v4568
        %v4570 = vcombine.high %v4569, %v4569
        %v4572 = vunpack.c.l.s4 1966171168
        %v4573 = vunpack.c.0.s8 %v4572
        %v4574 = vlaneseq
        %v4575 = vshrl.u32 %v4574, 7
        %v4576 = vsub.s32 %v4573, %v4575
        %v4577 = vrot.slane %v4569, %v4576
        %v4579 = vunpack.c.l.s4 1966171168
        %v4580 = vunpack.c.0.s8 %v4579
        %v4581 = vlaneseq
        %v4582 = vshrl.u32 %v4581, 7
        %v4583 = vsub.s32 %v4580, %v4582
        %v4584 = vrot.slane %v4570, %v4583
        %v4585 = vcombine.high %v4577, %v4577
        %v4586 = vcombine.high %v4584, %v4584
        %v4588 = vunpack.c.l.s4 1966171168
        %v4589 = vunpack.c.0.s8 %v4588
        %v4590 = vlaneseq
        %v4591 = vshrl.u32 %v4590, 7
        %v4592 = vsub.s32 %v4589, %v4591
        %v4593 = vrot.slane %v4258, %v4592
        %v4594 = vcombine.high %v4593, %v4593
        %v4596 = vunpack.c.l.s4 1966171168
        %v4597 = vunpack.c.0.s8 %v4596
        %v4598 = vlaneseq
        %v4599 = vshrl.u32 %v4598, 7
        %v4600 = vsub.s32 %v4597, %v4599
        %v4601 = vrot.slane %v4593, %v4600
        %v4603 = vunpack.c.l.s4 1966171168
        %v4604 = vunpack.c.0.s8 %v4603
        %v4605 = vlaneseq
        %v4606 = vshrl.u32 %v4605, 7
        %v4607 = vsub.s32 %v4604, %v4606
        %v4608 = vrot.slane %v4594, %v4607
        %v4609 = vcombine.high %v4601, %v4601
        %v4610 = vcombine.high %v4608, %v4608
        %v4612 = vunpack.c.l.s4 1966171168
        %v4613 = vunpack.c.0.s8 %v4612
        %v4614 = vlaneseq
        %v4615 = vshrl.u32 %v4614, 7
        %v4616 = vsub.s32 %v4613, %v4615
        %v4617 = vrot.slane %v4259, %v4616
        %v4618 = vcombine.high %v4617, %v4617
        %v4620 = vunpack.c.l.s4 1966171168
        %v4621 = vunpack.c.0.s8 %v4620
        %v4622 = vlaneseq
        %v4623 = vshrl.u32 %v4622, 7
        %v4624 = vsub.s32 %v4621, %v4623
        %v4625 = vrot.slane %v4617, %v4624
        %v4627 = vunpack.c.l.s4 1966171168
        %v4628 = vunpack.c.0.s8 %v4627
        %v4629 = vlaneseq
        %v4630 = vshrl.u32 %v4629, 7
        %v4631 = vsub.s32 %v4628, %v4630
        %v4632 = vrot.slane %v4618, %v4631
        %v4633 = vcombine.high %v4625, %v4625
        %v4634 = vcombine.high %v4632, %v4632
        %v4635 = vunpack.i.l.s16 %v4289
        %v4636 = vunpack.i.h.s16 %v4289
        %v4637 = vunpack.i.l.s16 %v4296
        %v4638 = vunpack.i.h.s16 %v4296
        %v4639 = vunpack.i.l.s16 %v4297
        %v4640 = vunpack.i.h.s16 %v4297
        %v4641 = vunpack.i.l.s16 %v4298
        %v4642 = vunpack.i.l.s16 %v4313
        %v4643 = vunpack.i.h.s16 %v4313
        %v4644 = vunpack.i.l.s16 %v4320
        %v4645 = vunpack.i.h.s16 %v4320
        %v4646 = vunpack.i.l.s16 %v4321
        %v4647 = vunpack.i.h.s16 %v4321
        %v4648 = vunpack.i.l.s16 %v4322
        %v4649 = vunpack.i.l.s16 %v4337
        %v4650 = vunpack.i.h.s16 %v4337
        %v4651 = vunpack.i.l.s16 %v4344
        %v4652 = vunpack.i.h.s16 %v4344
        %v4653 = vunpack.i.l.s16 %v4345
        %v4654 = vunpack.i.h.s16 %v4345
        %v4655 = vunpack.i.l.s16 %v4346
        %v4656 = vunpack.i.l.s16 %v4361
        %v4657 = vunpack.i.h.s16 %v4361
        %v4658 = vunpack.i.l.s16 %v4368
        %v4659 = vunpack.i.h.s16 %v4368
        %v4660 = vunpack.i.l.s16 %v4369
        %v4661 = vunpack.i.h.s16 %v4369
        %v4662 = vunpack.i.l.s16 %v4370
        %v4663 = vunpack.i.l.s16 %v4385
        %v4664 = vunpack.i.h.s16 %v4385
        %v4665 = vunpack.i.l.s16 %v4392
        %v4666 = vunpack.i.h.s16 %v4392
        %v4667 = vunpack.i.l.s16 %v4393
        %v4668 = vunpack.i.h.s16 %v4393
        %v4669 = vunpack.i.l.s16 %v4394
        %v4670 = vunpack.i.l.s16 %v4409
        %v4671 = vunpack.i.h.s16 %v4409
        %v4672 = vunpack.i.l.s16 %v4416
        %v4673 = vunpack.i.h.s16 %v4416
        %v4674 = vunpack.i.l.s16 %v4417
        %v4675 = vunpack.i.h.s16 %v4417
        %v4676 = vunpack.i.l.s16 %v4418
        %v4677 = vunpack.i.l.s16 %v4433
        %v4678 = vunpack.i.h.s16 %v4433
        %v4679 = vunpack.i.l.s16 %v4440
        %v4680 = vunpack.i.h.s16 %v4440
        %v4681 = vunpack.i.l.s16 %v4441
        %v4682 = vunpack.i.h.s16 %v4441
        %v4683 = vunpack.i.l.s16 %v4442
        %v4684 = vunpack.i.l.s16 %v4457
        %v4685 = vunpack.i.h.s16 %v4457
        %v4686 = vunpack.i.l.s16 %v4464
        %v4687 = vunpack.i.h.s16 %v4464
        %v4688 = vunpack.i.l.s16 %v4465
        %v4689 = vunpack.i.h.s16 %v4465
        %v4690 = vunpack.i.l.s16 %v4466
        %v4691 = vunpack.i.l.s16 %v4481
        %v4692 = vunpack.i.h.s16 %v4481
        %v4693 = vunpack.i.l.s16 %v4488
        %v4694 = vunpack.i.h.s16 %v4488
        %v4695 = vunpack.i.l.s16 %v4489
        %v4696 = vunpack.i.h.s16 %v4489
        %v4697 = vunpack.i.l.s16 %v4490
        %v4698 = vunpack.i.l.s16 %v4505
        %v4699 = vunpack.i.h.s16 %v4505
        %v4700 = vunpack.i.l.s16 %v4512
        %v4701 = vunpack.i.h.s16 %v4512
        %v4702 = vunpack.i.l.s16 %v4513
        %v4703 = vunpack.i.h.s16 %v4513
        %v4704 = vunpack.i.l.s16 %v4514
        %v4705 = vunpack.i.l.s16 %v4529
        %v4706 = vunpack.i.h.s16 %v4529
        %v4707 = vunpack.i.l.s16 %v4536
        %v4708 = vunpack.i.h.s16 %v4536
        %v4709 = vunpack.i.l.s16 %v4537
        %v4710 = vunpack.i.h.s16 %v4537
        %v4711 = vunpack.i.l.s16 %v4538
        %v4712 = vunpack.i.l.s16 %v4553
        %v4713 = vunpack.i.h.s16 %v4553
        %v4714 = vunpack.i.l.s16 %v4560
        %v4715 = vunpack.i.h.s16 %v4560
        %v4716 = vunpack.i.l.s16 %v4561
        %v4717 = vunpack.i.h.s16 %v4561
        %v4718 = vunpack.i.l.s16 %v4562
        %v4719 = vunpack.i.l.s16 %v4577
        %v4720 = vunpack.i.h.s16 %v4577
        %v4721 = vunpack.i.l.s16 %v4584
        %v4722 = vunpack.i.h.s16 %v4584
        %v4723 = vunpack.i.l.s16 %v4585
        %v4724 = vunpack.i.h.s16 %v4585
        %v4725 = vunpack.i.l.s16 %v4586
        %v4726 = vunpack.i.l.s16 %v4601
        %v4727 = vunpack.i.h.s16 %v4601
        %v4728 = vunpack.i.l.s16 %v4608
        %v4729 = vunpack.i.h.s16 %v4608
        %v4730 = vunpack.i.l.s16 %v4609
        %v4731 = vunpack.i.h.s16 %v4609
        %v4732 = vunpack.i.l.s16 %v4610
        %v4733 = vunpack.i.l.s16 %v4625
        %v4734 = vunpack.i.h.s16 %v4625
        %v4735 = vunpack.i.l.s16 %v4632
        %v4736 = vunpack.i.h.s16 %v4632
        %v4737 = vunpack.i.l.s16 %v4633
        %v4738 = vunpack.i.h.s16 %v4633
        %v4739 = vunpack.i.l.s16 %v4634
        %s4740 = scalar_lea.vmem %s2, 8
        %v4741 = vld [vmem:[%s4740] sm:$0x3]
        %v4742 = vpack.i.b16 %v4636, %v4635
        %v4743 = vpack.i.b16 %v4638, %v4637
        %v4744 = vpack.i.b16 %v4640, %v4639
        %v4745 = vpack.i.b16 %v4642, %v4641
        %v4746 = vpack.i.b16 %v4644, %v4643
        %v4747 = vpack.i.b16 %v4646, %v4645
        %v4748 = vpack.i.b16 %v4648, %v4647
        %v4749 = vpack.i.b16 %v4650, %v4649
        %v4750 = vpack.i.b16 %v4652, %v4651
        %v4751 = vpack.i.b16 %v4654, %v4653
        %v4752 = vpack.i.b16 %v4656, %v4655
        %v4753 = vpack.i.b16 %v4658, %v4657
        %v4754 = vpack.i.b16 %v4660, %v4659
        %v4755 = vpack.i.b16 %v4662, %v4661
        %v4756 = vpack.i.b16 %v4664, %v4663
        %v4757 = vpack.i.b16 %v4666, %v4665
        %v4758 = vpack.i.b16 %v4668, %v4667
        %v4759 = vpack.i.b16 %v4670, %v4669
        %v4760 = vpack.i.b16 %v4672, %v4671
        %v4761 = vpack.i.b16 %v4674, %v4673
        %v4762 = vpack.i.b16 %v4676, %v4675
        %v4763 = vpack.i.b16 %v4678, %v4677
        %v4764 = vpack.i.b16 %v4680, %v4679
        %v4765 = vpack.i.b16 %v4682, %v4681
        %v4766 = vpack.i.b16 %v4684, %v4683
        %v4767 = vpack.i.b16 %v4686, %v4685
        %v4768 = vpack.i.b16 %v4688, %v4687
        %v4769 = vpack.i.b16 %v4690, %v4689
        %v4770 = vpack.i.b16 %v4692, %v4691
        %v4771 = vpack.i.b16 %v4694, %v4693
        %v4772 = vpack.i.b16 %v4696, %v4695
        %v4773 = vpack.i.b16 %v4698, %v4697
        %v4774 = vpack.i.b16 %v4700, %v4699
        %v4775 = vpack.i.b16 %v4702, %v4701
        %v4776 = vpack.i.b16 %v4704, %v4703
        %v4777 = vpack.i.b16 %v4706, %v4705
        %v4778 = vpack.i.b16 %v4708, %v4707
        %v4779 = vpack.i.b16 %v4710, %v4709
        %v4780 = vpack.i.b16 %v4712, %v4711
        %v4781 = vpack.i.b16 %v4714, %v4713
        %v4782 = vpack.i.b16 %v4716, %v4715
        %v4783 = vpack.i.b16 %v4718, %v4717
        %v4784 = vpack.i.b16 %v4720, %v4719
        %v4785 = vpack.i.b16 %v4722, %v4721
        %v4786 = vpack.i.b16 %v4724, %v4723
        %v4787 = vpack.i.b16 %v4726, %v4725
        %v4788 = vpack.i.b16 %v4728, %v4727
        %v4789 = vpack.i.b16 %v4730, %v4729
        %v4790 = vpack.i.b16 %v4732, %v4731
        %v4791 = vpack.i.b16 %v4734, %v4733
        %v4792 = vpack.i.b16 %v4736, %v4735
        %v4793 = vpack.i.b16 %v4738, %v4737
        %v4795 = vcombine.low %v4742, %v4743
        %v4796 = vcombine.low %v4744, %v4745
        %v4797 = vcombine.low %v4746, %v4747
        %v4798 = vcombine.low %v4748, %v4749
        %v4800 = vunpack.c.l.s4 1966171168
        %v4801 = vunpack.c.0.s8 %v4800
        %v4802 = vlaneseq
        %v4803 = vshrl.u32 %v4802, 7
        %v4804 = vsub.s32 %v4801, %v4803
        %v4805 = vrot.slane %v4795, %v4804
        %v4807 = vunpack.c.l.s4 1966171168
        %v4808 = vunpack.c.0.s8 %v4807
        %v4809 = vlaneseq
        %v4810 = vshrl.u32 %v4809, 7
        %v4811 = vsub.s32 %v4808, %v4810
        %v4812 = vrot.slane %v4796, %v4811
        %v4814 = vunpack.c.l.s4 1966171168
        %v4815 = vunpack.c.0.s8 %v4814
        %v4816 = vlaneseq
        %v4817 = vshrl.u32 %v4816, 7
        %v4818 = vsub.s32 %v4815, %v4817
        %v4819 = vrot.slane %v4797, %v4818
        %v4821 = vunpack.c.l.s4 1966171168
        %v4822 = vunpack.c.0.s8 %v4821
        %v4823 = vlaneseq
        %v4824 = vshrl.u32 %v4823, 7
        %v4825 = vsub.s32 %v4822, %v4824
        %v4826 = vrot.slane %v4798, %v4825
        %v4827 = vcombine.low %v4805, %v4812
        %v4828 = vcombine.low %v4819, %v4826
        %v4830 = vunpack.c.l.s4 1966171168
        %v4831 = vunpack.c.0.s8 %v4830
        %v4832 = vlaneseq
        %v4833 = vshrl.u32 %v4832, 7
        %v4834 = vsub.s32 %v4831, %v4833
        %v4835 = vrot.slane %v4827, %v4834
        %v4837 = vunpack.c.l.s4 1966171168
        %v4838 = vunpack.c.0.s8 %v4837
        %v4839 = vlaneseq
        %v4840 = vshrl.u32 %v4839, 7
        %v4841 = vsub.s32 %v4838, %v4840
        %v4842 = vrot.slane %v4828, %v4841
        %v4843 = vcombine.low %v4835, %v4842
        %v4844 = vcombine.low %v4750, %v4751
        %v4845 = vcombine.low %v4752, %v4753
        %v4846 = vcombine.low %v4754, %v4755
        %v4847 = vcombine.low %v4756, %v4757
        %v4849 = vunpack.c.l.s4 1966171168
        %v4850 = vunpack.c.0.s8 %v4849
        %v4851 = vlaneseq
        %v4852 = vshrl.u32 %v4851, 7
        %v4853 = vsub.s32 %v4850, %v4852
        %v4854 = vrot.slane %v4844, %v4853
        %v4856 = vunpack.c.l.s4 1966171168
        %v4857 = vunpack.c.0.s8 %v4856
        %v4858 = vlaneseq
        %v4859 = vshrl.u32 %v4858, 7
        %v4860 = vsub.s32 %v4857, %v4859
        %v4861 = vrot.slane %v4845, %v4860
        %v4863 = vunpack.c.l.s4 1966171168
        %v4864 = vunpack.c.0.s8 %v4863
        %v4865 = vlaneseq
        %v4866 = vshrl.u32 %v4865, 7
        %v4867 = vsub.s32 %v4864, %v4866
        %v4868 = vrot.slane %v4846, %v4867
        %v4870 = vunpack.c.l.s4 1966171168
        %v4871 = vunpack.c.0.s8 %v4870
        %v4872 = vlaneseq
        %v4873 = vshrl.u32 %v4872, 7
        %v4874 = vsub.s32 %v4871, %v4873
        %v4875 = vrot.slane %v4847, %v4874
        %v4876 = vcombine.low %v4854, %v4861
        %v4877 = vcombine.low %v4868, %v4875
        %v4879 = vunpack.c.l.s4 1966171168
        %v4880 = vunpack.c.0.s8 %v4879
        %v4881 = vlaneseq
        %v4882 = vshrl.u32 %v4881, 7
        %v4883 = vsub.s32 %v4880, %v4882
        %v4884 = vrot.slane %v4876, %v4883
        %v4886 = vunpack.c.l.s4 1966171168
        %v4887 = vunpack.c.0.s8 %v4886
        %v4888 = vlaneseq
        %v4889 = vshrl.u32 %v4888, 7
        %v4890 = vsub.s32 %v4887, %v4889
        %v4891 = vrot.slane %v4877, %v4890
        %v4892 = vcombine.low %v4884, %v4891
        %v4893 = vcombine.low %v4758, %v4759
        %v4894 = vcombine.low %v4760, %v4761
        %v4895 = vcombine.low %v4762, %v4763
        %v4896 = vcombine.low %v4764, %v4765
        %v4898 = vunpack.c.l.s4 1966171168
        %v4899 = vunpack.c.0.s8 %v4898
        %v4900 = vlaneseq
        %v4901 = vshrl.u32 %v4900, 7
        %v4902 = vsub.s32 %v4899, %v4901
        %v4903 = vrot.slane %v4893, %v4902
        %v4905 = vunpack.c.l.s4 1966171168
        %v4906 = vunpack.c.0.s8 %v4905
        %v4907 = vlaneseq
        %v4908 = vshrl.u32 %v4907, 7
        %v4909 = vsub.s32 %v4906, %v4908
        %v4910 = vrot.slane %v4894, %v4909
        %v4912 = vunpack.c.l.s4 1966171168
        %v4913 = vunpack.c.0.s8 %v4912
        %v4914 = vlaneseq
        %v4915 = vshrl.u32 %v4914, 7
        %v4916 = vsub.s32 %v4913, %v4915
        %v4917 = vrot.slane %v4895, %v4916
        %v4919 = vunpack.c.l.s4 1966171168
        %v4920 = vunpack.c.0.s8 %v4919
        %v4921 = vlaneseq
        %v4922 = vshrl.u32 %v4921, 7
        %v4923 = vsub.s32 %v4920, %v4922
        %v4924 = vrot.slane %v4896, %v4923
        %v4925 = vcombine.low %v4903, %v4910
        %v4926 = vcombine.low %v4917, %v4924
        %v4928 = vunpack.c.l.s4 1966171168
        %v4929 = vunpack.c.0.s8 %v4928
        %v4930 = vlaneseq
        %v4931 = vshrl.u32 %v4930, 7
        %v4932 = vsub.s32 %v4929, %v4931
        %v4933 = vrot.slane %v4925, %v4932
        %v4935 = vunpack.c.l.s4 1966171168
        %v4936 = vunpack.c.0.s8 %v4935
        %v4937 = vlaneseq
        %v4938 = vshrl.u32 %v4937, 7
        %v4939 = vsub.s32 %v4936, %v4938
        %v4940 = vrot.slane %v4926, %v4939
        %v4941 = vcombine.low %v4933, %v4940
        %v4942 = vcombine.low %v4766, %v4767
        %v4943 = vcombine.low %v4768, %v4769
        %v4944 = vcombine.low %v4770, %v4771
        %v4945 = vcombine.low %v4772, %v4773
        %v4947 = vunpack.c.l.s4 1966171168
        %v4948 = vunpack.c.0.s8 %v4947
        %v4949 = vlaneseq
        %v4950 = vshrl.u32 %v4949, 7
        %v4951 = vsub.s32 %v4948, %v4950
        %v4952 = vrot.slane %v4942, %v4951
        %v4954 = vunpack.c.l.s4 1966171168
        %v4955 = vunpack.c.0.s8 %v4954
        %v4956 = vlaneseq
        %v4957 = vshrl.u32 %v4956, 7
        %v4958 = vsub.s32 %v4955, %v4957
        %v4959 = vrot.slane %v4943, %v4958
        %v4961 = vunpack.c.l.s4 1966171168
        %v4962 = vunpack.c.0.s8 %v4961
        %v4963 = vlaneseq
        %v4964 = vshrl.u32 %v4963, 7
        %v4965 = vsub.s32 %v4962, %v4964
        %v4966 = vrot.slane %v4944, %v4965
        %v4968 = vunpack.c.l.s4 1966171168
        %v4969 = vunpack.c.0.s8 %v4968
        %v4970 = vlaneseq
        %v4971 = vshrl.u32 %v4970, 7
        %v4972 = vsub.s32 %v4969, %v4971
        %v4973 = vrot.slane %v4945, %v4972
        %v4974 = vcombine.low %v4952, %v4959
        %v4975 = vcombine.low %v4966, %v4973
        %v4977 = vunpack.c.l.s4 1966171168
        %v4978 = vunpack.c.0.s8 %v4977
        %v4979 = vlaneseq
        %v4980 = vshrl.u32 %v4979, 7
        %v4981 = vsub.s32 %v4978, %v4980
        %v4982 = vrot.slane %v4974, %v4981
        %v4984 = vunpack.c.l.s4 1966171168
        %v4985 = vunpack.c.0.s8 %v4984
        %v4986 = vlaneseq
        %v4987 = vshrl.u32 %v4986, 7
        %v4988 = vsub.s32 %v4985, %v4987
        %v4989 = vrot.slane %v4975, %v4988
        %v4990 = vcombine.low %v4982, %v4989
        %v4991 = vcombine.low %v4774, %v4775
        %v4992 = vcombine.low %v4776, %v4777
        %v4993 = vcombine.low %v4778, %v4779
        %v4994 = vcombine.low %v4780, %v4781
        %v4996 = vunpack.c.l.s4 1966171168
        %v4997 = vunpack.c.0.s8 %v4996
        %v4998 = vlaneseq
        %v4999 = vshrl.u32 %v4998, 7
        %v5000 = vsub.s32 %v4997, %v4999
        %v5001 = vrot.slane %v4991, %v5000
        %v5003 = vunpack.c.l.s4 1966171168
        %v5004 = vunpack.c.0.s8 %v5003
        %v5005 = vlaneseq
        %v5006 = vshrl.u32 %v5005, 7
        %v5007 = vsub.s32 %v5004, %v5006
        %v5008 = vrot.slane %v4992, %v5007
        %v5010 = vunpack.c.l.s4 1966171168
        %v5011 = vunpack.c.0.s8 %v5010
        %v5012 = vlaneseq
        %v5013 = vshrl.u32 %v5012, 7
        %v5014 = vsub.s32 %v5011, %v5013
        %v5015 = vrot.slane %v4993, %v5014
        %v5017 = vunpack.c.l.s4 1966171168
        %v5018 = vunpack.c.0.s8 %v5017
        %v5019 = vlaneseq
        %v5020 = vshrl.u32 %v5019, 7
        %v5021 = vsub.s32 %v5018, %v5020
        %v5022 = vrot.slane %v4994, %v5021
        %v5023 = vcombine.low %v5001, %v5008
        %v5024 = vcombine.low %v5015, %v5022
        %v5026 = vunpack.c.l.s4 1966171168
        %v5027 = vunpack.c.0.s8 %v5026
        %v5028 = vlaneseq
        %v5029 = vshrl.u32 %v5028, 7
        %v5030 = vsub.s32 %v5027, %v5029
        %v5031 = vrot.slane %v5023, %v5030
        %v5033 = vunpack.c.l.s4 1966171168
        %v5034 = vunpack.c.0.s8 %v5033
        %v5035 = vlaneseq
        %v5036 = vshrl.u32 %v5035, 7
        %v5037 = vsub.s32 %v5034, %v5036
        %v5038 = vrot.slane %v5024, %v5037
        %v5039 = vcombine.low %v5031, %v5038
        %v5040 = vcombine.low %v4782, %v4783
        %v5041 = vcombine.low %v4784, %v4785
        %v5042 = vcombine.low %v4786, %v4787
        %v5043 = vcombine.low %v4788, %v4789
        %v5045 = vunpack.c.l.s4 1966171168
        %v5046 = vunpack.c.0.s8 %v5045
        %v5047 = vlaneseq
        %v5048 = vshrl.u32 %v5047, 7
        %v5049 = vsub.s32 %v5046, %v5048
        %v5050 = vrot.slane %v5040, %v5049
        %v5052 = vunpack.c.l.s4 1966171168
        %v5053 = vunpack.c.0.s8 %v5052
        %v5054 = vlaneseq
        %v5055 = vshrl.u32 %v5054, 7
        %v5056 = vsub.s32 %v5053, %v5055
        %v5057 = vrot.slane %v5041, %v5056
        %v5059 = vunpack.c.l.s4 1966171168
        %v5060 = vunpack.c.0.s8 %v5059
        %v5061 = vlaneseq
        %v5062 = vshrl.u32 %v5061, 7
        %v5063 = vsub.s32 %v5060, %v5062
        %v5064 = vrot.slane %v5042, %v5063
        %v5066 = vunpack.c.l.s4 1966171168
        %v5067 = vunpack.c.0.s8 %v5066
        %v5068 = vlaneseq
        %v5069 = vshrl.u32 %v5068, 7
        %v5070 = vsub.s32 %v5067, %v5069
        %v5071 = vrot.slane %v5043, %v5070
        %v5072 = vcombine.low %v5050, %v5057
        %v5073 = vcombine.low %v5064, %v5071
        %v5075 = vunpack.c.l.s4 1966171168
        %v5076 = vunpack.c.0.s8 %v5075
        %v5077 = vlaneseq
        %v5078 = vshrl.u32 %v5077, 7
        %v5079 = vsub.s32 %v5076, %v5078
        %v5080 = vrot.slane %v5072, %v5079
        %v5082 = vunpack.c.l.s4 1966171168
        %v5083 = vunpack.c.0.s8 %v5082
        %v5084 = vlaneseq
        %v5085 = vshrl.u32 %v5084, 7
        %v5086 = vsub.s32 %v5083, %v5085
        %v5087 = vrot.slane %v5073, %v5086
        %v5088 = vcombine.low %v5080, %v5087
        %v5089 = vcombine.low %v4790, %v4791
        %v5090 = vcombine.low %v4792, %v4793
        %v5092 = vunpack.c.l.s4 1966171168
        %v5093 = vunpack.c.0.s8 %v5092
        %v5094 = vlaneseq
        %v5095 = vshrl.u32 %v5094, 7
        %v5096 = vsub.s32 %v5093, %v5095
        %v5097 = vrot.slane %v5089, %v5096
        %v5099 = vunpack.c.l.s4 1966171168
        %v5100 = vunpack.c.0.s8 %v5099
        %v5101 = vlaneseq
        %v5102 = vshrl.u32 %v5101, 7
        %v5103 = vsub.s32 %v5100, %v5102
        %v5104 = vrot.slane %v5090, %v5103
        %v5106 = vunpack.c.l.s4 1966171168
        %v5107 = vunpack.c.0.s8 %v5106
        %v5108 = vlaneseq
        %v5109 = vshrl.u32 %v5108, 7
        %v5110 = vsub.s32 %v5107, %v5109
        %v5111 = vrot.slane %v4739, %v5110
        %v5112 = vcombine.low %v5097, %v5104
        %v5114 = vunpack.c.l.s4 1966171168
        %v5115 = vunpack.c.0.s8 %v5114
        %v5116 = vlaneseq
        %v5117 = vshrl.u32 %v5116, 7
        %v5118 = vsub.s32 %v5115, %v5117
        %v5119 = vrot.slane %v5112, %v5118
        %v5121 = vunpack.c.l.s4 1966171168
        %v5122 = vunpack.c.0.s8 %v5121
        %v5123 = vlaneseq
        %v5124 = vshrl.u32 %v5123, 7
        %v5125 = vsub.s32 %v5122, %v5124
        %v5126 = vrot.slane %v5111, %v5125
        %v5127 = vcombine.low %v5119, %v5126
        %v5129 = vsel %vm1609, %v4843, 0
        %v5132 = vsel %vm1609, %v4892, 0
        %v5135 = vsel %vm1609, %v4941, 0
        %v5138 = vsel %vm1609, %v4990, 0
        %v5141 = vsel %vm1609, %v5039, 0
        %v5144 = vsel %vm1609, %v5088, 0
        %v5147 = vsel %vm1609, %v5127, 0
        %v5150 = vsel %vm1631, %v4741, 0
        %5152 = vmatprep.subr.bf16.mxu0 0
        %5153 = vmatpush1.bf16.msra.mxu0 %v5150
        %5154 = vmatprep.subr.bf16.mxu0 0
        %5155 = vmatpush1.bf16.msra.mxu0 0
        %5156 = vmatprep.subr.bf16.mxu0 0
        %5157 = vmatpush1.bf16.msra.mxu0 0
        %5158 = vmatprep.subr.bf16.mxu0 0
        %5159 = vmatpush1.bf16.msra.mxu0 0
        %5160 = vmatprep.subr.bf16.mxu0 0
        %5161 = vmatpush1.bf16.msra.mxu0 0
        %5162 = vmatprep.subr.bf16.mxu0 0
        %5163 = vmatpush1.bf16.msra.mxu0 0
        %5164 = vmatprep.subr.bf16.mxu0 0
        %5165 = vmatpush1.bf16.msra.mxu0 0
        %5166 = vmatprep.subr.bf16.mxu0 0
        %5167 = vmatpush1.bf16.msra.mxu0 0
        %5168 = vmatprep.subr.bf16.mxu0 0
        %5169 = vmatpush1.bf16.msra.mxu0 0
        %5170 = vmatprep.subr.bf16.mxu0 0
        %5171 = vmatpush1.bf16.msra.mxu0 0
        %5172 = vmatprep.subr.bf16.mxu0 0
        %5173 = vmatpush1.bf16.msra.mxu0 0
        %5174 = vmatprep.subr.bf16.mxu0 0
        %5175 = vmatpush1.bf16.msra.mxu0 0
        %5176 = vmatprep.subr.bf16.mxu0 0
        %5177 = vmatpush1.bf16.msra.mxu0 0
        %5178 = vmatprep.subr.bf16.mxu0 0
        %5179 = vmatpush1.bf16.msra.mxu0 0
        %5180 = vmatprep.subr.bf16.mxu0 0
        %5181 = vmatpush1.bf16.msra.mxu0 0
        %5182 = vmatprep.subr.bf16.mxu0 0
        %5183 = vmatpush1.bf16.msra.mxu0 0
        %5184 = vmatprep.mubr.bf16.mxu0 0
        %5185 = vmatmul.mubr.bf16.gmra.mrb[0].mxu0 %v5129
        %v5186 = vpop.f32.mrb[0].mxu0
        %v5187 = vadd.f32 0.0, %v5186
        %v5188 = vpop.f32.mrb[0].mxu0
        %v5189 = vpop.f32.mrb[0].mxu0
        %v5190 = vadd.f32 0.0, %v5189
        %v5191 = vpop.f32.mrb[0].mxu0
        %5192 = vmatprep.mubr.bf16.mxu0 0
        %5193 = vmatmul.mubr.bf16.gmra.mrb[0].mxu0 %v5132
        %v5194 = vpop.f32.mrb[0].mxu0
        %v5195 = vadd.f32 0.0, %v5194
        %v5196 = vpop.f32.mrb[0].mxu0
        %v5197 = vpop.f32.mrb[0].mxu0
        %v5198 = vadd.f32 0.0, %v5197
        %v5199 = vpop.f32.mrb[0].mxu0
        %5200 = vmatprep.mubr.bf16.mxu0 0
        %5201 = vmatmul.mubr.bf16.gmra.mrb[0].mxu0 %v5135
        %v5202 = vpop.f32.mrb[0].mxu0
        %v5203 = vadd.f32 0.0, %v5202
        %v5204 = vpop.f32.mrb[0].mxu0
        %v5205 = vpop.f32.mrb[0].mxu0
        %v5206 = vadd.f32 0.0, %v5205
        %v5207 = vpop.f32.mrb[0].mxu0
        %5208 = vmatprep.mubr.bf16.mxu0 0
        %5209 = vmatmul.mubr.bf16.gmra.mrb[0].mxu0 %v5138
        %v5210 = vpop.f32.mrb[0].mxu0
        %v5211 = vadd.f32 0.0, %v5210
        %v5212 = vpop.f32.mrb[0].mxu0
        %v5213 = vpop.f32.mrb[0].mxu0
        %v5214 = vadd.f32 0.0, %v5213
        %v5215 = vpop.f32.mrb[0].mxu0
        %5216 = vmatprep.mubr.bf16.mxu0 0
        %5217 = vmatmul.mubr.bf16.gmra.mrb[0].mxu0 %v5141
        %v5218 = vpop.f32.mrb[0].mxu0
        %v5219 = vadd.f32 0.0, %v5218
        %v5220 = vpop.f32.mrb[0].mxu0
        %v5221 = vpop.f32.mrb[0].mxu0
        %v5222 = vadd.f32 0.0, %v5221
        %v5223 = vpop.f32.mrb[0].mxu0
        %5224 = vmatprep.mubr.bf16.mxu0 0
        %5225 = vmatmul.mubr.bf16.gmra.mrb[0].mxu0 %v5144
        %v5226 = vpop.f32.mrb[0].mxu0
        %v5227 = vadd.f32 0.0, %v5226
        %v5228 = vpop.f32.mrb[0].mxu0
        %v5229 = vpop.f32.mrb[0].mxu0
        %v5230 = vadd.f32 0.0, %v5229
        %v5231 = vpop.f32.mrb[0].mxu0
        %5232 = vmatprep.mubr.bf16.mxu0 0
        %5233 = vmatmul.mubr.bf16.gmra.mrb[0].mxu0 %v5147
        %v5234 = vpop.f32.mrb[0].mxu0
        %v5235 = vadd.f32 0.0, %v5234
        %v5236 = vpop.f32.mrb[0].mxu0
        %v5237 = vpop.f32.mrb[0].mxu0
        %v5238 = vadd.f32 0.0, %v5237
        %v5239 = vpop.f32.mrb[0].mxu0
        %5240 = vdwg.mxu0
        %v5241 = vadd.f32 %v4230, %v5187
        %v5242 = vadd.f32 %v4231, %v5190
        %v5243 = vadd.f32 %v4232, %v5195
        %v5244 = vadd.f32 %v4233, %v5198
        %v5245 = vadd.f32 %v4234, %v5203
        %v5246 = vadd.f32 %v4235, %v5206
        %v5247 = vadd.f32 %v4236, %v5211
        %v5248 = vadd.f32 %v4237, %v5214
        %v5249 = vadd.f32 %v4238, %v5219
        %v5250 = vadd.f32 %v4239, %v5222
        %v5251 = vadd.f32 %v4240, %v5227
        %v5252 = vadd.f32 %v4241, %v5230
        %v5253 = vadd.f32 %v4242, %v5235
        %v5254 = vadd.f32 %v4243, %v5238
        %v5255 = vld [vmem:[%s3233] sm:$0xf]
        %v5256 = vld [vmem:[%s3233 + $0x4] sm:$0xf]
        %v5257 = vld [vmem:[%s3233 + $0x8] sm:$0xf]
        %v5258 = vld [vmem:[%s3233 + $0xc] sm:$0xf]
        %v5259 = vld [vmem:[%s3233 + $0x10] sm:$0xf]
        %v5260 = vld [vmem:[%s3233 + $0x14] sm:$0xf]
        %v5261 = vld [vmem:[%s3233 + $0x18] sm:$0xf]
        %v5262 = vld [vmem:[%s3233 + $0x1c] sm:$0xf]
        %v5263 = vld [vmem:[%s3233 + $0x20] sm:$0xf]
        %v5264 = vld [vmem:[%s3233 + $0x24] sm:$0xf]
        %v5265 = vld [vmem:[%s3233 + $0x28] sm:$0xf]
        %v5266 = vld [vmem:[%s3233 + $0x2c] sm:$0xf]
        %v5267 = vld [vmem:[%s3233 + $0x30] sm:$0xf]
        %v5268 = vld [vmem:[%s3233 + $0x34] sm:$0xf]
        %v5269 = vld [vmem:[%s3233 + $0x38] sm:$0xf]
        %v5286 = vunpack.c.l.s4 1966171168
        %v5287 = vunpack.c.0.s8 %v5286
        %v5288 = vlaneseq
        %v5289 = vshrl.u32 %v5288, 7
        %v5290 = vsub.s32 %v5287, %v5289
        %v5291 = vrot.slane %v5255, %v5290
        %v5292 = vcombine.high %v5291, %v5291
        %v5294 = vunpack.c.l.s4 1966171168
        %v5295 = vunpack.c.0.s8 %v5294
        %v5296 = vlaneseq
        %v5297 = vshrl.u32 %v5296, 7
        %v5298 = vsub.s32 %v5295, %v5297
        %v5299 = vrot.slane %v5291, %v5298
        %v5301 = vunpack.c.l.s4 1966171168
        %v5302 = vunpack.c.0.s8 %v5301
        %v5303 = vlaneseq
        %v5304 = vshrl.u32 %v5303, 7
        %v5305 = vsub.s32 %v5302, %v5304
        %v5306 = vrot.slane %v5292, %v5305
        %v5307 = vcombine.high %v5299, %v5299
        %v5308 = vcombine.high %v5306, %v5306
        %v5310 = vunpack.c.l.s4 1966171168
        %v5311 = vunpack.c.0.s8 %v5310
        %v5312 = vlaneseq
        %v5313 = vshrl.u32 %v5312, 7
        %v5314 = vsub.s32 %v5311, %v5313
        %v5315 = vrot.slane %v5256, %v5314
        %v5316 = vcombine.high %v5315, %v5315
        %v5318 = vunpack.c.l.s4 1966171168
        %v5319 = vunpack.c.0.s8 %v5318
        %v5320 = vlaneseq
        %v5321 = vshrl.u32 %v5320, 7
        %v5322 = vsub.s32 %v5319, %v5321
        %v5323 = vrot.slane %v5315, %v5322
        %v5325 = vunpack.c.l.s4 1966171168
        %v5326 = vunpack.c.0.s8 %v5325
        %v5327 = vlaneseq
        %v5328 = vshrl.u32 %v5327, 7
        %v5329 = vsub.s32 %v5326, %v5328
        %v5330 = vrot.slane %v5316, %v5329
        %v5331 = vcombine.high %v5323, %v5323
        %v5332 = vcombine.high %v5330, %v5330
        %v5334 = vunpack.c.l.s4 1966171168
        %v5335 = vunpack.c.0.s8 %v5334
        %v5336 = vlaneseq
        %v5337 = vshrl.u32 %v5336, 7
        %v5338 = vsub.s32 %v5335, %v5337
        %v5339 = vrot.slane %v5257, %v5338
        %v5340 = vcombine.high %v5339, %v5339
        %v5342 = vunpack.c.l.s4 1966171168
        %v5343 = vunpack.c.0.s8 %v5342
        %v5344 = vlaneseq
        %v5345 = vshrl.u32 %v5344, 7
        %v5346 = vsub.s32 %v5343, %v5345
        %v5347 = vrot.slane %v5339, %v5346
        %v5349 = vunpack.c.l.s4 1966171168
        %v5350 = vunpack.c.0.s8 %v5349
        %v5351 = vlaneseq
        %v5352 = vshrl.u32 %v5351, 7
        %v5353 = vsub.s32 %v5350, %v5352
        %v5354 = vrot.slane %v5340, %v5353
        %v5355 = vcombine.high %v5347, %v5347
        %v5356 = vcombine.high %v5354, %v5354
        %v5358 = vunpack.c.l.s4 1966171168
        %v5359 = vunpack.c.0.s8 %v5358
        %v5360 = vlaneseq
        %v5361 = vshrl.u32 %v5360, 7
        %v5362 = vsub.s32 %v5359, %v5361
        %v5363 = vrot.slane %v5258, %v5362
        %v5364 = vcombine.high %v5363, %v5363
        %v5366 = vunpack.c.l.s4 1966171168
        %v5367 = vunpack.c.0.s8 %v5366
        %v5368 = vlaneseq
        %v5369 = vshrl.u32 %v5368, 7
        %v5370 = vsub.s32 %v5367, %v5369
        %v5371 = vrot.slane %v5363, %v5370
        %v5373 = vunpack.c.l.s4 1966171168
        %v5374 = vunpack.c.0.s8 %v5373
        %v5375 = vlaneseq
        %v5376 = vshrl.u32 %v5375, 7
        %v5377 = vsub.s32 %v5374, %v5376
        %v5378 = vrot.slane %v5364, %v5377
        %v5379 = vcombine.high %v5371, %v5371
        %v5380 = vcombine.high %v5378, %v5378
        %v5382 = vunpack.c.l.s4 1966171168
        %v5383 = vunpack.c.0.s8 %v5382
        %v5384 = vlaneseq
        %v5385 = vshrl.u32 %v5384, 7
        %v5386 = vsub.s32 %v5383, %v5385
        %v5387 = vrot.slane %v5259, %v5386
        %v5388 = vcombine.high %v5387, %v5387
        %v5390 = vunpack.c.l.s4 1966171168
        %v5391 = vunpack.c.0.s8 %v5390
        %v5392 = vlaneseq
        %v5393 = vshrl.u32 %v5392, 7
        %v5394 = vsub.s32 %v5391, %v5393
        %v5395 = vrot.slane %v5387, %v5394
        %v5397 = vunpack.c.l.s4 1966171168
        %v5398 = vunpack.c.0.s8 %v5397
        %v5399 = vlaneseq
        %v5400 = vshrl.u32 %v5399, 7
        %v5401 = vsub.s32 %v5398, %v5400
        %v5402 = vrot.slane %v5388, %v5401
        %v5403 = vcombine.high %v5395, %v5395
        %v5404 = vcombine.high %v5402, %v5402
        %v5406 = vunpack.c.l.s4 1966171168
        %v5407 = vunpack.c.0.s8 %v5406
        %v5408 = vlaneseq
        %v5409 = vshrl.u32 %v5408, 7
        %v5410 = vsub.s32 %v5407, %v5409
        %v5411 = vrot.slane %v5260, %v5410
        %v5412 = vcombine.high %v5411, %v5411
        %v5414 = vunpack.c.l.s4 1966171168
        %v5415 = vunpack.c.0.s8 %v5414
        %v5416 = vlaneseq
        %v5417 = vshrl.u32 %v5416, 7
        %v5418 = vsub.s32 %v5415, %v5417
        %v5419 = vrot.slane %v5411, %v5418
        %v5421 = vunpack.c.l.s4 1966171168
        %v5422 = vunpack.c.0.s8 %v5421
        %v5423 = vlaneseq
        %v5424 = vshrl.u32 %v5423, 7
        %v5425 = vsub.s32 %v5422, %v5424
        %v5426 = vrot.slane %v5412, %v5425
        %v5427 = vcombine.high %v5419, %v5419
        %v5428 = vcombine.high %v5426, %v5426
        %v5430 = vunpack.c.l.s4 1966171168
        %v5431 = vunpack.c.0.s8 %v5430
        %v5432 = vlaneseq
        %v5433 = vshrl.u32 %v5432, 7
        %v5434 = vsub.s32 %v5431, %v5433
        %v5435 = vrot.slane %v5261, %v5434
        %v5436 = vcombine.high %v5435, %v5435
        %v5438 = vunpack.c.l.s4 1966171168
        %v5439 = vunpack.c.0.s8 %v5438
        %v5440 = vlaneseq
        %v5441 = vshrl.u32 %v5440, 7
        %v5442 = vsub.s32 %v5439, %v5441
        %v5443 = vrot.slane %v5435, %v5442
        %v5445 = vunpack.c.l.s4 1966171168
        %v5446 = vunpack.c.0.s8 %v5445
        %v5447 = vlaneseq
        %v5448 = vshrl.u32 %v5447, 7
        %v5449 = vsub.s32 %v5446, %v5448
        %v5450 = vrot.slane %v5436, %v5449
        %v5451 = vcombine.high %v5443, %v5443
        %v5452 = vcombine.high %v5450, %v5450
        %v5454 = vunpack.c.l.s4 1966171168
        %v5455 = vunpack.c.0.s8 %v5454
        %v5456 = vlaneseq
        %v5457 = vshrl.u32 %v5456, 7
        %v5458 = vsub.s32 %v5455, %v5457
        %v5459 = vrot.slane %v5262, %v5458
        %v5460 = vcombine.high %v5459, %v5459
        %v5462 = vunpack.c.l.s4 1966171168
        %v5463 = vunpack.c.0.s8 %v5462
        %v5464 = vlaneseq
        %v5465 = vshrl.u32 %v5464, 7
        %v5466 = vsub.s32 %v5463, %v5465
        %v5467 = vrot.slane %v5459, %v5466
        %v5469 = vunpack.c.l.s4 1966171168
        %v5470 = vunpack.c.0.s8 %v5469
        %v5471 = vlaneseq
        %v5472 = vshrl.u32 %v5471, 7
        %v5473 = vsub.s32 %v5470, %v5472
        %v5474 = vrot.slane %v5460, %v5473
        %v5475 = vcombine.high %v5467, %v5467
        %v5476 = vcombine.high %v5474, %v5474
        %v5478 = vunpack.c.l.s4 1966171168
        %v5479 = vunpack.c.0.s8 %v5478
        %v5480 = vlaneseq
        %v5481 = vshrl.u32 %v5480, 7
        %v5482 = vsub.s32 %v5479, %v5481
        %v5483 = vrot.slane %v5263, %v5482
        %v5484 = vcombine.high %v5483, %v5483
        %v5486 = vunpack.c.l.s4 1966171168
        %v5487 = vunpack.c.0.s8 %v5486
        %v5488 = vlaneseq
        %v5489 = vshrl.u32 %v5488, 7
        %v5490 = vsub.s32 %v5487, %v5489
        %v5491 = vrot.slane %v5483, %v5490
        %v5493 = vunpack.c.l.s4 1966171168
        %v5494 = vunpack.c.0.s8 %v5493
        %v5495 = vlaneseq
        %v5496 = vshrl.u32 %v5495, 7
        %v5497 = vsub.s32 %v5494, %v5496
        %v5498 = vrot.slane %v5484, %v5497
        %v5499 = vcombine.high %v5491, %v5491
        %v5500 = vcombine.high %v5498, %v5498
        %v5502 = vunpack.c.l.s4 1966171168
        %v5503 = vunpack.c.0.s8 %v5502
        %v5504 = vlaneseq
        %v5505 = vshrl.u32 %v5504, 7
        %v5506 = vsub.s32 %v5503, %v5505
        %v5507 = vrot.slane %v5264, %v5506
        %v5508 = vcombine.high %v5507, %v5507
        %v5510 = vunpack.c.l.s4 1966171168
        %v5511 = vunpack.c.0.s8 %v5510
        %v5512 = vlaneseq
        %v5513 = vshrl.u32 %v5512, 7
        %v5514 = vsub.s32 %v5511, %v5513
        %v5515 = vrot.slane %v5507, %v5514
        %v5517 = vunpack.c.l.s4 1966171168
        %v5518 = vunpack.c.0.s8 %v5517
        %v5519 = vlaneseq
        %v5520 = vshrl.u32 %v5519, 7
        %v5521 = vsub.s32 %v5518, %v5520
        %v5522 = vrot.slane %v5508, %v5521
        %v5523 = vcombine.high %v5515, %v5515
        %v5524 = vcombine.high %v5522, %v5522
        %v5526 = vunpack.c.l.s4 1966171168
        %v5527 = vunpack.c.0.s8 %v5526
        %v5528 = vlaneseq
        %v5529 = vshrl.u32 %v5528, 7
        %v5530 = vsub.s32 %v5527, %v5529
        %v5531 = vrot.slane %v5265, %v5530
        %v5532 = vcombine.high %v5531, %v5531
        %v5534 = vunpack.c.l.s4 1966171168
        %v5535 = vunpack.c.0.s8 %v5534
        %v5536 = vlaneseq
        %v5537 = vshrl.u32 %v5536, 7
        %v5538 = vsub.s32 %v5535, %v5537
        %v5539 = vrot.slane %v5531, %v5538
        %v5541 = vunpack.c.l.s4 1966171168
        %v5542 = vunpack.c.0.s8 %v5541
        %v5543 = vlaneseq
        %v5544 = vshrl.u32 %v5543, 7
        %v5545 = vsub.s32 %v5542, %v5544
        %v5546 = vrot.slane %v5532, %v5545
        %v5547 = vcombine.high %v5539, %v5539
        %v5548 = vcombine.high %v5546, %v5546
        %v5550 = vunpack.c.l.s4 1966171168
        %v5551 = vunpack.c.0.s8 %v5550
        %v5552 = vlaneseq
        %v5553 = vshrl.u32 %v5552, 7
        %v5554 = vsub.s32 %v5551, %v5553
        %v5555 = vrot.slane %v5266, %v5554
        %v5556 = vcombine.high %v5555, %v5555
        %v5558 = vunpack.c.l.s4 1966171168
        %v5559 = vunpack.c.0.s8 %v5558
        %v5560 = vlaneseq
        %v5561 = vshrl.u32 %v5560, 7
        %v5562 = vsub.s32 %v5559, %v5561
        %v5563 = vrot.slane %v5555, %v5562
        %v5565 = vunpack.c.l.s4 1966171168
        %v5566 = vunpack.c.0.s8 %v5565
        %v5567 = vlaneseq
        %v5568 = vshrl.u32 %v5567, 7
        %v5569 = vsub.s32 %v5566, %v5568
        %v5570 = vrot.slane %v5556, %v5569
        %v5571 = vcombine.high %v5563, %v5563
        %v5572 = vcombine.high %v5570, %v5570
        %v5574 = vunpack.c.l.s4 1966171168
        %v5575 = vunpack.c.0.s8 %v5574
        %v5576 = vlaneseq
        %v5577 = vshrl.u32 %v5576, 7
        %v5578 = vsub.s32 %v5575, %v5577
        %v5579 = vrot.slane %v5267, %v5578
        %v5580 = vcombine.high %v5579, %v5579
        %v5582 = vunpack.c.l.s4 1966171168
        %v5583 = vunpack.c.0.s8 %v5582
        %v5584 = vlaneseq
        %v5585 = vshrl.u32 %v5584, 7
        %v5586 = vsub.s32 %v5583, %v5585
        %v5587 = vrot.slane %v5579, %v5586
        %v5589 = vunpack.c.l.s4 1966171168
        %v5590 = vunpack.c.0.s8 %v5589
        %v5591 = vlaneseq
        %v5592 = vshrl.u32 %v5591, 7
        %v5593 = vsub.s32 %v5590, %v5592
        %v5594 = vrot.slane %v5580, %v5593
        %v5595 = vcombine.high %v5587, %v5587
        %v5596 = vcombine.high %v5594, %v5594
        %v5598 = vunpack.c.l.s4 1966171168
        %v5599 = vunpack.c.0.s8 %v5598
        %v5600 = vlaneseq
        %v5601 = vshrl.u32 %v5600, 7
        %v5602 = vsub.s32 %v5599, %v5601
        %v5603 = vrot.slane %v5268, %v5602
        %v5604 = vcombine.high %v5603, %v5603
        %v5606 = vunpack.c.l.s4 1966171168
        %v5607 = vunpack.c.0.s8 %v5606
        %v5608 = vlaneseq
        %v5609 = vshrl.u32 %v5608, 7
        %v5610 = vsub.s32 %v5607, %v5609
        %v5611 = vrot.slane %v5603, %v5610
        %v5613 = vunpack.c.l.s4 1966171168
        %v5614 = vunpack.c.0.s8 %v5613
        %v5615 = vlaneseq
        %v5616 = vshrl.u32 %v5615, 7
        %v5617 = vsub.s32 %v5614, %v5616
        %v5618 = vrot.slane %v5604, %v5617
        %v5619 = vcombine.high %v5611, %v5611
        %v5620 = vcombine.high %v5618, %v5618
        %v5622 = vunpack.c.l.s4 1966171168
        %v5623 = vunpack.c.0.s8 %v5622
        %v5624 = vlaneseq
        %v5625 = vshrl.u32 %v5624, 7
        %v5626 = vsub.s32 %v5623, %v5625
        %v5627 = vrot.slane %v5269, %v5626
        %v5628 = vcombine.high %v5627, %v5627
        %v5630 = vunpack.c.l.s4 1966171168
        %v5631 = vunpack.c.0.s8 %v5630
        %v5632 = vlaneseq
        %v5633 = vshrl.u32 %v5632, 7
        %v5634 = vsub.s32 %v5631, %v5633
        %v5635 = vrot.slane %v5627, %v5634
        %v5637 = vunpack.c.l.s4 1966171168
        %v5638 = vunpack.c.0.s8 %v5637
        %v5639 = vlaneseq
        %v5640 = vshrl.u32 %v5639, 7
        %v5641 = vsub.s32 %v5638, %v5640
        %v5642 = vrot.slane %v5628, %v5641
        %v5643 = vcombine.high %v5635, %v5635
        %v5644 = vcombine.high %v5642, %v5642
        %v5645 = vunpack.i.h.s16 %v5299
        %v5646 = vunpack.i.l.s16 %v5306
        %v5647 = vunpack.i.h.s16 %v5306
        %v5648 = vunpack.i.l.s16 %v5307
        %v5649 = vunpack.i.h.s16 %v5307
        %v5650 = vunpack.i.l.s16 %v5308
        %v5651 = vunpack.i.h.s16 %v5308
        %v5652 = vunpack.i.h.s16 %v5323
        %v5653 = vunpack.i.l.s16 %v5330
        %v5654 = vunpack.i.h.s16 %v5330
        %v5655 = vunpack.i.l.s16 %v5331
        %v5656 = vunpack.i.h.s16 %v5331
        %v5657 = vunpack.i.l.s16 %v5332
        %v5658 = vunpack.i.h.s16 %v5332
        %v5659 = vunpack.i.h.s16 %v5347
        %v5660 = vunpack.i.l.s16 %v5354
        %v5661 = vunpack.i.h.s16 %v5354
        %v5662 = vunpack.i.l.s16 %v5355
        %v5663 = vunpack.i.h.s16 %v5355
        %v5664 = vunpack.i.l.s16 %v5356
        %v5665 = vunpack.i.h.s16 %v5356
        %v5666 = vunpack.i.h.s16 %v5371
        %v5667 = vunpack.i.l.s16 %v5378
        %v5668 = vunpack.i.h.s16 %v5378
        %v5669 = vunpack.i.l.s16 %v5379
        %v5670 = vunpack.i.h.s16 %v5379
        %v5671 = vunpack.i.l.s16 %v5380
        %v5672 = vunpack.i.h.s16 %v5380
        %v5673 = vunpack.i.h.s16 %v5395
        %v5674 = vunpack.i.l.s16 %v5402
        %v5675 = vunpack.i.h.s16 %v5402
        %v5676 = vunpack.i.l.s16 %v5403
        %v5677 = vunpack.i.h.s16 %v5403
        %v5678 = vunpack.i.l.s16 %v5404
        %v5679 = vunpack.i.h.s16 %v5404
        %v5680 = vunpack.i.h.s16 %v5419
        %v5681 = vunpack.i.l.s16 %v5426
        %v5682 = vunpack.i.h.s16 %v5426
        %v5683 = vunpack.i.l.s16 %v5427
        %v5684 = vunpack.i.h.s16 %v5427
        %v5685 = vunpack.i.l.s16 %v5428
        %v5686 = vunpack.i.h.s16 %v5428
        %v5687 = vunpack.i.h.s16 %v5443
        %v5688 = vunpack.i.l.s16 %v5450
        %v5689 = vunpack.i.h.s16 %v5450
        %v5690 = vunpack.i.l.s16 %v5451
        %v5691 = vunpack.i.h.s16 %v5451
        %v5692 = vunpack.i.l.s16 %v5452
        %v5693 = vunpack.i.h.s16 %v5452
        %v5694 = vunpack.i.h.s16 %v5467
        %v5695 = vunpack.i.l.s16 %v5474
        %v5696 = vunpack.i.h.s16 %v5474
        %v5697 = vunpack.i.l.s16 %v5475
        %v5698 = vunpack.i.h.s16 %v5475
        %v5699 = vunpack.i.l.s16 %v5476
        %v5700 = vunpack.i.h.s16 %v5476
        %v5701 = vunpack.i.h.s16 %v5491
        %v5702 = vunpack.i.l.s16 %v5498
        %v5703 = vunpack.i.h.s16 %v5498
        %v5704 = vunpack.i.l.s16 %v5499
        %v5705 = vunpack.i.h.s16 %v5499
        %v5706 = vunpack.i.l.s16 %v5500
        %v5707 = vunpack.i.h.s16 %v5500
        %v5708 = vunpack.i.h.s16 %v5515
        %v5709 = vunpack.i.l.s16 %v5522
        %v5710 = vunpack.i.h.s16 %v5522
        %v5711 = vunpack.i.l.s16 %v5523
        %v5712 = vunpack.i.h.s16 %v5523
        %v5713 = vunpack.i.l.s16 %v5524
        %v5714 = vunpack.i.h.s16 %v5524
        %v5715 = vunpack.i.h.s16 %v5539
        %v5716 = vunpack.i.l.s16 %v5546
        %v5717 = vunpack.i.h.s16 %v5546
        %v5718 = vunpack.i.l.s16 %v5547
        %v5719 = vunpack.i.h.s16 %v5547
        %v5720 = vunpack.i.l.s16 %v5548
        %v5721 = vunpack.i.h.s16 %v5548
        %v5722 = vunpack.i.h.s16 %v5563
        %v5723 = vunpack.i.l.s16 %v5570
        %v5724 = vunpack.i.h.s16 %v5570
        %v5725 = vunpack.i.l.s16 %v5571
        %v5726 = vunpack.i.h.s16 %v5571
        %v5727 = vunpack.i.l.s16 %v5572
        %v5728 = vunpack.i.h.s16 %v5572
        %v5729 = vunpack.i.h.s16 %v5587
        %v5730 = vunpack.i.l.s16 %v5594
        %v5731 = vunpack.i.h.s16 %v5594
        %v5732 = vunpack.i.l.s16 %v5595
        %v5733 = vunpack.i.h.s16 %v5595
        %v5734 = vunpack.i.l.s16 %v5596
        %v5735 = vunpack.i.h.s16 %v5596
        %v5736 = vunpack.i.h.s16 %v5611
        %v5737 = vunpack.i.l.s16 %v5618
        %v5738 = vunpack.i.h.s16 %v5618
        %v5739 = vunpack.i.l.s16 %v5619
        %v5740 = vunpack.i.h.s16 %v5619
        %v5741 = vunpack.i.l.s16 %v5620
        %v5742 = vunpack.i.h.s16 %v5620
        %v5743 = vunpack.i.h.s16 %v5635
        %v5744 = vunpack.i.l.s16 %v5642
        %v5745 = vunpack.i.h.s16 %v5642
        %v5746 = vunpack.i.l.s16 %v5643
        %v5747 = vunpack.i.h.s16 %v5643
        %v5748 = vunpack.i.l.s16 %v5644
        %v5749 = vunpack.i.h.s16 %v5644
        %s5750 = scalar_lea.vmem %s2, 10
        %v5751 = vld [vmem:[%s5750] sm:$0x3]
        %v5752 = vpack.i.b16 %v5646, %v5645
        %v5753 = vpack.i.b16 %v5648, %v5647
        %v5754 = vpack.i.b16 %v5650, %v5649
        %v5755 = vpack.i.b16 %v5652, %v5651
        %v5756 = vpack.i.b16 %v5654, %v5653
        %v5757 = vpack.i.b16 %v5656, %v5655
        %v5758 = vpack.i.b16 %v5658, %v5657
        %v5759 = vpack.i.b16 %v5660, %v5659
        %v5760 = vpack.i.b16 %v5662, %v5661
        %v5761 = vpack.i.b16 %v5664, %v5663
        %v5762 = vpack.i.b16 %v5666, %v5665
        %v5763 = vpack.i.b16 %v5668, %v5667
        %v5764 = vpack.i.b16 %v5670, %v5669
        %v5765 = vpack.i.b16 %v5672, %v5671
        %v5766 = vpack.i.b16 %v5674, %v5673
        %v5767 = vpack.i.b16 %v5676, %v5675
        %v5768 = vpack.i.b16 %v5678, %v5677
        %v5769 = vpack.i.b16 %v5680, %v5679
        %v5770 = vpack.i.b16 %v5682, %v5681
        %v5771 = vpack.i.b16 %v5684, %v5683
        %v5772 = vpack.i.b16 %v5686, %v5685
        %v5773 = vpack.i.b16 %v5688, %v5687
        %v5774 = vpack.i.b16 %v5690, %v5689
        %v5775 = vpack.i.b16 %v5692, %v5691
        %v5776 = vpack.i.b16 %v5694, %v5693
        %v5777 = vpack.i.b16 %v5696, %v5695
        %v5778 = vpack.i.b16 %v5698, %v5697
        %v5779 = vpack.i.b16 %v5700, %v5699
        %v5780 = vpack.i.b16 %v5702, %v5701
        %v5781 = vpack.i.b16 %v5704, %v5703
        %v5782 = vpack.i.b16 %v5706, %v5705
        %v5783 = vpack.i.b16 %v5708, %v5707
        %v5784 = vpack.i.b16 %v5710, %v5709
        %v5785 = vpack.i.b16 %v5712, %v5711
        %v5786 = vpack.i.b16 %v5714, %v5713
        %v5787 = vpack.i.b16 %v5716, %v5715
        %v5788 = vpack.i.b16 %v5718, %v5717
        %v5789 = vpack.i.b16 %v5720, %v5719
        %v5790 = vpack.i.b16 %v5722, %v5721
        %v5791 = vpack.i.b16 %v5724, %v5723
        %v5792 = vpack.i.b16 %v5726, %v5725
        %v5793 = vpack.i.b16 %v5728, %v5727
        %v5794 = vpack.i.b16 %v5730, %v5729
        %v5795 = vpack.i.b16 %v5732, %v5731
        %v5796 = vpack.i.b16 %v5734, %v5733
        %v5797 = vpack.i.b16 %v5736, %v5735
        %v5798 = vpack.i.b16 %v5738, %v5737
        %v5799 = vpack.i.b16 %v5740, %v5739
        %v5800 = vpack.i.b16 %v5742, %v5741
        %v5801 = vpack.i.b16 %v5744, %v5743
        %v5802 = vpack.i.b16 %v5746, %v5745
        %v5803 = vpack.i.b16 %v5748, %v5747
        %v5805 = vcombine.low %v5752, %v5753
        %v5806 = vcombine.low %v5754, %v5755
        %v5807 = vcombine.low %v5756, %v5757
        %v5808 = vcombine.low %v5758, %v5759
        %v5810 = vunpack.c.l.s4 1966171168
        %v5811 = vunpack.c.0.s8 %v5810
        %v5812 = vlaneseq
        %v5813 = vshrl.u32 %v5812, 7
        %v5814 = vsub.s32 %v5811, %v5813
        %v5815 = vrot.slane %v5805, %v5814
        %v5817 = vunpack.c.l.s4 1966171168
        %v5818 = vunpack.c.0.s8 %v5817
        %v5819 = vlaneseq
        %v5820 = vshrl.u32 %v5819, 7
        %v5821 = vsub.s32 %v5818, %v5820
        %v5822 = vrot.slane %v5806, %v5821
        %v5824 = vunpack.c.l.s4 1966171168
        %v5825 = vunpack.c.0.s8 %v5824
        %v5826 = vlaneseq
        %v5827 = vshrl.u32 %v5826, 7
        %v5828 = vsub.s32 %v5825, %v5827
        %v5829 = vrot.slane %v5807, %v5828
        %v5831 = vunpack.c.l.s4 1966171168
        %v5832 = vunpack.c.0.s8 %v5831
        %v5833 = vlaneseq
        %v5834 = vshrl.u32 %v5833, 7
        %v5835 = vsub.s32 %v5832, %v5834
        %v5836 = vrot.slane %v5808, %v5835
        %v5837 = vcombine.low %v5815, %v5822
        %v5838 = vcombine.low %v5829, %v5836
        %v5840 = vunpack.c.l.s4 1966171168
        %v5841 = vunpack.c.0.s8 %v5840
        %v5842 = vlaneseq
        %v5843 = vshrl.u32 %v5842, 7
        %v5844 = vsub.s32 %v5841, %v5843
        %v5845 = vrot.slane %v5837, %v5844
        %v5847 = vunpack.c.l.s4 1966171168
        %v5848 = vunpack.c.0.s8 %v5847
        %v5849 = vlaneseq
        %v5850 = vshrl.u32 %v5849, 7
        %v5851 = vsub.s32 %v5848, %v5850
        %v5852 = vrot.slane %v5838, %v5851
        %v5853 = vcombine.low %v5845, %v5852
        %v5854 = vcombine.low %v5760, %v5761
        %v5855 = vcombine.low %v5762, %v5763
        %v5856 = vcombine.low %v5764, %v5765
        %v5857 = vcombine.low %v5766, %v5767
        %v5859 = vunpack.c.l.s4 1966171168
        %v5860 = vunpack.c.0.s8 %v5859
        %v5861 = vlaneseq
        %v5862 = vshrl.u32 %v5861, 7
        %v5863 = vsub.s32 %v5860, %v5862
        %v5864 = vrot.slane %v5854, %v5863
        %v5866 = vunpack.c.l.s4 1966171168
        %v5867 = vunpack.c.0.s8 %v5866
        %v5868 = vlaneseq
        %v5869 = vshrl.u32 %v5868, 7
        %v5870 = vsub.s32 %v5867, %v5869
        %v5871 = vrot.slane %v5855, %v5870
        %v5873 = vunpack.c.l.s4 1966171168
        %v5874 = vunpack.c.0.s8 %v5873
        %v5875 = vlaneseq
        %v5876 = vshrl.u32 %v5875, 7
        %v5877 = vsub.s32 %v5874, %v5876
        %v5878 = vrot.slane %v5856, %v5877
        %v5880 = vunpack.c.l.s4 1966171168
        %v5881 = vunpack.c.0.s8 %v5880
        %v5882 = vlaneseq
        %v5883 = vshrl.u32 %v5882, 7
        %v5884 = vsub.s32 %v5881, %v5883
        %v5885 = vrot.slane %v5857, %v5884
        %v5886 = vcombine.low %v5864, %v5871
        %v5887 = vcombine.low %v5878, %v5885
        %v5889 = vunpack.c.l.s4 1966171168
        %v5890 = vunpack.c.0.s8 %v5889
        %v5891 = vlaneseq
        %v5892 = vshrl.u32 %v5891, 7
        %v5893 = vsub.s32 %v5890, %v5892
        %v5894 = vrot.slane %v5886, %v5893
        %v5896 = vunpack.c.l.s4 1966171168
        %v5897 = vunpack.c.0.s8 %v5896
        %v5898 = vlaneseq
        %v5899 = vshrl.u32 %v5898, 7
        %v5900 = vsub.s32 %v5897, %v5899
        %v5901 = vrot.slane %v5887, %v5900
        %v5902 = vcombine.low %v5894, %v5901
        %v5903 = vcombine.low %v5768, %v5769
        %v5904 = vcombine.low %v5770, %v5771
        %v5905 = vcombine.low %v5772, %v5773
        %v5906 = vcombine.low %v5774, %v5775
        %v5908 = vunpack.c.l.s4 1966171168
        %v5909 = vunpack.c.0.s8 %v5908
        %v5910 = vlaneseq
        %v5911 = vshrl.u32 %v5910, 7
        %v5912 = vsub.s32 %v5909, %v5911
        %v5913 = vrot.slane %v5903, %v5912
        %v5915 = vunpack.c.l.s4 1966171168
        %v5916 = vunpack.c.0.s8 %v5915
        %v5917 = vlaneseq
        %v5918 = vshrl.u32 %v5917, 7
        %v5919 = vsub.s32 %v5916, %v5918
        %v5920 = vrot.slane %v5904, %v5919
        %v5922 = vunpack.c.l.s4 1966171168
        %v5923 = vunpack.c.0.s8 %v5922
        %v5924 = vlaneseq
        %v5925 = vshrl.u32 %v5924, 7
        %v5926 = vsub.s32 %v5923, %v5925
        %v5927 = vrot.slane %v5905, %v5926
        %v5929 = vunpack.c.l.s4 1966171168
        %v5930 = vunpack.c.0.s8 %v5929
        %v5931 = vlaneseq
        %v5932 = vshrl.u32 %v5931, 7
        %v5933 = vsub.s32 %v5930, %v5932
        %v5934 = vrot.slane %v5906, %v5933
        %v5935 = vcombine.low %v5913, %v5920
        %v5936 = vcombine.low %v5927, %v5934
        %v5938 = vunpack.c.l.s4 1966171168
        %v5939 = vunpack.c.0.s8 %v5938
        %v5940 = vlaneseq
        %v5941 = vshrl.u32 %v5940, 7
        %v5942 = vsub.s32 %v5939, %v5941
        %v5943 = vrot.slane %v5935, %v5942
        %v5945 = vunpack.c.l.s4 1966171168
        %v5946 = vunpack.c.0.s8 %v5945
        %v5947 = vlaneseq
        %v5948 = vshrl.u32 %v5947, 7
        %v5949 = vsub.s32 %v5946, %v5948
        %v5950 = vrot.slane %v5936, %v5949
        %v5951 = vcombine.low %v5943, %v5950
        %v5952 = vcombine.low %v5776, %v5777
        %v5953 = vcombine.low %v5778, %v5779
        %v5954 = vcombine.low %v5780, %v5781
        %v5955 = vcombine.low %v5782, %v5783
        %v5957 = vunpack.c.l.s4 1966171168
        %v5958 = vunpack.c.0.s8 %v5957
        %v5959 = vlaneseq
        %v5960 = vshrl.u32 %v5959, 7
        %v5961 = vsub.s32 %v5958, %v5960
        %v5962 = vrot.slane %v5952, %v5961
        %v5964 = vunpack.c.l.s4 1966171168
        %v5965 = vunpack.c.0.s8 %v5964
        %v5966 = vlaneseq
        %v5967 = vshrl.u32 %v5966, 7
        %v5968 = vsub.s32 %v5965, %v5967
        %v5969 = vrot.slane %v5953, %v5968
        %v5971 = vunpack.c.l.s4 1966171168
        %v5972 = vunpack.c.0.s8 %v5971
        %v5973 = vlaneseq
        %v5974 = vshrl.u32 %v5973, 7
        %v5975 = vsub.s32 %v5972, %v5974
        %v5976 = vrot.slane %v5954, %v5975
        %v5978 = vunpack.c.l.s4 1966171168
        %v5979 = vunpack.c.0.s8 %v5978
        %v5980 = vlaneseq
        %v5981 = vshrl.u32 %v5980, 7
        %v5982 = vsub.s32 %v5979, %v5981
        %v5983 = vrot.slane %v5955, %v5982
        %v5984 = vcombine.low %v5962, %v5969
        %v5985 = vcombine.low %v5976, %v5983
        %v5987 = vunpack.c.l.s4 1966171168
        %v5988 = vunpack.c.0.s8 %v5987
        %v5989 = vlaneseq
        %v5990 = vshrl.u32 %v5989, 7
        %v5991 = vsub.s32 %v5988, %v5990
        %v5992 = vrot.slane %v5984, %v5991
        %v5994 = vunpack.c.l.s4 1966171168
        %v5995 = vunpack.c.0.s8 %v5994
        %v5996 = vlaneseq
        %v5997 = vshrl.u32 %v5996, 7
        %v5998 = vsub.s32 %v5995, %v5997
        %v5999 = vrot.slane %v5985, %v5998
        %v6000 = vcombine.low %v5992, %v5999
        %v6001 = vcombine.low %v5784, %v5785
        %v6002 = vcombine.low %v5786, %v5787
        %v6003 = vcombine.low %v5788, %v5789
        %v6004 = vcombine.low %v5790, %v5791
        %v6006 = vunpack.c.l.s4 1966171168
        %v6007 = vunpack.c.0.s8 %v6006
        %v6008 = vlaneseq
        %v6009 = vshrl.u32 %v6008, 7
        %v6010 = vsub.s32 %v6007, %v6009
        %v6011 = vrot.slane %v6001, %v6010
        %v6013 = vunpack.c.l.s4 1966171168
        %v6014 = vunpack.c.0.s8 %v6013
        %v6015 = vlaneseq
        %v6016 = vshrl.u32 %v6015, 7
        %v6017 = vsub.s32 %v6014, %v6016
        %v6018 = vrot.slane %v6002, %v6017
        %v6020 = vunpack.c.l.s4 1966171168
        %v6021 = vunpack.c.0.s8 %v6020
        %v6022 = vlaneseq
        %v6023 = vshrl.u32 %v6022, 7
        %v6024 = vsub.s32 %v6021, %v6023
        %v6025 = vrot.slane %v6003, %v6024
        %v6027 = vunpack.c.l.s4 1966171168
        %v6028 = vunpack.c.0.s8 %v6027
        %v6029 = vlaneseq
        %v6030 = vshrl.u32 %v6029, 7
        %v6031 = vsub.s32 %v6028, %v6030
        %v6032 = vrot.slane %v6004, %v6031
        %v6033 = vcombine.low %v6011, %v6018
        %v6034 = vcombine.low %v6025, %v6032
        %v6036 = vunpack.c.l.s4 1966171168
        %v6037 = vunpack.c.0.s8 %v6036
        %v6038 = vlaneseq
        %v6039 = vshrl.u32 %v6038, 7
        %v6040 = vsub.s32 %v6037, %v6039
        %v6041 = vrot.slane %v6033, %v6040
        %v6043 = vunpack.c.l.s4 1966171168
        %v6044 = vunpack.c.0.s8 %v6043
        %v6045 = vlaneseq
        %v6046 = vshrl.u32 %v6045, 7
        %v6047 = vsub.s32 %v6044, %v6046
        %v6048 = vrot.slane %v6034, %v6047
        %v6049 = vcombine.low %v6041, %v6048
        %v6050 = vcombine.low %v5792, %v5793
        %v6051 = vcombine.low %v5794, %v5795
        %v6052 = vcombine.low %v5796, %v5797
        %v6053 = vcombine.low %v5798, %v5799
        %v6055 = vunpack.c.l.s4 1966171168
        %v6056 = vunpack.c.0.s8 %v6055
        %v6057 = vlaneseq
        %v6058 = vshrl.u32 %v6057, 7
        %v6059 = vsub.s32 %v6056, %v6058
        %v6060 = vrot.slane %v6050, %v6059
        %v6062 = vunpack.c.l.s4 1966171168
        %v6063 = vunpack.c.0.s8 %v6062
        %v6064 = vlaneseq
        %v6065 = vshrl.u32 %v6064, 7
        %v6066 = vsub.s32 %v6063, %v6065
        %v6067 = vrot.slane %v6051, %v6066
        %v6069 = vunpack.c.l.s4 1966171168
        %v6070 = vunpack.c.0.s8 %v6069
        %v6071 = vlaneseq
        %v6072 = vshrl.u32 %v6071, 7
        %v6073 = vsub.s32 %v6070, %v6072
        %v6074 = vrot.slane %v6052, %v6073
        %v6076 = vunpack.c.l.s4 1966171168
        %v6077 = vunpack.c.0.s8 %v6076
        %v6078 = vlaneseq
        %v6079 = vshrl.u32 %v6078, 7
        %v6080 = vsub.s32 %v6077, %v6079
        %v6081 = vrot.slane %v6053, %v6080
        %v6082 = vcombine.low %v6060, %v6067
        %v6083 = vcombine.low %v6074, %v6081
        %v6085 = vunpack.c.l.s4 1966171168
        %v6086 = vunpack.c.0.s8 %v6085
        %v6087 = vlaneseq
        %v6088 = vshrl.u32 %v6087, 7
        %v6089 = vsub.s32 %v6086, %v6088
        %v6090 = vrot.slane %v6082, %v6089
        %v6092 = vunpack.c.l.s4 1966171168
        %v6093 = vunpack.c.0.s8 %v6092
        %v6094 = vlaneseq
        %v6095 = vshrl.u32 %v6094, 7
        %v6096 = vsub.s32 %v6093, %v6095
        %v6097 = vrot.slane %v6083, %v6096
        %v6098 = vcombine.low %v6090, %v6097
        %v6099 = vcombine.low %v5800, %v5801
        %v6100 = vcombine.low %v5802, %v5803
        %v6102 = vunpack.c.l.s4 1966171168
        %v6103 = vunpack.c.0.s8 %v6102
        %v6104 = vlaneseq
        %v6105 = vshrl.u32 %v6104, 7
        %v6106 = vsub.s32 %v6103, %v6105
        %v6107 = vrot.slane %v6099, %v6106
        %v6109 = vunpack.c.l.s4 1966171168
        %v6110 = vunpack.c.0.s8 %v6109
        %v6111 = vlaneseq
        %v6112 = vshrl.u32 %v6111, 7
        %v6113 = vsub.s32 %v6110, %v6112
        %v6114 = vrot.slane %v6100, %v6113
        %v6116 = vunpack.c.l.s4 1966171168
        %v6117 = vunpack.c.0.s8 %v6116
        %v6118 = vlaneseq
        %v6119 = vshrl.u32 %v6118, 7
        %v6120 = vsub.s32 %v6117, %v6119
        %v6121 = vrot.slane %v5749, %v6120
        %v6122 = vcombine.low %v6107, %v6114
        %v6124 = vunpack.c.l.s4 1966171168
        %v6125 = vunpack.c.0.s8 %v6124
        %v6126 = vlaneseq
        %v6127 = vshrl.u32 %v6126, 7
        %v6128 = vsub.s32 %v6125, %v6127
        %v6129 = vrot.slane %v6122, %v6128
        %v6131 = vunpack.c.l.s4 1966171168
        %v6132 = vunpack.c.0.s8 %v6131
        %v6133 = vlaneseq
        %v6134 = vshrl.u32 %v6133, 7
        %v6135 = vsub.s32 %v6132, %v6134
        %v6136 = vrot.slane %v6121, %v6135
        %v6137 = vcombine.low %v6129, %v6136
        %v6139 = vsel %vm1609, %v5853, 0
        %v6142 = vsel %vm1609, %v5902, 0
        %v6145 = vsel %vm1609, %v5951, 0
        %v6148 = vsel %vm1609, %v6000, 0
        %v6151 = vsel %vm1609, %v6049, 0
        %v6154 = vsel %vm1609, %v6098, 0
        %v6157 = vsel %vm1609, %v6137, 0
        %v6160 = vsel %vm1631, %v5751, 0
        %6162 = vmatprep.subr.bf16.mxu0 0
        %6163 = vmatpush1.bf16.msra.mxu0 %v6160
        %6164 = vmatprep.subr.bf16.mxu0 0
        %6165 = vmatpush1.bf16.msra.mxu0 0
        %6166 = vmatprep.subr.bf16.mxu0 0
        %6167 = vmatpush1.bf16.msra.mxu0 0
        %6168 = vmatprep.subr.bf16.mxu0 0
        %6169 = vmatpush1.bf16.msra.mxu0 0
        %6170 = vmatprep.subr.bf16.mxu0 0
        %6171 = vmatpush1.bf16.msra.mxu0 0
        %6172 = vmatprep.subr.bf16.mxu0 0
        %6173 = vmatpush1.bf16.msra.mxu0 0
        %6174 = vmatprep.subr.bf16.mxu0 0
        %6175 = vmatpush1.bf16.msra.mxu0 0
        %6176 = vmatprep.subr.bf16.mxu0 0
        %6177 = vmatpush1.bf16.msra.mxu0 0
        %6178 = vmatprep.subr.bf16.mxu0 0
        %6179 = vmatpush1.bf16.msra.mxu0 0
        %6180 = vmatprep.subr.bf16.mxu0 0
        %6181 = vmatpush1.bf16.msra.mxu0 0
        %6182 = vmatprep.subr.bf16.mxu0 0
        %6183 = vmatpush1.bf16.msra.mxu0 0
        %6184 = vmatprep.subr.bf16.mxu0 0
        %6185 = vmatpush1.bf16.msra.mxu0 0
        %6186 = vmatprep.subr.bf16.mxu0 0
        %6187 = vmatpush1.bf16.msra.mxu0 0
        %6188 = vmatprep.subr.bf16.mxu0 0
        %6189 = vmatpush1.bf16.msra.mxu0 0
        %6190 = vmatprep.subr.bf16.mxu0 0
        %6191 = vmatpush1.bf16.msra.mxu0 0
        %6192 = vmatprep.subr.bf16.mxu0 0
        %6193 = vmatpush1.bf16.msra.mxu0 0
        %6194 = vmatprep.mubr.bf16.mxu0 0
        %6195 = vmatmul.mubr.bf16.gmra.mrb[0].mxu0 %v6139
        %v6196 = vpop.f32.mrb[0].mxu0
        %v6197 = vadd.f32 0.0, %v6196
        %v6198 = vpop.f32.mrb[0].mxu0
        %v6199 = vpop.f32.mrb[0].mxu0
        %v6200 = vadd.f32 0.0, %v6199
        %v6201 = vpop.f32.mrb[0].mxu0
        %6202 = vmatprep.mubr.bf16.mxu0 0
        %6203 = vmatmul.mubr.bf16.gmra.mrb[0].mxu0 %v6142
        %v6204 = vpop.f32.mrb[0].mxu0
        %v6205 = vadd.f32 0.0, %v6204
        %v6206 = vpop.f32.mrb[0].mxu0
        %v6207 = vpop.f32.mrb[0].mxu0
        %v6208 = vadd.f32 0.0, %v6207
        %v6209 = vpop.f32.mrb[0].mxu0
        %6210 = vmatprep.mubr.bf16.mxu0 0
        %6211 = vmatmul.mubr.bf16.gmra.mrb[0].mxu0 %v6145
        %v6212 = vpop.f32.mrb[0].mxu0
        %v6213 = vadd.f32 0.0, %v6212
        %v6214 = vpop.f32.mrb[0].mxu0
        %v6215 = vpop.f32.mrb[0].mxu0
        %v6216 = vadd.f32 0.0, %v6215
        %v6217 = vpop.f32.mrb[0].mxu0
        %6218 = vmatprep.mubr.bf16.mxu0 0
        %6219 = vmatmul.mubr.bf16.gmra.mrb[0].mxu0 %v6148
        %v6220 = vpop.f32.mrb[0].mxu0
        %v6221 = vadd.f32 0.0, %v6220
        %v6222 = vpop.f32.mrb[0].mxu0
        %v6223 = vpop.f32.mrb[0].mxu0
        %v6224 = vadd.f32 0.0, %v6223
        %v6225 = vpop.f32.mrb[0].mxu0
        %6226 = vmatprep.mubr.bf16.mxu0 0
        %6227 = vmatmul.mubr.bf16.gmra.mrb[0].mxu0 %v6151
        %v6228 = vpop.f32.mrb[0].mxu0
        %v6229 = vadd.f32 0.0, %v6228
        %v6230 = vpop.f32.mrb[0].mxu0
        %v6231 = vpop.f32.mrb[0].mxu0
        %v6232 = vadd.f32 0.0, %v6231
        %v6233 = vpop.f32.mrb[0].mxu0
        %6234 = vmatprep.mubr.bf16.mxu0 0
        %6235 = vmatmul.mubr.bf16.gmra.mrb[0].mxu0 %v6154
        %v6236 = vpop.f32.mrb[0].mxu0
        %v6237 = vadd.f32 0.0, %v6236
        %v6238 = vpop.f32.mrb[0].mxu0
        %v6239 = vpop.f32.mrb[0].mxu0
        %v6240 = vadd.f32 0.0, %v6239
        %v6241 = vpop.f32.mrb[0].mxu0
        %6242 = vmatprep.mubr.bf16.mxu0 0
        %6243 = vmatmul.mubr.bf16.gmra.mrb[0].mxu0 %v6157
        %v6244 = vpop.f32.mrb[0].mxu0
        %v6245 = vadd.f32 0.0, %v6244
        %v6246 = vpop.f32.mrb[0].mxu0
        %v6247 = vpop.f32.mrb[0].mxu0
        %v6248 = vadd.f32 0.0, %v6247
        %v6249 = vpop.f32.mrb[0].mxu0
        %6250 = vdwg.mxu0
        %v6251 = vadd.f32 %v5241, %v6197
        %v6252 = vadd.f32 %v5242, %v6200
        %v6253 = vadd.f32 %v5243, %v6205
        %v6254 = vadd.f32 %v5244, %v6208
        %v6255 = vadd.f32 %v5245, %v6213
        %v6256 = vadd.f32 %v5246, %v6216
        %v6257 = vadd.f32 %v5247, %v6221
        %v6258 = vadd.f32 %v5248, %v6224
        %v6259 = vadd.f32 %v5249, %v6229
        %v6260 = vadd.f32 %v5250, %v6232
        %v6261 = vadd.f32 %v5251, %v6237
        %v6262 = vadd.f32 %v5252, %v6240
        %v6263 = vadd.f32 %v5253, %v6245
        %v6264 = vadd.f32 %v5254, %v6248
        %v6265 = vsel %vm1609, %v6251, 0.0
        %v6266 = vsel %vm1609, %v6252, 0.0
        %v6267 = vadd.f32 %v6265, %v6266
        %v6268 = vsel %vm1609, %v6253, 0.0
        %v6269 = vadd.f32 %v6267, %v6268
        %v6270 = vsel %vm1609, %v6254, 0.0
        %v6271 = vadd.f32 %v6269, %v6270
        %v6272 = vsel %vm1609, %v6255, 0.0
        %v6273 = vadd.f32 %v6271, %v6272
        %v6274 = vsel %vm1609, %v6256, 0.0
        %v6275 = vadd.f32 %v6273, %v6274
        %v6276 = vsel %vm1609, %v6257, 0.0
        %v6277 = vadd.f32 %v6275, %v6276
        %v6278 = vsel %vm1609, %v6258, 0.0
        %v6279 = vadd.f32 %v6277, %v6278
        %v6280 = vsel %vm1609, %v6259, 0.0
        %v6281 = vadd.f32 %v6279, %v6280
        %v6282 = vsel %vm1609, %v6260, 0.0
        %v6283 = vadd.f32 %v6281, %v6282
        %v6284 = vsel %vm1609, %v6261, 0.0
        %v6285 = vadd.f32 %v6283, %v6284
        %v6286 = vsel %vm1609, %v6262, 0.0
        %v6287 = vadd.f32 %v6285, %v6286
        %v6288 = vsel %vm1609, %v6263, 0.0
        %v6289 = vadd.f32 %v6287, %v6288
        %vm6290 = vcmask 24576
        %v6291 = vsel %vm6290, %v6264, 0.0
        %v6292 = vadd.f32 %v6289, %v6291
        %v6293 = vrot.slane %v6292, 4
        %v6294 = vadd.f32 %v6292, %v6293
        %v6295 = vrot.slane %v6294, 2
        %v6296 = vadd.f32 %v6294, %v6295
        %v6297 = vrot.slane %v6296, 1
        %v6298 = vadd.f32 %v6296, %v6297
        %v6299 = vmul.f32 %v6298, 0.00952381
        %v6300 = vsub.f32 %v6251, %v6299
        %v6301 = vsub.f32 %v6252, %v6299
        %v6302 = vsub.f32 %v6253, %v6299
        %v6303 = vsub.f32 %v6254, %v6299
        %v6304 = vsub.f32 %v6255, %v6299
        %v6305 = vsub.f32 %v6256, %v6299
        %v6306 = vsub.f32 %v6257, %v6299
        %v6307 = vsub.f32 %v6258, %v6299
        %v6308 = vsub.f32 %v6259, %v6299
        %v6309 = vsub.f32 %v6260, %v6299
        %v6310 = vsub.f32 %v6261, %v6299
        %v6311 = vsub.f32 %v6262, %v6299
        %v6312 = vsub.f32 %v6263, %v6299
        %v6313 = vsub.f32 %v6264, %v6299
        %v6314 = vmul.f32 %v6300, %v6300
        %v6315 = vmul.f32 %v6301, %v6301
        %v6316 = vmul.f32 %v6302, %v6302
        %v6317 = vmul.f32 %v6303, %v6303
        %v6318 = vmul.f32 %v6304, %v6304
        %v6319 = vmul.f32 %v6305, %v6305
        %v6320 = vmul.f32 %v6306, %v6306
        %v6321 = vmul.f32 %v6307, %v6307
        %v6322 = vmul.f32 %v6308, %v6308
        %v6323 = vmul.f32 %v6309, %v6309
        %v6324 = vmul.f32 %v6310, %v6310
        %v6325 = vmul.f32 %v6311, %v6311
        %v6326 = vmul.f32 %v6312, %v6312
        %v6327 = vmul.f32 %v6313, %v6313
        %v6328 = vsel %vm1609, %v6314, 0.0
        %v6329 = vsel %vm1609, %v6315, 0.0
        %v6330 = vadd.f32 %v6328, %v6329
        %v6331 = vsel %vm1609, %v6316, 0.0
        %v6332 = vadd.f32 %v6330, %v6331
        %v6333 = vsel %vm1609, %v6317, 0.0
        %v6334 = vadd.f32 %v6332, %v6333
        %v6335 = vsel %vm1609, %v6318, 0.0
        %v6336 = vadd.f32 %v6334, %v6335
        %v6337 = vsel %vm1609, %v6319, 0.0
        %v6338 = vadd.f32 %v6336, %v6337
        %v6339 = vsel %vm1609, %v6320, 0.0
        %v6340 = vadd.f32 %v6338, %v6339
        %v6341 = vsel %vm1609, %v6321, 0.0
        %v6342 = vadd.f32 %v6340, %v6341
        %v6343 = vsel %vm1609, %v6322, 0.0
        %v6344 = vadd.f32 %v6342, %v6343
        %v6345 = vsel %vm1609, %v6323, 0.0
        %v6346 = vadd.f32 %v6344, %v6345
        %v6347 = vsel %vm1609, %v6324, 0.0
        %v6348 = vadd.f32 %v6346, %v6347
        %v6349 = vsel %vm1609, %v6325, 0.0
        %v6350 = vadd.f32 %v6348, %v6349
        %v6351 = vsel %vm1609, %v6326, 0.0
        %v6352 = vadd.f32 %v6350, %v6351
        %v6353 = vsel %vm6290, %v6327, 0.0
        %v6354 = vadd.f32 %v6352, %v6353
        %v6355 = vrot.slane %v6354, 4
        %v6356 = vadd.f32 %v6354, %v6355
        %v6357 = vrot.slane %v6356, 2
        %v6358 = vadd.f32 %v6356, %v6357
        %v6359 = vrot.slane %v6358, 1
        %v6360 = vadd.f32 %v6358, %v6359
        %vm6361 = vcmask 1040384
        %v6362 = vsel %vm6361, %v6299, %v6360
        %vm6363 = vcmask 25600
        %6364 = vst.msk [vmem:[%s213] sm:$0x3] %vm6363, %v6362
        %v6365 = vpack.c.bf16 %v6252, %v6251
        %v6366 = vpack.c.bf16 %v6254, %v6253
        %v6367 = vpack.c.bf16 %v6256, %v6255
        %v6368 = vpack.c.bf16 %v6258, %v6257
        %v6369 = vpack.c.bf16 %v6260, %v6259
        %v6370 = vpack.c.bf16 %v6262, %v6261
        %v6371 = vpack.c.bf16 %v6264, %v6263
        %v6379 = vunpack.c.l.b16 %v6365
        %v6380 = vunpack.c.h.b16 %v6365
        %v6381 = vunpack.c.l.b16 %v6366
        %v6382 = vunpack.c.h.b16 %v6366
        %v6383 = vunpack.c.l.b16 %v6367
        %v6384 = vunpack.c.h.b16 %v6367
        %v6385 = vunpack.c.l.b16 %v6368
        %v6386 = vunpack.c.h.b16 %v6368
        %v6387 = vunpack.c.l.b16 %v6369
        %v6388 = vunpack.c.h.b16 %v6369
        %v6389 = vunpack.c.l.b16 %v6370
        %v6390 = vunpack.c.h.b16 %v6370
        %v6391 = vunpack.c.l.b16 %v6371
        %v6392 = vunpack.c.h.b16 %v6371
        %v6393 = vpack.c.b16 %v6379, %v6379
        %v6394 = vpack.c.b16 %v6380, %v6380
        %v6395 = vpack.c.b16 %v6381, %v6381
        %v6396 = vpack.c.b16 %v6382, %v6382
        %v6397 = vpack.c.b16 %v6383, %v6383
        %v6398 = vpack.c.b16 %v6384, %v6384
        %v6399 = vpack.c.b16 %v6385, %v6385
        %v6400 = vpack.c.b16 %v6386, %v6386
        %v6401 = vpack.c.b16 %v6387, %v6387
        %v6402 = vpack.c.b16 %v6388, %v6388
        %v6403 = vpack.c.b16 %v6389, %v6389
        %v6404 = vpack.c.b16 %v6390, %v6390
        %v6405 = vpack.c.b16 %v6391, %v6391
        %v6406 = vpack.c.b16 %v6392, %v6392
        %vm6421 = vcmask 27648
        %6422 = vst.msk [vmem:[%s228] sm:$0xf] %vm6421, %v6393
        %6423 = vst.msk [vmem:[%s228 + $0x4] sm:$0xf] %vm6421, %v6394
        %6424 = vst.msk [vmem:[%s228 + $0x8] sm:$0xf] %vm6421, %v6395
        %6425 = vst.msk [vmem:[%s228 + $0xc] sm:$0xf] %vm6421, %v6396
        %6426 = vst.msk [vmem:[%s228 + $0x10] sm:$0xf] %vm6421, %v6397
        %6427 = vst.msk [vmem:[%s228 + $0x14] sm:$0xf] %vm6421, %v6398
        %6428 = vst.msk [vmem:[%s228 + $0x18] sm:$0xf] %vm6421, %v6399
        %6429 = vst.msk [vmem:[%s228 + $0x1c] sm:$0xf] %vm6421, %v6400
        %6430 = vst.msk [vmem:[%s228 + $0x20] sm:$0xf] %vm6421, %v6401
        %6431 = vst.msk [vmem:[%s228 + $0x24] sm:$0xf] %vm6421, %v6402
        %6432 = vst.msk [vmem:[%s228 + $0x28] sm:$0xf] %vm6421, %v6403
        %6433 = vst.msk [vmem:[%s228 + $0x2c] sm:$0xf] %vm6421, %v6404
        %6434 = vst.msk [vmem:[%s228 + $0x30] sm:$0xf] %vm6421, %v6405
        %vm6435 = vcmask 24576
        %vm6436 = vsmask.f32 256
        %vm6437 = vmand %vm6435, %vm6436
        %v6438 = vld [vmem:[%s228 + $0x34] sm:$0x1]
        %v6439 = vsel %vm6437, %v6406, %v6438
        %6440 = vst [vmem:[%s228 + $0x34] sm:$0x1] %v6439
        %p6441 = scmp.lt.s32.totalorder %s19, 1
        %s6442 = scalar_select %p6441, %s19, 1
        %s6443 = smul.addr %s6442, 14
        %s6444 = smul.addr %s6443, 4
        %s6445 = scalar_lea.vmem %s3, %s6444
        %s6446 = sand.u32 %s126, 1
        %s6447 = scalar_lea.sflag [#allocation3], %s6446
        %s6448 = sand.u32 %s126, 1
        %s6449 = smul.addr %s6448, 2
        %s6450 = scalar_lea.vmem [#allocation2], %s6449
        // Predicated region
        $region33: #{tpu_custom_call.1} parent=31 // pred_check
          %p6451 = pneg %p110
        $region34: #{tpu_custom_call.1} parent=31 // pred_check_branch
          %6453 = sbr.rel (%p6451) target = $region36
        $region35: #{tpu_custom_call.1} parent=31 // pred_region
          _
        $region36: #{tpu_custom_call.1} parent=31 // pred_fallthru
          _
        // Predicated region
        $region37: #{tpu_custom_call.1} parent=31 // pred_check
          %p6454 = pneg %p136
        $region38: #{tpu_custom_call.1} parent=31 // pred_check_branch
          %6456 = sbr.rel (%p6454) target = $region40
        $region39: #{tpu_custom_call.1} parent=31 // pred_region
          %s6458 = ssub.s32 32, 32
          %6459 = vsyncadd %s6447, %s6458
          %s6460 = smul.addr %s19, 32
          %s6461 = scalar_lea.hbm %s4, %s6460
          %s6463 = sshll.u32 %s6450, 4
          %s6464 = int_to_ptr.vmem [resolvable:$true] %s6463
          %6466 = dma.vmem_to_hbm [thread:$0]  %s6464, 32, %s6461, %s6447
        $region40: #{tpu_custom_call.1} parent=31 // pred_fallthru
          _
      $region32: #{tpu_custom_call.1} parent=5 // pred_fallthru
        _
      %p6467 = scmp.le.s32.totalorder 2, %s14
      // Predicated region
      $region41: #{tpu_custom_call.1} parent=5 // pred_check
        %p6468 = pneg %p6467
      $region42: #{tpu_custom_call.1} parent=5 // pred_check_branch
        %6470 = sbr.rel (%p6468) target = $region44
      $region43: #{tpu_custom_call.1} parent=5 // pred_region
        %s6471 = ssub.s32 %s14, 2
        // Predicated region
        $region45: #{tpu_custom_call.1} parent=43 // pred_check
          %p6472 = pneg %p116
        $region46: #{tpu_custom_call.1} parent=43 // pred_check_branch
          %6474 = sbr.rel (%p6472) target = $region48
        $region47: #{tpu_custom_call.1} parent=43 // pred_region
          %p6475 = scmp.lt.s32.totalorder %s20, 1
          %s6476 = scalar_select %p6475, %s20, 1
          %s6477 = smul.addr %s6476, 14
          %s6478 = smul.addr %s6477, 4
          %s6479 = scalar_lea.vmem %s3, %s6478
        $region48: #{tpu_custom_call.1} parent=43 // pred_fallthru
          _
        // Predicated region
        $region49: #{tpu_custom_call.1} parent=43 // pred_check
          %p6480 = pneg %p142
        $region50: #{tpu_custom_call.1} parent=43 // pred_check_branch
          %6482 = sbr.rel (%p6480) target = $region52
        $region51: #{tpu_custom_call.1} parent=43 // pred_region
          %s6483 = sand.u32 %s127, 1
          %s6484 = scalar_lea.sflag [#allocation3], %s6483
          %s6485 = sand.u32 %s127, 1
          %s6486 = smul.addr %s6485, 2
          %s6487 = scalar_lea.vmem [#allocation2], %s6486
          %6488 = dma.done %s6484, 32
        $region52: #{tpu_custom_call.1} parent=43 // pred_fallthru
          _
      $region44: #{tpu_custom_call.1} parent=5 // pred_fallthru
        _
    $region6: #{tpu_custom_call.1} parent=1 // loop_footer
      %s18 = sadd.s32 1, %s14
    $region7: #{tpu_custom_call.1} parent=1 // loop_footer_branch
      %13 = sbr.rel target = $region3
    $region8: #{tpu_custom_call.1} parent=1 // loop_exit
      _
    %6489 = vsyncpa [#allocation3], 1
    %s6490 = scalar_lea.sflag [#allocation3], 1
    %6491 = vsyncpa %s6490, 1

</llo_original>
